<compile_context>
chip_gen: v7x
topology: tpu7x:2x2x1
jax: 0.10.0
libtpu: 0.0.40
codegen_flags: <defaults>
</compile_context>

<pallas_src>
import functools

import jax
import jax.numpy as jnp
from jax.experimental import pallas as pl
from jax.experimental.pallas import tpu as pltpu

BN_EPS = 1e-5  # nn.BatchNorm2d default eps


# ---------------------------------------------------------------------------
# Fused residual-block kernel (one batch block per grid step)
# ---------------------------------------------------------------------------
def _residual_kernel(x_ref, w1_ref, b1_ref, w2_ref, b2_ref, *rest,
                     stride, use_1x1conv, tap_accumulate):
    if use_1x1conv:
        w3_ref, b3_ref, o_ref, xpad_ref, ypad_ref = rest
    else:
        o_ref, xpad_ref, ypad_ref = rest

    B, Ho, Wo, Cout = o_ref.shape
    _, H, W, Cin = x_ref.shape
    M = B * Ho * Wo
    f32 = jnp.float32
    bf16 = jnp.bfloat16

    def stage_padded(dst_ref, interior, h, w, c):
        # Zero only the 1-pixel halo; the interior is fully overwritten.
        dst_ref[:, 0:1, :, :] = jnp.zeros((B, 1, w + 2, c), f32)
        dst_ref[:, h + 1:h + 2, :, :] = jnp.zeros((B, 1, w + 2, c), f32)
        dst_ref[:, 1:h + 1, 0:1, :] = jnp.zeros((B, h, 1, c), f32)
        dst_ref[:, 1:h + 1, w + 1:w + 2, :] = jnp.zeros((B, h, 1, c), f32)
        dst_ref[:, 1:h + 1, 1:w + 1, :] = interior

    def conv3x3(src_ref, w_ref, s):
        # im2col: gather nine taps (cast to bf16), contract against the
        # BN-scale-folded bf16 weights with f32 accumulation on the MXU.
        c = src_ref.shape[-1]
        taps = []
        for dy in range(3):
            for dx in range(3):
                if s == 1:
                    t = src_ref[:, dy:dy + Ho, dx:dx + Wo, :]
                else:
                    t = src_ref[:, pl.ds(dy, Ho, stride=s),
                                pl.ds(dx, Wo, stride=s), :]
                taps.append(t.astype(bf16))
        if tap_accumulate:
            # v5e: 128-deep MXU -> K=C per pass already saturates it; skip the
            # big 9*C patches buffer and its VMEM store traffic.
            acc = jnp.zeros((M, w_ref.shape[-1]), f32)
            for idx, t in enumerate(taps):
                acc += jnp.dot(t.reshape(M, c),
                               w_ref[idx * c:(idx + 1) * c, :],
                               preferred_element_type=f32)
            return acc
        # v6e/v7x: 256-deep MXU wants K >= 256 -> single K = 9*C contraction.
        patches = jnp.concatenate(taps, axis=-1).reshape(M, -1)
        return jnp.dot(patches, w_ref[...], preferred_element_type=f32)

    # Stage the zero-padded input block in VMEM (pad done on-chip, not in HBM).
    stage_padded(xpad_ref, x_ref[...], H, W, Cin)

    # conv1 (BN1 scale folded into w1) + shift + ReLU.
    y1 = jnp.maximum(conv3x3(xpad_ref, w1_ref, stride) + b1_ref[...], 0.0)

    # Stage the zero-padded conv1 activation for conv2.
    stage_padded(ypad_ref, y1.reshape(B, Ho, Wo, Cout), Ho, Wo, Cout)

    # conv2 (BN2 scale folded into w2) + shift (no ReLU yet).
    y2 = conv3x3(ypad_ref, w2_ref, 1) + b2_ref[...]

    # Skip path derived from the same x block (no second DMA of the input).
    if use_1x1conv:
        if stride == 1:
            xs = x_ref[...]
        else:
            xs = x_ref[:, pl.ds(0, Ho, stride=stride),
                       pl.ds(0, Wo, stride=stride), :]
        skip = jnp.dot(xs.astype(bf16).reshape(M, Cin), w3_ref[...],
                       preferred_element_type=f32) + b3_ref[...]
    else:
        skip = x_ref[...].reshape(M, Cout)

    o_ref[...] = jnp.maximum(y2 + skip, 0.0).reshape(
        B, Ho, Wo, Cout).astype(o_ref.dtype)


# ---------------------------------------------------------------------------
# Wrapper: parameter folding + pallas_call plumbing
# ---------------------------------------------------------------------------
def _fold_bn_into_weight(w_oihw, conv_b, gamma, beta, mean, var):
    # bn(conv(x) + b) == (scale * w) (*) x + (beta + (b - mean) * scale)
    scale = gamma / jnp.sqrt(var + BN_EPS)
    shift = (beta + (conv_b - mean) * scale).reshape(1, -1).astype(jnp.float32)
    return w_oihw * scale[:, None, None, None], shift


def _im2col_weight(w_oihw):
    # torch OIHW (Cout, Cin, 3, 3) -> (9*Cin, Cout), tap-major (dy, dx, cin)
    cout, cin = w_oihw.shape[0], w_oihw.shape[1]
    return jnp.transpose(w_oihw, (2, 3, 1, 0)).reshape(9 * cin, cout)


def residual_forward(params, x_nchw, *, strides=1, use_1x1conv=False,
                     block_b=1, tap_accumulate=False):
    """Forward pass of the Residual module. x_nchw: (N, Cin, H, W) float32."""
    x = jnp.transpose(x_nchw, (0, 2, 3, 1)).astype(jnp.float32)  # NHWC
    N, H, W, Cin = x.shape
    Cout = params["conv1_w"].shape[0]
    Ho = (H - 1) // strides + 1
    Wo = (W - 1) // strides + 1

    w1f, b1 = _fold_bn_into_weight(params["conv1_w"], params["conv1_b"],
                                   params["bn1_gamma"], params["bn1_beta"],
                                   params["bn1_mean"], params["bn1_var"])
    w2f, b2 = _fold_bn_into_weight(params["conv2_w"], params["conv2_b"],
                                   params["bn2_gamma"], params["bn2_beta"],
                                   params["bn2_mean"], params["bn2_var"])
    w1 = _im2col_weight(w1f).astype(jnp.bfloat16)
    w2 = _im2col_weight(w2f).astype(jnp.bfloat16)

    B = block_b
    assert N % B == 0

    rep = lambda b: (0, 0)
    in_specs = [
        pl.BlockSpec((B, H, W, Cin), lambda b: (b, 0, 0, 0)),
        pl.BlockSpec((9 * Cin, Cout), rep),
        pl.BlockSpec((1, Cout), rep),
        pl.BlockSpec((9 * Cout, Cout), rep),
        pl.BlockSpec((1, Cout), rep),
    ]
    args = [x, w1, b1, w2, b2]
    if use_1x1conv:
        w3 = jnp.transpose(params["conv3_w"].reshape(Cout, Cin),
                           (1, 0)).astype(jnp.bfloat16)
        b3 = params["conv3_b"].reshape(1, Cout).astype(jnp.float32)
        in_specs += [pl.BlockSpec((Cin, Cout), rep),
                     pl.BlockSpec((1, Cout), rep)]
        args += [w3, b3]
    else:
        assert strides == 1 and Cin == Cout, "identity skip needs same shape"

    kern = functools.partial(_residual_kernel, stride=strides,
                             use_1x1conv=use_1x1conv,
                             tap_accumulate=tap_accumulate)
    out_nhwc = pl.pallas_call(
        kern,
        out_shape=jax.ShapeDtypeStruct((N, Ho, Wo, Cout), jnp.float32),
        grid_spec=pltpu.PrefetchScalarGridSpec(
            num_scalar_prefetch=0,
            grid=(N // B,),
            in_specs=in_specs,
            out_specs=pl.BlockSpec((B, Ho, Wo, Cout), lambda b: (b, 0, 0, 0)),
            scratch_shapes=[
                pltpu.VMEM((B, H + 2, W + 2, Cin), jnp.float32),
                pltpu.VMEM((B, Ho + 2, Wo + 2, Cout), jnp.float32)],
        ),
        compiler_params=pltpu.CompilerParams(
            dimension_semantics=("parallel",),
            vmem_limit_bytes=48 * 1024 * 1024),
    )(*args)
    return jnp.transpose(out_nhwc, (0, 3, 1, 2))         # back to NCHW


# ---------------------------------------------------------------------------
# Deterministic synthetic parameters (torch layouts / init-style bounds)
# ---------------------------------------------------------------------------
def init_params(key, cin, cout, use_1x1conv):
    ks = jax.random.split(key, 8)

    def conv_w(k, co, ci, ksz):
        bound = 1.0 / float(ci * ksz * ksz) ** 0.5
        return jax.random.uniform(k, (co, ci, ksz, ksz), jnp.float32,
                                  -bound, bound)

    def conv_b(k, co, ci, ksz):
        bound = 1.0 / float(ci * ksz * ksz) ** 0.5
        return jax.random.uniform(k, (co,), jnp.float32, -bound, bound)

    def bn(k):
        kg, kb, km, kv = jax.random.split(k, 4)
        return (jax.random.uniform(kg, (cout,), jnp.float32, 0.5, 1.5),
                jax.random.uniform(kb, (cout,), jnp.float32, -0.2, 0.2),
                jax.random.uniform(km, (cout,), jnp.float32, -0.2, 0.2),
                jax.random.uniform(kv, (cout,), jnp.float32, 0.5, 1.5))

    g1, be1, m1, v1 = bn(ks[4])
    g2, be2, m2, v2 = bn(ks[5])
    p = {
        "conv1_w": conv_w(ks[0], cout, cin, 3),
        "conv1_b": conv_b(ks[1], cout, cin, 3),
        "conv2_w": conv_w(ks[2], cout, cout, 3),
        "conv2_b": conv_b(ks[3], cout, cout, 3),
        "bn1_gamma": g1, "bn1_beta": be1, "bn1_mean": m1, "bn1_var": v1,
        "bn2_gamma": g2, "bn2_beta": be2, "bn2_mean": m2, "bn2_var": v2,
    }
    if use_1x1conv:
        p["conv3_w"] = conv_w(ks[6], cout, cin, 1)
        p["conv3_b"] = conv_b(ks[7], cout, cin, 1)
    return p


# ---------------------------------------------------------------------------
# Pure-JAX reference (same inference-mode BN semantics)
# ---------------------------------------------------------------------------
def residual_reference(params, x_nchw, *, strides=1, use_1x1conv=False):
    hi = jax.lax.Precision.HIGHEST

    def conv(x, w, b, stride, pad):
        y = jax.lax.conv_general_dilated(
            x, w, window_strides=(stride, stride),
            padding=[(pad, pad), (pad, pad)],
            dimension_numbers=("NCHW", "OIHW", "NCHW"), precision=hi)
        return y + b[None, :, None, None]

    def bn(x, g, beta, mean, var):
        inv = (g / jnp.sqrt(var + BN_EPS))[None, :, None, None]
        return (x - mean[None, :, None, None]) * inv + beta[None, :, None, None]

    y = jax.nn.relu(bn(conv(x_nchw, params["conv1_w"], params["conv1_b"],
                            strides, 1),
                       params["bn1_gamma"], params["bn1_beta"],
                       params["bn1_mean"], params["bn1_var"]))
    y = bn(conv(y, params["conv2_w"], params["conv2_b"], 1, 1),
           params["bn2_gamma"], params["bn2_beta"],
           params["bn2_mean"], params["bn2_var"])
    if use_1x1conv:
        x_nchw = conv(x_nchw, params["conv3_w"], params["conv3_b"], strides, 0)
    return jax.nn.relu(y + x_nchw)


if __name__ == "__main__":
    key = jax.random.PRNGKey(0)
    kpa, kxa, kpb, kxb = jax.random.split(key, 4)

    # Config A: downsampling block (stride 2, 128->256 channels, 1x1 skip conv).
    pa = init_params(kpa, 128, 256, True)
    xa = jax.random.normal(kxa, (2, 128, 16, 16), jnp.float32)
    ya = residual_forward(pa, xa, strides=2, use_1x1conv=True)
    ra = residual_reference(pa, xa, strides=2, use_1x1conv=True)

    # Config B: identity-skip block (stride 1, 128->128 channels).
    pb = init_params(kpb, 128, 128, False)
    xb = jax.random.normal(kxb, (2, 128, 16, 16), jnp.float32)
    yb = residual_forward(pb, xb, strides=1, use_1x1conv=False)
    rb = residual_reference(pb, xb, strides=1, use_1x1conv=False)

    jax.block_until_ready((ya, yb))
    assert ya.shape == (2, 256, 8, 8) and ya.dtype == jnp.float32
    assert yb.shape == (2, 128, 16, 16) and yb.dtype == jnp.float32
    assert bool(jnp.allclose(ya, ra, rtol=2e-2, atol=2e-2))
    assert bool(jnp.allclose(yb, rb, rtol=2e-2, atol=2e-2))
    print("KERNEL_OK")
</pallas_src>

<mosaic_0001>
module attributes {stable_mosaic.version = 11 : i64} {
  func.func @_residual_kernel(%arg0: i32, %arg1: memref<1x16x16x128xf32, #tpu.memory_space<vmem>>, %arg2: memref<1152x256xbf16, #tpu.memory_space<vmem>>, %arg3: memref<1x256xf32, #tpu.memory_space<vmem>>, %arg4: memref<2304x256xbf16, #tpu.memory_space<vmem>>, %arg5: memref<1x256xf32, #tpu.memory_space<vmem>>, %arg6: memref<128x256xbf16, #tpu.memory_space<vmem>>, %arg7: memref<1x256xf32, #tpu.memory_space<vmem>>, %arg8: memref<1x8x8x256xf32, #tpu.memory_space<vmem>>, %arg9: memref<1x18x18x128xf32, #tpu.memory_space<vmem>>, %arg10: memref<1x10x10x256xf32, #tpu.memory_space<vmem>>) attributes {dimension_semantics = [#tpu.dimension_semantics<parallel>], iteration_bounds = array<i64: 2>, scalar_prefetch = 0 : i64, scratch_operands = 2 : i64, tpu.core_type = #tpu.core_type<tc>, window_params = [{transform_indices = @transform_0, window_bounds = array<i64: 1, 16, 16, 128>}, {pipeline_mode = #tpu.pipeline_mode<synchronous>, transform_indices = @transform_1, window_bounds = array<i64: 1152, 256>}, {pipeline_mode = #tpu.pipeline_mode<synchronous>, transform_indices = @transform_2, window_bounds = array<i64: 1, 256>}, {pipeline_mode = #tpu.pipeline_mode<synchronous>, transform_indices = @transform_3, window_bounds = array<i64: 2304, 256>}, {pipeline_mode = #tpu.pipeline_mode<synchronous>, transform_indices = @transform_4, window_bounds = array<i64: 1, 256>}, {pipeline_mode = #tpu.pipeline_mode<synchronous>, transform_indices = @transform_5, window_bounds = array<i64: 128, 256>}, {pipeline_mode = #tpu.pipeline_mode<synchronous>, transform_indices = @transform_6, window_bounds = array<i64: 1, 256>}, {transform_indices = @transform_7, window_bounds = array<i64: 1, 8, 8, 256>}]} {
    %c0 = arith.constant 0 : index
    %c0_0 = arith.constant 0 : index
    %c0_1 = arith.constant 0 : index
    %c0_2 = arith.constant 0 : index
    %0 = vector.load %arg1[%c0, %c0_0, %c0_1, %c0_2] : memref<1x16x16x128xf32, #tpu.memory_space<vmem>>, vector<1x16x16x128xf32>
    %cst = arith.constant 0.000000e+00 : f32
    %1 = vector.broadcast %cst : f32 to vector<1x1x18x128xf32>
    %c0_3 = arith.constant 0 : index
    %c0_4 = arith.constant 0 : index
    %c0_5 = arith.constant 0 : index
    %c0_6 = arith.constant 0 : index
    %2 = vector.load %arg9[%c0_3, %c0_4, %c0_5, %c0_6] : memref<1x18x18x128xf32, #tpu.memory_space<vmem>>, vector<1x1x18x128xf32>
    tpu.vector_store %arg9[%c0_3, %c0_4, %c0_5, %c0_6], %1 {strides = array<i32>} : memref<1x18x18x128xf32, #tpu.memory_space<vmem>>, vector<1x1x18x128xf32>,
    %cst_7 = arith.constant 0.000000e+00 : f32
    %3 = vector.broadcast %cst_7 : f32 to vector<1x1x18x128xf32>
    %c0_8 = arith.constant 0 : index
    %c17 = arith.constant 17 : index
    %c0_9 = arith.constant 0 : index
    %c0_10 = arith.constant 0 : index
    %4 = vector.load %arg9[%c0_8, %c17, %c0_9, %c0_10] : memref<1x18x18x128xf32, #tpu.memory_space<vmem>>, vector<1x1x18x128xf32>
    tpu.vector_store %arg9[%c0_8, %c17, %c0_9, %c0_10], %3 {strides = array<i32>} : memref<1x18x18x128xf32, #tpu.memory_space<vmem>>, vector<1x1x18x128xf32>,
    %cst_11 = arith.constant 0.000000e+00 : f32
    %5 = vector.broadcast %cst_11 : f32 to vector<1x16x1x128xf32>
    %c0_12 = arith.constant 0 : index
    %c1 = arith.constant 1 : index
    %c0_13 = arith.constant 0 : index
    %c0_14 = arith.constant 0 : index
    %6 = vector.load %arg9[%c0_12, %c1, %c0_13, %c0_14] : memref<1x18x18x128xf32, #tpu.memory_space<vmem>>, vector<1x16x1x128xf32>
    tpu.vector_store %arg9[%c0_12, %c1, %c0_13, %c0_14], %5 {strides = array<i32>} : memref<1x18x18x128xf32, #tpu.memory_space<vmem>>, vector<1x16x1x128xf32>,
    %cst_15 = arith.constant 0.000000e+00 : f32
    %7 = vector.broadcast %cst_15 : f32 to vector<1x16x1x128xf32>
    %c0_16 = arith.constant 0 : index
    %c1_17 = arith.constant 1 : index
    %c17_18 = arith.constant 17 : index
    %c0_19 = arith.constant 0 : index
    %8 = vector.load %arg9[%c0_16, %c1_17, %c17_18, %c0_19] : memref<1x18x18x128xf32, #tpu.memory_space<vmem>>, vector<1x16x1x128xf32>
    tpu.vector_store %arg9[%c0_16, %c1_17, %c17_18, %c0_19], %7 {strides = array<i32>} : memref<1x18x18x128xf32, #tpu.memory_space<vmem>>, vector<1x16x1x128xf32>,
    %c0_20 = arith.constant 0 : index
    %c1_21 = arith.constant 1 : index
    %c1_22 = arith.constant 1 : index
    %c0_23 = arith.constant 0 : index
    %9 = vector.load %arg9[%c0_20, %c1_21, %c1_22, %c0_23] : memref<1x18x18x128xf32, #tpu.memory_space<vmem>>, vector<1x16x16x128xf32>
    tpu.vector_store %arg9[%c0_20, %c1_21, %c1_22, %c0_23], %0 {strides = array<i32>} : memref<1x18x18x128xf32, #tpu.memory_space<vmem>>, vector<1x16x16x128xf32>,
    %c0_24 = arith.constant 0 : index
    %c0_25 = arith.constant 0 : index
    %c0_26 = arith.constant 0 : index
    %c0_27 = arith.constant 0 : index
    %10 = tpu.strided_load %arg9[%c0_24, %c0_25, %c0_26, %c0_27] {strides = array<i32: 1, 2, 2, 1>} : memref<1x18x18x128xf32, #tpu.memory_space<vmem>>, vector<1x8x8x128xf32>
    %11 = arith.truncf %10 : vector<1x8x8x128xf32> to vector<1x8x8x128xbf16>
    %c0_28 = arith.constant 0 : index
    %c0_29 = arith.constant 0 : index
    %c1_30 = arith.constant 1 : index
    %c0_31 = arith.constant 0 : index
    %12 = tpu.strided_load %arg9[%c0_28, %c0_29, %c1_30, %c0_31] {strides = array<i32: 1, 2, 2, 1>} : memref<1x18x18x128xf32, #tpu.memory_space<vmem>>, vector<1x8x8x128xf32>
    %13 = arith.truncf %12 : vector<1x8x8x128xf32> to vector<1x8x8x128xbf16>
    %c0_32 = arith.constant 0 : index
    %c0_33 = arith.constant 0 : index
    %c2 = arith.constant 2 : index
    %c0_34 = arith.constant 0 : index
    %14 = tpu.strided_load %arg9[%c0_32, %c0_33, %c2, %c0_34] {strides = array<i32: 1, 2, 2, 1>} : memref<1x18x18x128xf32, #tpu.memory_space<vmem>>, vector<1x8x8x128xf32>
    %15 = arith.truncf %14 : vector<1x8x8x128xf32> to vector<1x8x8x128xbf16>
    %c0_35 = arith.constant 0 : index
    %c1_36 = arith.constant 1 : index
    %c0_37 = arith.constant 0 : index
    %c0_38 = arith.constant 0 : index
    %16 = tpu.strided_load %arg9[%c0_35, %c1_36, %c0_37, %c0_38] {strides = array<i32: 1, 2, 2, 1>} : memref<1x18x18x128xf32, #tpu.memory_space<vmem>>, vector<1x8x8x128xf32>
    %17 = arith.truncf %16 : vector<1x8x8x128xf32> to vector<1x8x8x128xbf16>
    %c0_39 = arith.constant 0 : index
    %c1_40 = arith.constant 1 : index
    %c1_41 = arith.constant 1 : index
    %c0_42 = arith.constant 0 : index
    %18 = tpu.strided_load %arg9[%c0_39, %c1_40, %c1_41, %c0_42] {strides = array<i32: 1, 2, 2, 1>} : memref<1x18x18x128xf32, #tpu.memory_space<vmem>>, vector<1x8x8x128xf32>
    %19 = arith.truncf %18 : vector<1x8x8x128xf32> to vector<1x8x8x128xbf16>
    %c0_43 = arith.constant 0 : index
    %c1_44 = arith.constant 1 : index
    %c2_45 = arith.constant 2 : index
    %c0_46 = arith.constant 0 : index
    %20 = tpu.strided_load %arg9[%c0_43, %c1_44, %c2_45, %c0_46] {strides = array<i32: 1, 2, 2, 1>} : memref<1x18x18x128xf32, #tpu.memory_space<vmem>>, vector<1x8x8x128xf32>
    %21 = arith.truncf %20 : vector<1x8x8x128xf32> to vector<1x8x8x128xbf16>
    %c0_47 = arith.constant 0 : index
    %c2_48 = arith.constant 2 : index
    %c0_49 = arith.constant 0 : index
    %c0_50 = arith.constant 0 : index
    %22 = tpu.strided_load %arg9[%c0_47, %c2_48, %c0_49, %c0_50] {strides = array<i32: 1, 2, 2, 1>} : memref<1x18x18x128xf32, #tpu.memory_space<vmem>>, vector<1x8x8x128xf32>
    %23 = arith.truncf %22 : vector<1x8x8x128xf32> to vector<1x8x8x128xbf16>
    %c0_51 = arith.constant 0 : index
    %c2_52 = arith.constant 2 : index
    %c1_53 = arith.constant 1 : index
    %c0_54 = arith.constant 0 : index
    %24 = tpu.strided_load %arg9[%c0_51, %c2_52, %c1_53, %c0_54] {strides = array<i32: 1, 2, 2, 1>} : memref<1x18x18x128xf32, #tpu.memory_space<vmem>>, vector<1x8x8x128xf32>
    %25 = arith.truncf %24 : vector<1x8x8x128xf32> to vector<1x8x8x128xbf16>
    %c0_55 = arith.constant 0 : index
    %c2_56 = arith.constant 2 : index
    %c2_57 = arith.constant 2 : index
    %c0_58 = arith.constant 0 : index
    %26 = tpu.strided_load %arg9[%c0_55, %c2_56, %c2_57, %c0_58] {strides = array<i32: 1, 2, 2, 1>} : memref<1x18x18x128xf32, #tpu.memory_space<vmem>>, vector<1x8x8x128xf32>
    %27 = arith.truncf %26 : vector<1x8x8x128xf32> to vector<1x8x8x128xbf16>
    %28 = tpu.concatenate %11, %13, %15, %17, %19, %21, %23, %25, %27 in 3 : vector<1x8x8x128xbf16>, vector<1x8x8x128xbf16>, vector<1x8x8x128xbf16>, vector<1x8x8x128xbf16>, vector<1x8x8x128xbf16>, vector<1x8x8x128xbf16>, vector<1x8x8x128xbf16>, vector<1x8x8x128xbf16>, vector<1x8x8x128xbf16> -> vector<1x8x8x1152xbf16>
    %29 = vector.shape_cast %28 : vector<1x8x8x1152xbf16> to vector<64x1152xbf16>
    %c0_59 = arith.constant 0 : index
    %c0_60 = arith.constant 0 : index
    %30 = vector.load %arg2[%c0_59, %c0_60] : memref<1152x256xbf16, #tpu.memory_space<vmem>>, vector<1152x256xbf16>
    %cst_61 = arith.constant dense<0.000000e+00> : vector<64x256xf32>
    %31 = tpu.matmul %29, %30, %cst_61 {dimension_numbers = #tpu.dot_dimension_numbers<[1], [0], [0], [1], [0, 0, 1, 1], [], []>} : vector<64x1152xbf16>, vector<1152x256xbf16>, vector<64x256xf32> -> vector<64x256xf32>
    %c0_62 = arith.constant 0 : index
    %c0_63 = arith.constant 0 : index
    %32 = vector.load %arg3[%c0_62, %c0_63] : memref<1x256xf32, #tpu.memory_space<vmem>>, vector<1x256xf32>
    %33 = vector.broadcast %32 : vector<1x256xf32> to vector<64x256xf32>
    %34 = arith.addf %31, %33 : vector<64x256xf32>
    %cst_64 = arith.constant 0.000000e+00 : f32
    %35 = vector.broadcast %cst_64 : f32 to vector<64x256xf32>
    %36 = arith.maximumf %34, %35 : vector<64x256xf32>
    %37 = vector.shape_cast %36 : vector<64x256xf32> to vector<1x8x8x256xf32>
    %cst_65 = arith.constant 0.000000e+00 : f32
    %38 = vector.broadcast %cst_65 : f32 to vector<1x1x10x256xf32>
    %c0_66 = arith.constant 0 : index
    %c0_67 = arith.constant 0 : index
    %c0_68 = arith.constant 0 : index
    %c0_69 = arith.constant 0 : index
    %39 = vector.load %arg10[%c0_66, %c0_67, %c0_68, %c0_69] : memref<1x10x10x256xf32, #tpu.memory_space<vmem>>, vector<1x1x10x256xf32>
    tpu.vector_store %arg10[%c0_66, %c0_67, %c0_68, %c0_69], %38 {strides = array<i32>} : memref<1x10x10x256xf32, #tpu.memory_space<vmem>>, vector<1x1x10x256xf32>,
    %cst_70 = arith.constant 0.000000e+00 : f32
    %40 = vector.broadcast %cst_70 : f32 to vector<1x1x10x256xf32>
    %c0_71 = arith.constant 0 : index
    %c9 = arith.constant 9 : index
    %c0_72 = arith.constant 0 : index
    %c0_73 = arith.constant 0 : index
    %41 = vector.load %arg10[%c0_71, %c9, %c0_72, %c0_73] : memref<1x10x10x256xf32, #tpu.memory_space<vmem>>, vector<1x1x10x256xf32>
    tpu.vector_store %arg10[%c0_71, %c9, %c0_72, %c0_73], %40 {strides = array<i32>} : memref<1x10x10x256xf32, #tpu.memory_space<vmem>>, vector<1x1x10x256xf32>,
    %cst_74 = arith.constant 0.000000e+00 : f32
    %42 = vector.broadcast %cst_74 : f32 to vector<1x8x1x256xf32>
    %c0_75 = arith.constant 0 : index
    %c1_76 = arith.constant 1 : index
    %c0_77 = arith.constant 0 : index
    %c0_78 = arith.constant 0 : index
    %43 = vector.load %arg10[%c0_75, %c1_76, %c0_77, %c0_78] : memref<1x10x10x256xf32, #tpu.memory_space<vmem>>, vector<1x8x1x256xf32>
    tpu.vector_store %arg10[%c0_75, %c1_76, %c0_77, %c0_78], %42 {strides = array<i32>} : memref<1x10x10x256xf32, #tpu.memory_space<vmem>>, vector<1x8x1x256xf32>,
    %cst_79 = arith.constant 0.000000e+00 : f32
    %44 = vector.broadcast %cst_79 : f32 to vector<1x8x1x256xf32>
    %c0_80 = arith.constant 0 : index
    %c1_81 = arith.constant 1 : index
    %c9_82 = arith.constant 9 : index
    %c0_83 = arith.constant 0 : index
    %45 = vector.load %arg10[%c0_80, %c1_81, %c9_82, %c0_83] : memref<1x10x10x256xf32, #tpu.memory_space<vmem>>, vector<1x8x1x256xf32>
    tpu.vector_store %arg10[%c0_80, %c1_81, %c9_82, %c0_83], %44 {strides = array<i32>} : memref<1x10x10x256xf32, #tpu.memory_space<vmem>>, vector<1x8x1x256xf32>,
    %c0_84 = arith.constant 0 : index
    %c1_85 = arith.constant 1 : index
    %c1_86 = arith.constant 1 : index
    %c0_87 = arith.constant 0 : index
    %46 = vector.load %arg10[%c0_84, %c1_85, %c1_86, %c0_87] : memref<1x10x10x256xf32, #tpu.memory_space<vmem>>, vector<1x8x8x256xf32>
    tpu.vector_store %arg10[%c0_84, %c1_85, %c1_86, %c0_87], %37 {strides = array<i32>} : memref<1x10x10x256xf32, #tpu.memory_space<vmem>>, vector<1x8x8x256xf32>,
    %c0_88 = arith.constant 0 : index
    %c0_89 = arith.constant 0 : index
    %c0_90 = arith.constant 0 : index
    %c0_91 = arith.constant 0 : index
    %47 = vector.load %arg10[%c0_88, %c0_89, %c0_90, %c0_91] : memref<1x10x10x256xf32, #tpu.memory_space<vmem>>, vector<1x8x8x256xf32>
    %48 = arith.truncf %47 : vector<1x8x8x256xf32> to vector<1x8x8x256xbf16>
    %c0_92 = arith.constant 0 : index
    %c0_93 = arith.constant 0 : index
    %c1_94 = arith.constant 1 : index
    %c0_95 = arith.constant 0 : index
    %49 = vector.load %arg10[%c0_92, %c0_93, %c1_94, %c0_95] : memref<1x10x10x256xf32, #tpu.memory_space<vmem>>, vector<1x8x8x256xf32>
    %50 = arith.truncf %49 : vector<1x8x8x256xf32> to vector<1x8x8x256xbf16>
    %c0_96 = arith.constant 0 : index
    %c0_97 = arith.constant 0 : index
    %c2_98 = arith.constant 2 : index
    %c0_99 = arith.constant 0 : index
    %51 = vector.load %arg10[%c0_96, %c0_97, %c2_98, %c0_99] : memref<1x10x10x256xf32, #tpu.memory_space<vmem>>, vector<1x8x8x256xf32>
    %52 = arith.truncf %51 : vector<1x8x8x256xf32> to vector<1x8x8x256xbf16>
    %c0_100 = arith.constant 0 : index
    %c1_101 = arith.constant 1 : index
    %c0_102 = arith.constant 0 : index
    %c0_103 = arith.constant 0 : index
    %53 = vector.load %arg10[%c0_100, %c1_101, %c0_102, %c0_103] : memref<1x10x10x256xf32, #tpu.memory_space<vmem>>, vector<1x8x8x256xf32>
    %54 = arith.truncf %53 : vector<1x8x8x256xf32> to vector<1x8x8x256xbf16>
    %c0_104 = arith.constant 0 : index
    %c1_105 = arith.constant 1 : index
    %c1_106 = arith.constant 1 : index
    %c0_107 = arith.constant 0 : index
    %55 = vector.load %arg10[%c0_104, %c1_105, %c1_106, %c0_107] : memref<1x10x10x256xf32, #tpu.memory_space<vmem>>, vector<1x8x8x256xf32>
    %56 = arith.truncf %55 : vector<1x8x8x256xf32> to vector<1x8x8x256xbf16>
    %c0_108 = arith.constant 0 : index
    %c1_109 = arith.constant 1 : index
    %c2_110 = arith.constant 2 : index
    %c0_111 = arith.constant 0 : index
    %57 = vector.load %arg10[%c0_108, %c1_109, %c2_110, %c0_111] : memref<1x10x10x256xf32, #tpu.memory_space<vmem>>, vector<1x8x8x256xf32>
    %58 = arith.truncf %57 : vector<1x8x8x256xf32> to vector<1x8x8x256xbf16>
    %c0_112 = arith.constant 0 : index
    %c2_113 = arith.constant 2 : index
    %c0_114 = arith.constant 0 : index
    %c0_115 = arith.constant 0 : index
    %59 = vector.load %arg10[%c0_112, %c2_113, %c0_114, %c0_115] : memref<1x10x10x256xf32, #tpu.memory_space<vmem>>, vector<1x8x8x256xf32>
    %60 = arith.truncf %59 : vector<1x8x8x256xf32> to vector<1x8x8x256xbf16>
    %c0_116 = arith.constant 0 : index
    %c2_117 = arith.constant 2 : index
    %c1_118 = arith.constant 1 : index
    %c0_119 = arith.constant 0 : index
    %61 = vector.load %arg10[%c0_116, %c2_117, %c1_118, %c0_119] : memref<1x10x10x256xf32, #tpu.memory_space<vmem>>, vector<1x8x8x256xf32>
    %62 = arith.truncf %61 : vector<1x8x8x256xf32> to vector<1x8x8x256xbf16>
    %c0_120 = arith.constant 0 : index
    %c2_121 = arith.constant 2 : index
    %c2_122 = arith.constant 2 : index
    %c0_123 = arith.constant 0 : index
    %63 = vector.load %arg10[%c0_120, %c2_121, %c2_122, %c0_123] : memref<1x10x10x256xf32, #tpu.memory_space<vmem>>, vector<1x8x8x256xf32>
    %64 = arith.truncf %63 : vector<1x8x8x256xf32> to vector<1x8x8x256xbf16>
    %65 = tpu.concatenate %48, %50, %52, %54, %56, %58, %60, %62, %64 in 3 : vector<1x8x8x256xbf16>, vector<1x8x8x256xbf16>, vector<1x8x8x256xbf16>, vector<1x8x8x256xbf16>, vector<1x8x8x256xbf16>, vector<1x8x8x256xbf16>, vector<1x8x8x256xbf16>, vector<1x8x8x256xbf16>, vector<1x8x8x256xbf16> -> vector<1x8x8x2304xbf16>
    %66 = vector.shape_cast %65 : vector<1x8x8x2304xbf16> to vector<64x2304xbf16>
    %c0_124 = arith.constant 0 : index
    %c0_125 = arith.constant 0 : index
    %67 = vector.load %arg4[%c0_124, %c0_125] : memref<2304x256xbf16, #tpu.memory_space<vmem>>, vector<2304x256xbf16>
    %cst_126 = arith.constant dense<0.000000e+00> : vector<64x256xf32>
    %68 = tpu.matmul %66, %67, %cst_126 {dimension_numbers = #tpu.dot_dimension_numbers<[1], [0], [0], [1], [0, 0, 1, 1], [], []>} : vector<64x2304xbf16>, vector<2304x256xbf16>, vector<64x256xf32> -> vector<64x256xf32>
    %c0_127 = arith.constant 0 : index
    %c0_128 = arith.constant 0 : index
    %69 = vector.load %arg5[%c0_127, %c0_128] : memref<1x256xf32, #tpu.memory_space<vmem>>, vector<1x256xf32>
    %70 = vector.broadcast %69 : vector<1x256xf32> to vector<64x256xf32>
    %71 = arith.addf %68, %70 : vector<64x256xf32>
    %c0_129 = arith.constant 0 : index
    %c0_130 = arith.constant 0 : index
    %c0_131 = arith.constant 0 : index
    %c0_132 = arith.constant 0 : index
    %72 = tpu.strided_load %arg1[%c0_129, %c0_130, %c0_131, %c0_132] {strides = array<i32: 1, 2, 2, 1>} : memref<1x16x16x128xf32, #tpu.memory_space<vmem>>, vector<1x8x8x128xf32>
    %73 = arith.truncf %72 : vector<1x8x8x128xf32> to vector<1x8x8x128xbf16>
    %74 = vector.shape_cast %73 : vector<1x8x8x128xbf16> to vector<64x128xbf16>
    %c0_133 = arith.constant 0 : index
    %c0_134 = arith.constant 0 : index
    %75 = vector.load %arg6[%c0_133, %c0_134] : memref<128x256xbf16, #tpu.memory_space<vmem>>, vector<128x256xbf16>
    %cst_135 = arith.constant dense<0.000000e+00> : vector<64x256xf32>
    %76 = tpu.matmul %74, %75, %cst_135 {dimension_numbers = #tpu.dot_dimension_numbers<[1], [0], [0], [1], [0, 0, 1, 1], [], []>} : vector<64x128xbf16>, vector<128x256xbf16>, vector<64x256xf32> -> vector<64x256xf32>
    %c0_136 = arith.constant 0 : index
    %c0_137 = arith.constant 0 : index
    %77 = vector.load %arg7[%c0_136, %c0_137] : memref<1x256xf32, #tpu.memory_space<vmem>>, vector<1x256xf32>
    %78 = vector.broadcast %77 : vector<1x256xf32> to vector<64x256xf32>
    %79 = arith.addf %76, %78 : vector<64x256xf32>
    %80 = arith.addf %71, %79 : vector<64x256xf32>
    %cst_138 = arith.constant 0.000000e+00 : f32
    %81 = vector.broadcast %cst_138 : f32 to vector<64x256xf32>
    %82 = arith.maximumf %80, %81 : vector<64x256xf32>
    %83 = vector.shape_cast %82 : vector<64x256xf32> to vector<1x8x8x256xf32>
    %c0_139 = arith.constant 0 : index
    %c0_140 = arith.constant 0 : index
    %c0_141 = arith.constant 0 : index
    %c0_142 = arith.constant 0 : index
    %84 = vector.load %arg8[%c0_139, %c0_140, %c0_141, %c0_142] : memref<1x8x8x256xf32, #tpu.memory_space<vmem>>, vector<1x8x8x256xf32>
    tpu.vector_store %arg8[%c0_139, %c0_140, %c0_141, %c0_142], %83 {strides = array<i32>} : memref<1x8x8x256xf32, #tpu.memory_space<vmem>>, vector<1x8x8x256xf32>,
    return
  }
  func.func @transform_0(%arg0: i32) -> (i32, i32, i32, i32) {
    %c0_i32 = arith.constant 0 : i32
    %c0_i32_0 = arith.constant 0 : i32
    %c0_i32_1 = arith.constant 0 : i32
    %c0_i32_2 = arith.constant 0 : i32
    return %arg0, %c0_i32, %c0_i32_0, %c0_i32_1 : i32, i32, i32, i32
  }
  func.func @transform_1(%arg0: i32) -> (i32, i32) {
    %c0_i32 = arith.constant 0 : i32
    %c0_i32_0 = arith.constant 0 : i32
    %c0_i32_1 = arith.constant 0 : i32
    return %c0_i32, %c0_i32_0 : i32, i32
  }
  func.func @transform_2(%arg0: i32) -> (i32, i32) {
    %c0_i32 = arith.constant 0 : i32
    %c0_i32_0 = arith.constant 0 : i32
    %c0_i32_1 = arith.constant 0 : i32
    return %c0_i32, %c0_i32_0 : i32, i32
  }
  func.func @transform_3(%arg0: i32) -> (i32, i32) {
    %c0_i32 = arith.constant 0 : i32
    %c0_i32_0 = arith.constant 0 : i32
    %c0_i32_1 = arith.constant 0 : i32
    return %c0_i32, %c0_i32_0 : i32, i32
  }
  func.func @transform_4(%arg0: i32) -> (i32, i32) {
    %c0_i32 = arith.constant 0 : i32
    %c0_i32_0 = arith.constant 0 : i32
    %c0_i32_1 = arith.constant 0 : i32
    return %c0_i32, %c0_i32_0 : i32, i32
  }
  func.func @transform_5(%arg0: i32) -> (i32, i32) {
    %c0_i32 = arith.constant 0 : i32
    %c0_i32_0 = arith.constant 0 : i32
    %c0_i32_1 = arith.constant 0 : i32
    return %c0_i32, %c0_i32_0 : i32, i32
  }
  func.func @transform_6(%arg0: i32) -> (i32, i32) {
    %c0_i32 = arith.constant 0 : i32
    %c0_i32_0 = arith.constant 0 : i32
    %c0_i32_1 = arith.constant 0 : i32
    return %c0_i32, %c0_i32_0 : i32, i32
  }
  func.func @transform_7(%arg0: i32) -> (i32, i32, i32, i32) {
    %c0_i32 = arith.constant 0 : i32
    %c0_i32_0 = arith.constant 0 : i32
    %c0_i32_1 = arith.constant 0 : i32
    %c0_i32_2 = arith.constant 0 : i32
    return %arg0, %c0_i32, %c0_i32_0, %c0_i32_1 : i32, i32, i32, i32
  }
}

</mosaic_0001>

<llo_original>
// kernel: tpu_custom_call.1
$region0: #{tpu_custom_call.1}
  #allocation0 [shape = 'u32[]', space=smem, size = 0x4, offset = 0x4, fixed_abs, tag = 'smem constant byte address 0x4 - core index']
  #allocation1 [shape = 'u32[144,128]{1,0:T(1,128)}', space=vmem, size = 0x12000, scoped, tag = 'internal scratch']
  #allocation2 [shape = 'f32[1,18,18,128]{3,2,1,0:T(8,128)}', space=vmem, size = 0x36000, scoped, tag = 'scratch operand']
  #allocation3 [shape = 'f32[1,10,10,256]{3,2,1,0:T(8,128)}', space=vmem, size = 0x28000, scoped, tag = 'scratch operand']
  %s0 = inlined_call_operand.hbm [shape: f32[2,16,16,128], index: 0, kind: input, shape index: {}]
  %s1 = inlined_call_operand.hbm [shape: bf16[1152,256], index: 1, kind: input, shape index: {}]
  %s2 = inlined_call_operand.hbm [shape: f32[1,256], index: 2, kind: input, shape index: {}]
  %s3 = inlined_call_operand.hbm [shape: bf16[2304,256], index: 3, kind: input, shape index: {}]
  %s4 = inlined_call_operand.hbm [shape: f32[1,256], index: 4, kind: input, shape index: {}]
  %s5 = inlined_call_operand.hbm [shape: bf16[128,256], index: 5, kind: input, shape index: {}]
  %s6 = inlined_call_operand.hbm [shape: f32[1,256], index: 6, kind: input, shape index: {}]
  %s7 = inlined_call_operand.hbm [shape: f32[2,8,8,256], index: 7, kind: output, shape index: {}]
  %s8 = sld [smem:[#allocation0]]
  $region89: #{tpu_custom_call.1} parent=0
    _
  %s10 = ssub.s32 1, %s8
  %s11 = scalar_select 0, %s10, %s8
  $region1: #{tpu_custom_call.1} parent=0
    #allocation4 [shape = 'u8[262144]{0}', space=vmem, size = 0x40000, scoped, tag = 'input window, operand 0']
    #allocation5 [shape = 's32[2]{0}', space=sflag, size = 0x8, scoped, tag = 'scoped memory for tpu_custom_call.1']
    #allocation6 [shape = 's32[2]{0}', space=sflag, size = 0x8, scoped, tag = 'scoped memory for tpu_custom_call.1']
    #allocation7 [shape = 'u8[589824]{0}', space=vmem, size = 0x90000, scoped, tag = 'input window, operand 1, single buffered']
    #allocation8 [shape = 's32[1]{0}', space=sflag, size = 0x4, scoped, tag = 'scoped memory for tpu_custom_call.1']
    #allocation9 [shape = 'u8[1024]{0}', space=vmem, size = 0x400, scoped, tag = 'input window, operand 2, single buffered']
    #allocation10 [shape = 'u8[1179648]{0}', space=vmem, size = 0x120000, scoped, tag = 'input window, operand 3, single buffered']
    #allocation11 [shape = 's32[1]{0}', space=sflag, size = 0x4, scoped, tag = 'scoped memory for tpu_custom_call.1']
    #allocation12 [shape = 'u8[1024]{0}', space=vmem, size = 0x400, scoped, tag = 'input window, operand 4, single buffered']
    #allocation13 [shape = 'u8[65536]{0}', space=vmem, size = 0x10000, scoped, tag = 'input window, operand 5, single buffered']
    #allocation14 [shape = 's32[1]{0}', space=sflag, size = 0x4, scoped, tag = 'scoped memory for tpu_custom_call.1']
    #allocation15 [shape = 'u8[1024]{0}', space=vmem, size = 0x400, scoped, tag = 'input window, operand 6, single buffered']
    #allocation16 [shape = 'u8[131072]{0}', space=vmem, size = 0x20000, scoped, tag = 'output window, operand 0']
    %12 = vsyncpa [#allocation5], 0
    %s13 = scalar_lea.sflag [#allocation5], 1
    %14 = vsyncpa %s13, 0
    %15 = vsyncpa [#allocation8], 0
    %16 = vsyncpa [#allocation11], 0
    %17 = vsyncpa [#allocation14], 0
    %18 = vsyncpa [#allocation6], 0
    %s19 = scalar_lea.sflag [#allocation6], 1
    %20 = vsyncpa %s19, 0
    loop: start=0, step=1, limit=4
    $region2: #{tpu_custom_call.1} parent=1 // loop_pre_header
      _
    $region3: #{tpu_custom_call.1} parent=1 // loop_header
      %s22 = sphi 0, %s26
      %p23 = scmp.ge.s32.totalorder %s22, 4
      %s32 = sphi 0, %s34
      %s35 = sphi 0, %s32
      %s36 = sphi 0, %s35
      %s52 = sphi 0, %s36
      %s56 = sphi 0, %s56
      %s58 = sphi 0, %s56
      %s59 = sphi 0, %s58
      %s73 = sphi 0, %s59
      %s77 = sphi 0, %s77
      %s79 = sphi 0, %s77
      %s80 = sphi 0, %s79
      %s94 = sphi 0, %s80
      %s98 = sphi 0, %s98
      %s100 = sphi 0, %s98
      %s101 = sphi 0, %s100
      %s115 = sphi 0, %s101
      %s119 = sphi 0, %s119
      %s121 = sphi 0, %s119
      %s122 = sphi 0, %s121
      %s136 = sphi 0, %s122
      %s140 = sphi 0, %s140
      %s142 = sphi 0, %s140
      %s143 = sphi 0, %s142
      %s157 = sphi 0, %s143
      %s161 = sphi 0, %s161
      %s163 = sphi 0, %s161
      %s164 = sphi 0, %s163
      %s178 = sphi 0, %s164
      %s184 = sphi 0, %s186
      %s187 = sphi 0, %s184
      %s188 = sphi 0, %s187
      %s204 = sphi 0, %s188
    $region4: #{tpu_custom_call.1} parent=1 // loop_header_branch
      %25 = sbr.rel (%p23) target = $region8
    $region5: #{tpu_custom_call.1} parent=1 // loop_body
      %s27 = ssub.s32 %s22, 1
      %s28 = ssub.s32 %s22, 2
      %s29 = sadd.s32 %s22, 1
      %s30 = ssub.s32 %s22, %s29
      %p31 = scmp.eq.s32.totalorder %s30, 0
      %s33 = sadd.s32 %s32, 1
      %s34 = scalar_select %p31, %s32, %s33
      %p37 = pneg %p31
      %p38 = scmp.eq.s32.totalorder %s22, 1
      %p39 = por %p37, %p38
      %p40 = scmp.ne.s32.totalorder %s32, %s35
      %p41 = scmp.eq.s32.totalorder %s22, 0
      %p42 = por %p40, %p41
      %p43 = scmp.ne.s32.totalorder %s32, %s35
      %p44 = scmp.eq.s32.totalorder %s27, 1
      %p45 = por %p43, %p44
      %p46 = scmp.ne.s32.totalorder %s35, %s36
      %p47 = scmp.eq.s32.totalorder %s27, 0
      %p48 = por %p46, %p47
      %p49 = scmp.ne.s32.totalorder %s35, %s36
      %p50 = scmp.eq.s32.totalorder %s28, 1
      %p51 = por %p49, %p50
      %p53 = scmp.ne.s32.totalorder %s36, %s52
      %p54 = scmp.eq.s32.totalorder %s28, 0
      %p55 = por %p53, %p54
      %s57 = sadd.s32 %s56, 1
      %p60 = scmp.eq.s32.totalorder %s22, 1
      %p61 = scmp.ne.s32.totalorder %s56, %s58
      %p62 = scmp.eq.s32.totalorder %s22, 0
      %p63 = por %p61, %p62
      %p64 = scmp.ne.s32.totalorder %s56, %s58
      %p65 = scmp.eq.s32.totalorder %s27, 1
      %p66 = por %p64, %p65
      %p67 = scmp.ne.s32.totalorder %s58, %s59
      %p68 = scmp.eq.s32.totalorder %s27, 0
      %p69 = por %p67, %p68
      %p70 = scmp.ne.s32.totalorder %s58, %s59
      %p71 = scmp.eq.s32.totalorder %s28, 1
      %p72 = por %p70, %p71
      %p74 = scmp.ne.s32.totalorder %s59, %s73
      %p75 = scmp.eq.s32.totalorder %s28, 0
      %p76 = por %p74, %p75
      %s78 = sadd.s32 %s77, 1
      %p81 = scmp.eq.s32.totalorder %s22, 1
      %p82 = scmp.ne.s32.totalorder %s77, %s79
      %p83 = scmp.eq.s32.totalorder %s22, 0
      %p84 = por %p82, %p83
      %p85 = scmp.ne.s32.totalorder %s77, %s79
      %p86 = scmp.eq.s32.totalorder %s27, 1
      %p87 = por %p85, %p86
      %p88 = scmp.ne.s32.totalorder %s79, %s80
      %p89 = scmp.eq.s32.totalorder %s27, 0
      %p90 = por %p88, %p89
      %p91 = scmp.ne.s32.totalorder %s79, %s80
      %p92 = scmp.eq.s32.totalorder %s28, 1
      %p93 = por %p91, %p92
      %p95 = scmp.ne.s32.totalorder %s80, %s94
      %p96 = scmp.eq.s32.totalorder %s28, 0
      %p97 = por %p95, %p96
      %s99 = sadd.s32 %s98, 1
      %p102 = scmp.eq.s32.totalorder %s22, 1
      %p103 = scmp.ne.s32.totalorder %s98, %s100
      %p104 = scmp.eq.s32.totalorder %s22, 0
      %p105 = por %p103, %p104
      %p106 = scmp.ne.s32.totalorder %s98, %s100
      %p107 = scmp.eq.s32.totalorder %s27, 1
      %p108 = por %p106, %p107
      %p109 = scmp.ne.s32.totalorder %s100, %s101
      %p110 = scmp.eq.s32.totalorder %s27, 0
      %p111 = por %p109, %p110
      %p112 = scmp.ne.s32.totalorder %s100, %s101
      %p113 = scmp.eq.s32.totalorder %s28, 1
      %p114 = por %p112, %p113
      %p116 = scmp.ne.s32.totalorder %s101, %s115
      %p117 = scmp.eq.s32.totalorder %s28, 0
      %p118 = por %p116, %p117
      %s120 = sadd.s32 %s119, 1
      %p123 = scmp.eq.s32.totalorder %s22, 1
      %p124 = scmp.ne.s32.totalorder %s119, %s121
      %p125 = scmp.eq.s32.totalorder %s22, 0
      %p126 = por %p124, %p125
      %p127 = scmp.ne.s32.totalorder %s119, %s121
      %p128 = scmp.eq.s32.totalorder %s27, 1
      %p129 = por %p127, %p128
      %p130 = scmp.ne.s32.totalorder %s121, %s122
      %p131 = scmp.eq.s32.totalorder %s27, 0
      %p132 = por %p130, %p131
      %p133 = scmp.ne.s32.totalorder %s121, %s122
      %p134 = scmp.eq.s32.totalorder %s28, 1
      %p135 = por %p133, %p134
      %p137 = scmp.ne.s32.totalorder %s122, %s136
      %p138 = scmp.eq.s32.totalorder %s28, 0
      %p139 = por %p137, %p138
      %s141 = sadd.s32 %s140, 1
      %p144 = scmp.eq.s32.totalorder %s22, 1
      %p145 = scmp.ne.s32.totalorder %s140, %s142
      %p146 = scmp.eq.s32.totalorder %s22, 0
      %p147 = por %p145, %p146
      %p148 = scmp.ne.s32.totalorder %s140, %s142
      %p149 = scmp.eq.s32.totalorder %s27, 1
      %p150 = por %p148, %p149
      %p151 = scmp.ne.s32.totalorder %s142, %s143
      %p152 = scmp.eq.s32.totalorder %s27, 0
      %p153 = por %p151, %p152
      %p154 = scmp.ne.s32.totalorder %s142, %s143
      %p155 = scmp.eq.s32.totalorder %s28, 1
      %p156 = por %p154, %p155
      %p158 = scmp.ne.s32.totalorder %s143, %s157
      %p159 = scmp.eq.s32.totalorder %s28, 0
      %p160 = por %p158, %p159
      %s162 = sadd.s32 %s161, 1
      %p165 = scmp.eq.s32.totalorder %s22, 1
      %p166 = scmp.ne.s32.totalorder %s161, %s163
      %p167 = scmp.eq.s32.totalorder %s22, 0
      %p168 = por %p166, %p167
      %p169 = scmp.ne.s32.totalorder %s161, %s163
      %p170 = scmp.eq.s32.totalorder %s27, 1
      %p171 = por %p169, %p170
      %p172 = scmp.ne.s32.totalorder %s163, %s164
      %p173 = scmp.eq.s32.totalorder %s27, 0
      %p174 = por %p172, %p173
      %p175 = scmp.ne.s32.totalorder %s163, %s164
      %p176 = scmp.eq.s32.totalorder %s28, 1
      %p177 = por %p175, %p176
      %p179 = scmp.ne.s32.totalorder %s164, %s178
      %p180 = scmp.eq.s32.totalorder %s28, 0
      %p181 = por %p179, %p180
      %s182 = ssub.s32 %s22, %s29
      %p183 = scmp.eq.s32.totalorder %s182, 0
      %s185 = sadd.s32 %s184, 1
      %s186 = scalar_select %p183, %s184, %s185
      %p189 = pneg %p183
      %p190 = scmp.eq.s32.totalorder %s22, 1
      %p191 = por %p189, %p190
      %p192 = scmp.ne.s32.totalorder %s184, %s187
      %p193 = scmp.eq.s32.totalorder %s22, 0
      %p194 = por %p192, %p193
      %p195 = scmp.ne.s32.totalorder %s184, %s187
      %p196 = scmp.eq.s32.totalorder %s27, 1
      %p197 = por %p195, %p196
      %p198 = scmp.ne.s32.totalorder %s187, %s188
      %p199 = scmp.eq.s32.totalorder %s27, 0
      %p200 = por %p198, %p199
      %p201 = scmp.ne.s32.totalorder %s187, %s188
      %p202 = scmp.eq.s32.totalorder %s28, 1
      %p203 = por %p201, %p202
      %p205 = scmp.ne.s32.totalorder %s188, %s204
      %p206 = scmp.eq.s32.totalorder %s28, 0
      %p207 = por %p205, %p206
      %p208 = scmp.le.s32.totalorder 1, %s22
      %p209 = scmp.lt.s32.totalorder %s22, 3
      %p210 = pnand %p208, %p209
      %p211 = pneg %p210
      // Predicated region
      $region9: #{tpu_custom_call.1} parent=5 // pred_check
        _
      $region10: #{tpu_custom_call.1} parent=5 // pred_check_branch
        %213 = sbr.rel (%p210) target = $region12
      $region11: #{tpu_custom_call.1} parent=5 // pred_region
        %s214 = ssub.s32 %s22, 1
        // Predicated region
        $region13: #{tpu_custom_call.1} parent=11 // pred_check
          %p215 = pneg %p69
        $region14: #{tpu_custom_call.1} parent=11 // pred_check_branch
          %217 = sbr.rel (%p215) target = $region16
        $region15: #{tpu_custom_call.1} parent=11 // pred_region
          %s219 = ssub.s32 18432, 18432
          %220 = vsyncadd [#allocation8], %s219
          %s221 = sshll.u32 [#allocation7], 4
          %s222 = int_to_ptr.vmem [resolvable:$true] %s221
          %227 = dma.hbm_to_vmem [thread:$0]  %s1, 18432, %s222, [#allocation8], 128, 128, 8
        $region16: #{tpu_custom_call.1} parent=11 // pred_fallthru
          _
        // Predicated region
        $region17: #{tpu_custom_call.1} parent=11 // pred_check
          %p228 = pneg %p90
        $region18: #{tpu_custom_call.1} parent=11 // pred_check_branch
          %230 = sbr.rel (%p228) target = $region20
        $region19: #{tpu_custom_call.1} parent=11 // pred_region
          %s232 = ssub.s32 32, 32
          %233 = vsyncadd [#allocation8], %s232
          %s235 = sshll.u32 [#allocation9], 4
          %s236 = int_to_ptr.vmem [resolvable:$true] %s235
          %238 = dma.hbm_to_vmem [thread:$0]  %s2, 32, %s236, [#allocation8]
        $region20: #{tpu_custom_call.1} parent=11 // pred_fallthru
          _
        // Predicated region
        $region21: #{tpu_custom_call.1} parent=11 // pred_check
          %p239 = pneg %p111
        $region22: #{tpu_custom_call.1} parent=11 // pred_check_branch
          %241 = sbr.rel (%p239) target = $region24
        $region23: #{tpu_custom_call.1} parent=11 // pred_region
          %s243 = ssub.s32 36864, 36864
          %244 = vsyncadd [#allocation11], %s243
          %s245 = sshll.u32 [#allocation10], 4
          %s246 = int_to_ptr.vmem [resolvable:$true] %s245
          %251 = dma.hbm_to_vmem [thread:$0]  %s3, 36864, %s246, [#allocation11], 128, 128, 8
        $region24: #{tpu_custom_call.1} parent=11 // pred_fallthru
          _
        // Predicated region
        $region25: #{tpu_custom_call.1} parent=11 // pred_check
          %p252 = pneg %p132
        $region26: #{tpu_custom_call.1} parent=11 // pred_check_branch
          %254 = sbr.rel (%p252) target = $region28
        $region27: #{tpu_custom_call.1} parent=11 // pred_region
          %s256 = ssub.s32 32, 32
          %257 = vsyncadd [#allocation11], %s256
          %s259 = sshll.u32 [#allocation12], 4
          %s260 = int_to_ptr.vmem [resolvable:$true] %s259
          %262 = dma.hbm_to_vmem [thread:$0]  %s4, 32, %s260, [#allocation11]
        $region28: #{tpu_custom_call.1} parent=11 // pred_fallthru
          _
        // Predicated region
        $region29: #{tpu_custom_call.1} parent=11 // pred_check
          %p263 = pneg %p153
        $region30: #{tpu_custom_call.1} parent=11 // pred_check_branch
          %265 = sbr.rel (%p263) target = $region32
        $region31: #{tpu_custom_call.1} parent=11 // pred_region
          %s267 = ssub.s32 2048, 2048
          %268 = vsyncadd [#allocation14], %s267
          %s269 = sshll.u32 [#allocation13], 4
          %s270 = int_to_ptr.vmem [resolvable:$true] %s269
          %275 = dma.hbm_to_vmem [thread:$0]  %s5, 2048, %s270, [#allocation14], 128, 128, 8
        $region32: #{tpu_custom_call.1} parent=11 // pred_fallthru
          _
        // Predicated region
        $region33: #{tpu_custom_call.1} parent=11 // pred_check
          %p276 = pneg %p174
        $region34: #{tpu_custom_call.1} parent=11 // pred_check_branch
          %278 = sbr.rel (%p276) target = $region36
        $region35: #{tpu_custom_call.1} parent=11 // pred_region
          %s280 = ssub.s32 32, 32
          %281 = vsyncadd [#allocation14], %s280
          %s283 = sshll.u32 [#allocation15], 4
          %s284 = int_to_ptr.vmem [resolvable:$true] %s283
          %286 = dma.hbm_to_vmem [thread:$0]  %s6, 32, %s284, [#allocation14]
        $region36: #{tpu_custom_call.1} parent=11 // pred_fallthru
          _
      $region12: #{tpu_custom_call.1} parent=5 // pred_fallthru
        _
      %p287 = scmp.lt.s32.totalorder %s22, 2
      // Predicated region
      $region37: #{tpu_custom_call.1} parent=5 // pred_check
        %p288 = pneg %p287
      $region38: #{tpu_custom_call.1} parent=5 // pred_check_branch
        %290 = sbr.rel (%p288) target = $region40
      $region39: #{tpu_custom_call.1} parent=5 // pred_region
        // Predicated region
        $region41: #{tpu_custom_call.1} parent=39 // pred_check
          %p291 = pneg %p42
        $region42: #{tpu_custom_call.1} parent=39 // pred_check_branch
          %293 = sbr.rel (%p291) target = $region44
        $region43: #{tpu_custom_call.1} parent=39 // pred_region
          %s294 = sand.u32 %s32, 1
          %s295 = scalar_lea.sflag [#allocation5], %s294
          %s296 = sand.u32 %s32, 1
          %s297 = smul.addr %s296, 256
          %s298 = scalar_lea.vmem [#allocation4], %s297
          %s300 = ssub.s32 4096, 4096
          %301 = vsyncadd %s295, %s300
          %s302 = smul.addr %s22, 32
          %s303 = smul.addr %s302, 128
          %s304 = scalar_lea.hbm %s0, %s303
          %s305 = sshll.u32 %s298, 4
          %s306 = int_to_ptr.vmem [resolvable:$true] %s305
          %311 = dma.hbm_to_vmem [thread:$0]  %s304, 4096, %s306, %s295, 128, 128, 8
        $region44: #{tpu_custom_call.1} parent=39 // pred_fallthru
          _
      $region40: #{tpu_custom_call.1} parent=5 // pred_fallthru
        _
      %p312 = scmp.le.s32.totalorder 1, %s22
      %p313 = scmp.lt.s32.totalorder %s22, 3
      %p314 = pnand %p312, %p313
      %p315 = pneg %p314
      // Predicated region
      $region45: #{tpu_custom_call.1} parent=5 // pred_check
        _
      $region46: #{tpu_custom_call.1} parent=5 // pred_check_branch
        %317 = sbr.rel (%p314) target = $region48
      $region47: #{tpu_custom_call.1} parent=5 // pred_region
        %s318 = ssub.s32 %s22, 1
        %s319 = sand.u32 %s35, 1
        %s320 = scalar_lea.sflag [#allocation5], %s319
        %s321 = sand.u32 %s35, 1
        %s322 = smul.addr %s321, 256
        %s323 = scalar_lea.vmem [#allocation4], %s322
        // Predicated region
        $region49: #{tpu_custom_call.1} parent=47 // pred_check
          %p324 = pneg %p48
        $region50: #{tpu_custom_call.1} parent=47 // pred_check_branch
          %326 = sbr.rel (%p324) target = $region52
        $region51: #{tpu_custom_call.1} parent=47 // pred_region
          %327 = dma.done %s320, 4096
        $region52: #{tpu_custom_call.1} parent=47 // pred_fallthru
          _
        // Predicated region
        $region53: #{tpu_custom_call.1} parent=47 // pred_check
          %p328 = pneg %p69
        $region54: #{tpu_custom_call.1} parent=47 // pred_check_branch
          %330 = sbr.rel (%p328) target = $region56
        $region55: #{tpu_custom_call.1} parent=47 // pred_region
          %331 = dma.done [#allocation8], 18432
        $region56: #{tpu_custom_call.1} parent=47 // pred_fallthru
          _
        // Predicated region
        $region57: #{tpu_custom_call.1} parent=47 // pred_check
          %p332 = pneg %p90
        $region58: #{tpu_custom_call.1} parent=47 // pred_check_branch
          %334 = sbr.rel (%p332) target = $region60
        $region59: #{tpu_custom_call.1} parent=47 // pred_region
          %335 = dma.done [#allocation8], 32
        $region60: #{tpu_custom_call.1} parent=47 // pred_fallthru
          _
        // Predicated region
        $region61: #{tpu_custom_call.1} parent=47 // pred_check
          %p336 = pneg %p111
        $region62: #{tpu_custom_call.1} parent=47 // pred_check_branch
          %338 = sbr.rel (%p336) target = $region64
        $region63: #{tpu_custom_call.1} parent=47 // pred_region
          %339 = dma.done [#allocation11], 36864
        $region64: #{tpu_custom_call.1} parent=47 // pred_fallthru
          _
        // Predicated region
        $region65: #{tpu_custom_call.1} parent=47 // pred_check
          %p340 = pneg %p132
        $region66: #{tpu_custom_call.1} parent=47 // pred_check_branch
          %342 = sbr.rel (%p340) target = $region68
        $region67: #{tpu_custom_call.1} parent=47 // pred_region
          %343 = dma.done [#allocation11], 32
        $region68: #{tpu_custom_call.1} parent=47 // pred_fallthru
          _
        // Predicated region
        $region69: #{tpu_custom_call.1} parent=47 // pred_check
          %p344 = pneg %p153
        $region70: #{tpu_custom_call.1} parent=47 // pred_check_branch
          %346 = sbr.rel (%p344) target = $region72
        $region71: #{tpu_custom_call.1} parent=47 // pred_region
          %347 = dma.done [#allocation14], 2048
        $region72: #{tpu_custom_call.1} parent=47 // pred_fallthru
          _
        // Predicated region
        $region73: #{tpu_custom_call.1} parent=47 // pred_check
          %p348 = pneg %p174
        $region74: #{tpu_custom_call.1} parent=47 // pred_check_branch
          %350 = sbr.rel (%p348) target = $region76
        $region75: #{tpu_custom_call.1} parent=47 // pred_region
          %351 = dma.done [#allocation14], 32
        $region76: #{tpu_custom_call.1} parent=47 // pred_fallthru
          _
        %s352 = sand.u32 %s35, 1
        %s353 = scalar_lea.sflag [#allocation5], %s352
        %s354 = sand.u32 %s35, 1
        %s355 = smul.addr %s354, 256
        %s356 = scalar_lea.vmem [#allocation4], %s355
        %p357 = pneg %p48
        %p358 = pneg %p45
        %p359 = pneg %p69
        %p360 = pneg %p66
        %p361 = pneg %p90
        %p362 = pneg %p87
        %p363 = pneg %p111
        %p364 = pneg %p108
        %p365 = pneg %p132
        %p366 = pneg %p129
        %p367 = pneg %p153
        %p368 = pneg %p150
        %p369 = pneg %p174
        %p370 = pneg %p171
        %p371 = pneg %p200
        %p372 = pneg %p197
        %s373 = sand.u32 %s187, 1
        %s374 = scalar_lea.sflag [#allocation6], %s373
        %s375 = sand.u32 %s187, 1
        %s376 = smul.addr %s375, 128
        %s377 = scalar_lea.vmem [#allocation16], %s376
        %v379 = vld [vmem:[%s323] sm:$0xff]
        %v380 = vld [vmem:[%s323 + $0x8] sm:$0xff]
        %v381 = vld [vmem:[%s323 + $0x10] sm:$0xff]
        %v382 = vld [vmem:[%s323 + $0x18] sm:$0xff]
        %v383 = vld [vmem:[%s323 + $0x20] sm:$0xff]
        %v384 = vld [vmem:[%s323 + $0x28] sm:$0xff]
        %v385 = vld [vmem:[%s323 + $0x30] sm:$0xff]
        %v386 = vld [vmem:[%s323 + $0x38] sm:$0xff]
        %v387 = vld [vmem:[%s323 + $0x40] sm:$0xff]
        %v388 = vld [vmem:[%s323 + $0x48] sm:$0xff]
        %v389 = vld [vmem:[%s323 + $0x50] sm:$0xff]
        %v390 = vld [vmem:[%s323 + $0x58] sm:$0xff]
        %v391 = vld [vmem:[%s323 + $0x60] sm:$0xff]
        %v392 = vld [vmem:[%s323 + $0x68] sm:$0xff]
        %v393 = vld [vmem:[%s323 + $0x70] sm:$0xff]
        %v394 = vld [vmem:[%s323 + $0x78] sm:$0xff]
        %v395 = vld [vmem:[%s323 + $0x80] sm:$0xff]
        %v396 = vld [vmem:[%s323 + $0x88] sm:$0xff]
        %v397 = vld [vmem:[%s323 + $0x90] sm:$0xff]
        %v398 = vld [vmem:[%s323 + $0x98] sm:$0xff]
        %v399 = vld [vmem:[%s323 + $0xa0] sm:$0xff]
        %v400 = vld [vmem:[%s323 + $0xa8] sm:$0xff]
        %v401 = vld [vmem:[%s323 + $0xb0] sm:$0xff]
        %v402 = vld [vmem:[%s323 + $0xb8] sm:$0xff]
        %v403 = vld [vmem:[%s323 + $0xc0] sm:$0xff]
        %v404 = vld [vmem:[%s323 + $0xc8] sm:$0xff]
        %v405 = vld [vmem:[%s323 + $0xd0] sm:$0xff]
        %v406 = vld [vmem:[%s323 + $0xd8] sm:$0xff]
        %v407 = vld [vmem:[%s323 + $0xe0] sm:$0xff]
        %v408 = vld [vmem:[%s323 + $0xe8] sm:$0xff]
        %v409 = vld [vmem:[%s323 + $0xf0] sm:$0xff]
        %v410 = vld [vmem:[%s323 + $0xf8] sm:$0xff]
        %411 = vst [vmem:[#allocation2] sm:$0xff] 0.0
        %412 = vst [vmem:[#allocation2 + $0x8] sm:$0xff] 0.0
        %413 = vst [vmem:[#allocation2 + $0x10] sm:$0x3] 0.0
        %s414 = scalar_lea.vmem [#allocation2], 408
        %415 = vst [vmem:[%s414] sm:$0xff] 0.0
        %416 = vst [vmem:[%s414 + $0x8] sm:$0xff] 0.0
        %417 = vst [vmem:[%s414 + $0x10] sm:$0x3] 0.0
        %s418 = scalar_lea.vmem [#allocation2], 24
        %419 = vst [vmem:[%s418] sm:$0x1] 0.0
        %420 = vst [vmem:[%s418 + $0x18] sm:$0x1] 0.0
        %421 = vst [vmem:[%s418 + $0x30] sm:$0x1] 0.0
        %422 = vst [vmem:[%s418 + $0x48] sm:$0x1] 0.0
        %423 = vst [vmem:[%s418 + $0x60] sm:$0x1] 0.0
        %424 = vst [vmem:[%s418 + $0x78] sm:$0x1] 0.0
        %425 = vst [vmem:[%s418 + $0x90] sm:$0x1] 0.0
        %426 = vst [vmem:[%s418 + $0xa8] sm:$0x1] 0.0
        %427 = vst [vmem:[%s418 + $0xc0] sm:$0x1] 0.0
        %428 = vst [vmem:[%s418 + $0xd8] sm:$0x1] 0.0
        %429 = vst [vmem:[%s418 + $0xf0] sm:$0x1] 0.0
        %430 = vst [vmem:[%s418 + $0x108] sm:$0x1] 0.0
        %431 = vst [vmem:[%s418 + $0x120] sm:$0x1] 0.0
        %432 = vst [vmem:[%s418 + $0x138] sm:$0x1] 0.0
        %433 = vst [vmem:[%s418 + $0x150] sm:$0x1] 0.0
        %434 = vst [vmem:[%s418 + $0x168] sm:$0x1] 0.0
        %435 = vst [vmem:[%s418 + $0x11] sm:$0x1] 0.0
        %436 = vst [vmem:[%s418 + $0x29] sm:$0x1] 0.0
        %437 = vst [vmem:[%s418 + $0x41] sm:$0x1] 0.0
        %438 = vst [vmem:[%s418 + $0x59] sm:$0x1] 0.0
        %439 = vst [vmem:[%s418 + $0x71] sm:$0x1] 0.0
        %440 = vst [vmem:[%s418 + $0x89] sm:$0x1] 0.0
        %441 = vst [vmem:[%s418 + $0xa1] sm:$0x1] 0.0
        %442 = vst [vmem:[%s418 + $0xb9] sm:$0x1] 0.0
        %443 = vst [vmem:[%s418 + $0xd1] sm:$0x1] 0.0
        %444 = vst [vmem:[%s418 + $0xe9] sm:$0x1] 0.0
        %445 = vst [vmem:[%s418 + $0x101] sm:$0x1] 0.0
        %446 = vst [vmem:[%s418 + $0x119] sm:$0x1] 0.0
        %447 = vst [vmem:[%s418 + $0x131] sm:$0x1] 0.0
        %448 = vst [vmem:[%s418 + $0x149] sm:$0x1] 0.0
        %449 = vst [vmem:[%s418 + $0x161] sm:$0x1] 0.0
        %450 = vst [vmem:[%s418 + $0x179] sm:$0x1] 0.0
        %451 = vst [vmem:[%s418 + $0x1] sm:$0xff] %v379
        %452 = vst [vmem:[%s418 + $0x9] sm:$0xff] %v380
        %453 = vst [vmem:[%s418 + $0x19] sm:$0xff] %v381
        %454 = vst [vmem:[%s418 + $0x21] sm:$0xff] %v382
        %455 = vst [vmem:[%s418 + $0x31] sm:$0xff] %v383
        %456 = vst [vmem:[%s418 + $0x39] sm:$0xff] %v384
        %457 = vst [vmem:[%s418 + $0x49] sm:$0xff] %v385
        %458 = vst [vmem:[%s418 + $0x51] sm:$0xff] %v386
        %459 = vst [vmem:[%s418 + $0x61] sm:$0xff] %v387
        %460 = vst [vmem:[%s418 + $0x69] sm:$0xff] %v388
        %461 = vst [vmem:[%s418 + $0x79] sm:$0xff] %v389
        %462 = vst [vmem:[%s418 + $0x81] sm:$0xff] %v390
        %463 = vst [vmem:[%s418 + $0x91] sm:$0xff] %v391
        %464 = vst [vmem:[%s418 + $0x99] sm:$0xff] %v392
        %465 = vst [vmem:[%s418 + $0xa9] sm:$0xff] %v393
        %466 = vst [vmem:[%s418 + $0xb1] sm:$0xff] %v394
        %467 = vst [vmem:[%s418 + $0xc1] sm:$0xff] %v395
        %468 = vst [vmem:[%s418 + $0xc9] sm:$0xff] %v396
        %469 = vst [vmem:[%s418 + $0xd9] sm:$0xff] %v397
        %470 = vst [vmem:[%s418 + $0xe1] sm:$0xff] %v398
        %471 = vst [vmem:[%s418 + $0xf1] sm:$0xff] %v399
        %472 = vst [vmem:[%s418 + $0xf9] sm:$0xff] %v400
        %473 = vst [vmem:[%s418 + $0x109] sm:$0xff] %v401
        %474 = vst [vmem:[%s418 + $0x111] sm:$0xff] %v402
        %475 = vst [vmem:[%s418 + $0x121] sm:$0xff] %v403
        %476 = vst [vmem:[%s418 + $0x129] sm:$0xff] %v404
        %477 = vst [vmem:[%s418 + $0x139] sm:$0xff] %v405
        %478 = vst [vmem:[%s418 + $0x141] sm:$0xff] %v406
        %479 = vst [vmem:[%s418 + $0x151] sm:$0xff] %v407
        %480 = vst [vmem:[%s418 + $0x159] sm:$0xff] %v408
        %481 = vst [vmem:[%s418 + $0x169] sm:$0xff] %v409
        %482 = vst [vmem:[%s418 + $0x171] sm:$0xff] %v410
        %v483 = vld [vmem:[#allocation2] ss:$2 sm:$0xff]
        %s484 = scalar_lea.vmem [#allocation2], 48
        %v485 = vld [vmem:[%s484] ss:$2 sm:$0xff]
        %s486 = scalar_lea.vmem [#allocation2], 96
        %v487 = vld [vmem:[%s486] ss:$2 sm:$0xff]
        %s488 = scalar_lea.vmem [#allocation2], 144
        %v489 = vld [vmem:[%s488] ss:$2 sm:$0xff]
        %s490 = scalar_lea.vmem [#allocation2], 192
        %v491 = vld [vmem:[%s490] ss:$2 sm:$0xff]
        %s492 = scalar_lea.vmem [#allocation2], 240
        %v493 = vld [vmem:[%s492] ss:$2 sm:$0xff]
        %s494 = scalar_lea.vmem [#allocation2], 288
        %v495 = vld [vmem:[%s494] ss:$2 sm:$0xff]
        %s496 = scalar_lea.vmem [#allocation2], 336
        %v497 = vld [vmem:[%s496] ss:$2 sm:$0xff]
        %v498 = vpack.c.bf16 %v483, %v483
        %v499 = vpack.c.bf16 %v485, %v485
        %v500 = vpack.c.bf16 %v487, %v487
        %v501 = vpack.c.bf16 %v489, %v489
        %v502 = vpack.c.bf16 %v491, %v491
        %v503 = vpack.c.bf16 %v493, %v493
        %v504 = vpack.c.bf16 %v495, %v495
        %v505 = vpack.c.bf16 %v497, %v497
        %s506 = scalar_lea.vmem [#allocation2], 1
        %v507 = vld [vmem:[%s506] ss:$2 sm:$0xff]
        %s508 = scalar_lea.vmem [#allocation2], 49
        %v509 = vld [vmem:[%s508] ss:$2 sm:$0xff]
        %s510 = scalar_lea.vmem [#allocation2], 97
        %v511 = vld [vmem:[%s510] ss:$2 sm:$0xff]
        %s512 = scalar_lea.vmem [#allocation2], 145
        %v513 = vld [vmem:[%s512] ss:$2 sm:$0xff]
        %s514 = scalar_lea.vmem [#allocation2], 193
        %v515 = vld [vmem:[%s514] ss:$2 sm:$0xff]
        %s516 = scalar_lea.vmem [#allocation2], 241
        %v517 = vld [vmem:[%s516] ss:$2 sm:$0xff]
        %s518 = scalar_lea.vmem [#allocation2], 289
        %v519 = vld [vmem:[%s518] ss:$2 sm:$0xff]
        %s520 = scalar_lea.vmem [#allocation2], 337
        %v521 = vld [vmem:[%s520] ss:$2 sm:$0xff]
        %v522 = vpack.c.bf16 %v507, %v507
        %v523 = vpack.c.bf16 %v509, %v509
        %v524 = vpack.c.bf16 %v511, %v511
        %v525 = vpack.c.bf16 %v513, %v513
        %v526 = vpack.c.bf16 %v515, %v515
        %v527 = vpack.c.bf16 %v517, %v517
        %v528 = vpack.c.bf16 %v519, %v519
        %v529 = vpack.c.bf16 %v521, %v521
        %s530 = scalar_lea.vmem [#allocation2], 2
        %v531 = vld [vmem:[%s530] ss:$2 sm:$0xff]
        %s532 = scalar_lea.vmem [#allocation2], 50
        %v533 = vld [vmem:[%s532] ss:$2 sm:$0xff]
        %s534 = scalar_lea.vmem [#allocation2], 98
        %v535 = vld [vmem:[%s534] ss:$2 sm:$0xff]
        %s536 = scalar_lea.vmem [#allocation2], 146
        %v537 = vld [vmem:[%s536] ss:$2 sm:$0xff]
        %s538 = scalar_lea.vmem [#allocation2], 194
        %v539 = vld [vmem:[%s538] ss:$2 sm:$0xff]
        %s540 = scalar_lea.vmem [#allocation2], 242
        %v541 = vld [vmem:[%s540] ss:$2 sm:$0xff]
        %s542 = scalar_lea.vmem [#allocation2], 290
        %v543 = vld [vmem:[%s542] ss:$2 sm:$0xff]
        %s544 = scalar_lea.vmem [#allocation2], 338
        %v545 = vld [vmem:[%s544] ss:$2 sm:$0xff]
        %v546 = vpack.c.bf16 %v531, %v531
        %v547 = vpack.c.bf16 %v533, %v533
        %v548 = vpack.c.bf16 %v535, %v535
        %v549 = vpack.c.bf16 %v537, %v537
        %v550 = vpack.c.bf16 %v539, %v539
        %v551 = vpack.c.bf16 %v541, %v541
        %v552 = vpack.c.bf16 %v543, %v543
        %v553 = vpack.c.bf16 %v545, %v545
        %v554 = vld [vmem:[%s418] ss:$2 sm:$0xff]
        %s555 = scalar_lea.vmem %s418, 48 [#allocation2]
        %v556 = vld [vmem:[%s555] ss:$2 sm:$0xff]
        %s557 = scalar_lea.vmem %s418, 96 [#allocation2]
        %v558 = vld [vmem:[%s557] ss:$2 sm:$0xff]
        %s559 = scalar_lea.vmem %s418, 144 [#allocation2]
        %v560 = vld [vmem:[%s559] ss:$2 sm:$0xff]
        %s561 = scalar_lea.vmem %s418, 192 [#allocation2]
        %v562 = vld [vmem:[%s561] ss:$2 sm:$0xff]
        %s563 = scalar_lea.vmem %s418, 240 [#allocation2]
        %v564 = vld [vmem:[%s563] ss:$2 sm:$0xff]
        %s565 = scalar_lea.vmem %s418, 288 [#allocation2]
        %v566 = vld [vmem:[%s565] ss:$2 sm:$0xff]
        %s567 = scalar_lea.vmem %s418, 336 [#allocation2]
        %v568 = vld [vmem:[%s567] ss:$2 sm:$0xff]
        %v569 = vpack.c.bf16 %v554, %v554
        %v570 = vpack.c.bf16 %v556, %v556
        %v571 = vpack.c.bf16 %v558, %v558
        %v572 = vpack.c.bf16 %v560, %v560
        %v573 = vpack.c.bf16 %v562, %v562
        %v574 = vpack.c.bf16 %v564, %v564
        %v575 = vpack.c.bf16 %v566, %v566
        %v576 = vpack.c.bf16 %v568, %v568
        %s577 = scalar_lea.vmem %s418, 1 [#allocation2]
        %v578 = vld [vmem:[%s577] ss:$2 sm:$0xff]
        %s579 = scalar_lea.vmem %s418, 49 [#allocation2]
        %v580 = vld [vmem:[%s579] ss:$2 sm:$0xff]
        %s581 = scalar_lea.vmem %s418, 97 [#allocation2]
        %v582 = vld [vmem:[%s581] ss:$2 sm:$0xff]
        %s583 = scalar_lea.vmem %s418, 145 [#allocation2]
        %v584 = vld [vmem:[%s583] ss:$2 sm:$0xff]
        %s585 = scalar_lea.vmem %s418, 193 [#allocation2]
        %v586 = vld [vmem:[%s585] ss:$2 sm:$0xff]
        %s587 = scalar_lea.vmem %s418, 241 [#allocation2]
        %v588 = vld [vmem:[%s587] ss:$2 sm:$0xff]
        %s589 = scalar_lea.vmem %s418, 289 [#allocation2]
        %v590 = vld [vmem:[%s589] ss:$2 sm:$0xff]
        %s591 = scalar_lea.vmem %s418, 337 [#allocation2]
        %v592 = vld [vmem:[%s591] ss:$2 sm:$0xff]
        %v593 = vpack.c.bf16 %v578, %v578
        %v594 = vpack.c.bf16 %v580, %v580
        %v595 = vpack.c.bf16 %v582, %v582
        %v596 = vpack.c.bf16 %v584, %v584
        %v597 = vpack.c.bf16 %v586, %v586
        %v598 = vpack.c.bf16 %v588, %v588
        %v599 = vpack.c.bf16 %v590, %v590
        %v600 = vpack.c.bf16 %v592, %v592
        %s601 = scalar_lea.vmem %s418, 2 [#allocation2]
        %v602 = vld [vmem:[%s601] ss:$2 sm:$0xff]
        %s603 = scalar_lea.vmem %s418, 50 [#allocation2]
        %v604 = vld [vmem:[%s603] ss:$2 sm:$0xff]
        %s605 = scalar_lea.vmem %s418, 98 [#allocation2]
        %v606 = vld [vmem:[%s605] ss:$2 sm:$0xff]
        %s607 = scalar_lea.vmem %s418, 146 [#allocation2]
        %v608 = vld [vmem:[%s607] ss:$2 sm:$0xff]
        %s609 = scalar_lea.vmem %s418, 194 [#allocation2]
        %v610 = vld [vmem:[%s609] ss:$2 sm:$0xff]
        %s611 = scalar_lea.vmem %s418, 242 [#allocation2]
        %v612 = vld [vmem:[%s611] ss:$2 sm:$0xff]
        %s613 = scalar_lea.vmem %s418, 290 [#allocation2]
        %v614 = vld [vmem:[%s613] ss:$2 sm:$0xff]
        %s615 = scalar_lea.vmem %s418, 338 [#allocation2]
        %v616 = vld [vmem:[%s615] ss:$2 sm:$0xff]
        %v617 = vpack.c.bf16 %v602, %v602
        %v618 = vpack.c.bf16 %v604, %v604
        %v619 = vpack.c.bf16 %v606, %v606
        %v620 = vpack.c.bf16 %v608, %v608
        %v621 = vpack.c.bf16 %v610, %v610
        %v622 = vpack.c.bf16 %v612, %v612
        %v623 = vpack.c.bf16 %v614, %v614
        %v624 = vpack.c.bf16 %v616, %v616
        %s625 = scalar_lea.vmem [#allocation2], 48
        %v626 = vld [vmem:[%s625] ss:$2 sm:$0xff]
        %s627 = scalar_lea.vmem %s625, 48 [#allocation2]
        %v628 = vld [vmem:[%s627] ss:$2 sm:$0xff]
        %s629 = scalar_lea.vmem %s625, 96 [#allocation2]
        %v630 = vld [vmem:[%s629] ss:$2 sm:$0xff]
        %s631 = scalar_lea.vmem %s625, 144 [#allocation2]
        %v632 = vld [vmem:[%s631] ss:$2 sm:$0xff]
        %s633 = scalar_lea.vmem %s625, 192 [#allocation2]
        %v634 = vld [vmem:[%s633] ss:$2 sm:$0xff]
        %s635 = scalar_lea.vmem %s625, 240 [#allocation2]
        %v636 = vld [vmem:[%s635] ss:$2 sm:$0xff]
        %s637 = scalar_lea.vmem %s625, 288 [#allocation2]
        %v638 = vld [vmem:[%s637] ss:$2 sm:$0xff]
        %s639 = scalar_lea.vmem %s625, 336 [#allocation2]
        %v640 = vld [vmem:[%s639] ss:$2 sm:$0xff]
        %v641 = vpack.c.bf16 %v626, %v626
        %v642 = vpack.c.bf16 %v628, %v628
        %v643 = vpack.c.bf16 %v630, %v630
        %v644 = vpack.c.bf16 %v632, %v632
        %v645 = vpack.c.bf16 %v634, %v634
        %v646 = vpack.c.bf16 %v636, %v636
        %v647 = vpack.c.bf16 %v638, %v638
        %v648 = vpack.c.bf16 %v640, %v640
        %s649 = scalar_lea.vmem %s625, 1 [#allocation2]
        %v650 = vld [vmem:[%s649] ss:$2 sm:$0xff]
        %s651 = scalar_lea.vmem %s625, 49 [#allocation2]
        %v652 = vld [vmem:[%s651] ss:$2 sm:$0xff]
        %s653 = scalar_lea.vmem %s625, 97 [#allocation2]
        %v654 = vld [vmem:[%s653] ss:$2 sm:$0xff]
        %s655 = scalar_lea.vmem %s625, 145 [#allocation2]
        %v656 = vld [vmem:[%s655] ss:$2 sm:$0xff]
        %s657 = scalar_lea.vmem %s625, 193 [#allocation2]
        %v658 = vld [vmem:[%s657] ss:$2 sm:$0xff]
        %s659 = scalar_lea.vmem %s625, 241 [#allocation2]
        %v660 = vld [vmem:[%s659] ss:$2 sm:$0xff]
        %s661 = scalar_lea.vmem %s625, 289 [#allocation2]
        %v662 = vld [vmem:[%s661] ss:$2 sm:$0xff]
        %s663 = scalar_lea.vmem %s625, 337 [#allocation2]
        %v664 = vld [vmem:[%s663] ss:$2 sm:$0xff]
        %v665 = vpack.c.bf16 %v650, %v650
        %v666 = vpack.c.bf16 %v652, %v652
        %v667 = vpack.c.bf16 %v654, %v654
        %v668 = vpack.c.bf16 %v656, %v656
        %v669 = vpack.c.bf16 %v658, %v658
        %v670 = vpack.c.bf16 %v660, %v660
        %v671 = vpack.c.bf16 %v662, %v662
        %v672 = vpack.c.bf16 %v664, %v664
        %s673 = scalar_lea.vmem %s625, 2 [#allocation2]
        %v674 = vld [vmem:[%s673] ss:$2 sm:$0xff]
        %s675 = scalar_lea.vmem %s625, 50 [#allocation2]
        %v676 = vld [vmem:[%s675] ss:$2 sm:$0xff]
        %s677 = scalar_lea.vmem %s625, 98 [#allocation2]
        %v678 = vld [vmem:[%s677] ss:$2 sm:$0xff]
        %s679 = scalar_lea.vmem %s625, 146 [#allocation2]
        %v680 = vld [vmem:[%s679] ss:$2 sm:$0xff]
        %s681 = scalar_lea.vmem %s625, 194 [#allocation2]
        %v682 = vld [vmem:[%s681] ss:$2 sm:$0xff]
        %s683 = scalar_lea.vmem %s625, 242 [#allocation2]
        %v684 = vld [vmem:[%s683] ss:$2 sm:$0xff]
        %s685 = scalar_lea.vmem %s625, 290 [#allocation2]
        %v686 = vld [vmem:[%s685] ss:$2 sm:$0xff]
        %s687 = scalar_lea.vmem %s625, 338 [#allocation2]
        %v688 = vld [vmem:[%s687] ss:$2 sm:$0xff]
        %v689 = vpack.c.bf16 %v674, %v674
        %v690 = vpack.c.bf16 %v676, %v676
        %v691 = vpack.c.bf16 %v678, %v678
        %v692 = vpack.c.bf16 %v680, %v680
        %v693 = vpack.c.bf16 %v682, %v682
        %v694 = vpack.c.bf16 %v684, %v684
        %v695 = vpack.c.bf16 %v686, %v686
        %v696 = vpack.c.bf16 %v688, %v688
        %v769 = vunpack.c.l.b16 %v498
        %v770 = vunpack.c.l.b16 %v522
        %v771 = vunpack.c.l.b16 %v546
        %v772 = vunpack.c.l.b16 %v569
        %v773 = vunpack.c.l.b16 %v593
        %v774 = vunpack.c.l.b16 %v617
        %v775 = vunpack.c.l.b16 %v641
        %v776 = vunpack.c.l.b16 %v665
        %v777 = vunpack.c.l.b16 %v689
        %v778 = vunpack.c.l.b16 %v499
        %v779 = vunpack.c.l.b16 %v523
        %v780 = vunpack.c.l.b16 %v547
        %v781 = vunpack.c.l.b16 %v570
        %v782 = vunpack.c.l.b16 %v594
        %v783 = vunpack.c.l.b16 %v618
        %v784 = vunpack.c.l.b16 %v642
        %v785 = vunpack.c.l.b16 %v666
        %v786 = vunpack.c.l.b16 %v690
        %v787 = vunpack.c.l.b16 %v500
        %v788 = vunpack.c.l.b16 %v524
        %v789 = vunpack.c.l.b16 %v548
        %v790 = vunpack.c.l.b16 %v571
        %v791 = vunpack.c.l.b16 %v595
        %v792 = vunpack.c.l.b16 %v619
        %v793 = vunpack.c.l.b16 %v643
        %v794 = vunpack.c.l.b16 %v667
        %v795 = vunpack.c.l.b16 %v691
        %v796 = vunpack.c.l.b16 %v501
        %v797 = vunpack.c.l.b16 %v525
        %v798 = vunpack.c.l.b16 %v549
        %v799 = vunpack.c.l.b16 %v572
        %v800 = vunpack.c.l.b16 %v596
        %v801 = vunpack.c.l.b16 %v620
        %v802 = vunpack.c.l.b16 %v644
        %v803 = vunpack.c.l.b16 %v668
        %v804 = vunpack.c.l.b16 %v692
        %v805 = vunpack.c.l.b16 %v502
        %v806 = vunpack.c.l.b16 %v526
        %v807 = vunpack.c.l.b16 %v550
        %v808 = vunpack.c.l.b16 %v573
        %v809 = vunpack.c.l.b16 %v597
        %v810 = vunpack.c.l.b16 %v621
        %v811 = vunpack.c.l.b16 %v645
        %v812 = vunpack.c.l.b16 %v669
        %v813 = vunpack.c.l.b16 %v693
        %v814 = vunpack.c.l.b16 %v503
        %v815 = vunpack.c.l.b16 %v527
        %v816 = vunpack.c.l.b16 %v551
        %v817 = vunpack.c.l.b16 %v574
        %v818 = vunpack.c.l.b16 %v598
        %v819 = vunpack.c.l.b16 %v622
        %v820 = vunpack.c.l.b16 %v646
        %v821 = vunpack.c.l.b16 %v670
        %v822 = vunpack.c.l.b16 %v694
        %v823 = vunpack.c.l.b16 %v504
        %v824 = vunpack.c.l.b16 %v528
        %v825 = vunpack.c.l.b16 %v552
        %v826 = vunpack.c.l.b16 %v575
        %v827 = vunpack.c.l.b16 %v599
        %v828 = vunpack.c.l.b16 %v623
        %v829 = vunpack.c.l.b16 %v647
        %v830 = vunpack.c.l.b16 %v671
        %v831 = vunpack.c.l.b16 %v695
        %v832 = vunpack.c.l.b16 %v505
        %v833 = vunpack.c.l.b16 %v529
        %v834 = vunpack.c.l.b16 %v553
        %v835 = vunpack.c.l.b16 %v576
        %v836 = vunpack.c.l.b16 %v600
        %v837 = vunpack.c.l.b16 %v624
        %v838 = vunpack.c.l.b16 %v648
        %v839 = vunpack.c.l.b16 %v672
        %v840 = vunpack.c.l.b16 %v696
        %v841 = vld [vmem:[#allocation7] sm:$0xff]
        %v842 = vld [vmem:[#allocation7 + $0x8] sm:$0xff]
        %v843 = vld [vmem:[#allocation7 + $0x10] sm:$0xff]
        %v844 = vld [vmem:[#allocation7 + $0x18] sm:$0xff]
        %v845 = vld [vmem:[#allocation7 + $0x20] sm:$0xff]
        %v846 = vld [vmem:[#allocation7 + $0x28] sm:$0xff]
        %v847 = vld [vmem:[#allocation7 + $0x30] sm:$0xff]
        %v848 = vld [vmem:[#allocation7 + $0x38] sm:$0xff]
        %v849 = vld [vmem:[#allocation7 + $0x40] sm:$0xff]
        %v850 = vld [vmem:[#allocation7 + $0x48] sm:$0xff]
        %v851 = vld [vmem:[#allocation7 + $0x50] sm:$0xff]
        %v852 = vld [vmem:[#allocation7 + $0x58] sm:$0xff]
        %v853 = vld [vmem:[#allocation7 + $0x60] sm:$0xff]
        %v854 = vld [vmem:[#allocation7 + $0x68] sm:$0xff]
        %v855 = vld [vmem:[#allocation7 + $0x70] sm:$0xff]
        %v856 = vld [vmem:[#allocation7 + $0x78] sm:$0xff]
        %v857 = vld [vmem:[#allocation7 + $0x80] sm:$0xff]
        %v858 = vld [vmem:[#allocation7 + $0x88] sm:$0xff]
        %v859 = vld [vmem:[#allocation7 + $0x90] sm:$0xff]
        %v860 = vld [vmem:[#allocation7 + $0x98] sm:$0xff]
        %v861 = vld [vmem:[#allocation7 + $0xa0] sm:$0xff]
        %v862 = vld [vmem:[#allocation7 + $0xa8] sm:$0xff]
        %v863 = vld [vmem:[#allocation7 + $0xb0] sm:$0xff]
        %v864 = vld [vmem:[#allocation7 + $0xb8] sm:$0xff]
        %v865 = vld [vmem:[#allocation7 + $0xc0] sm:$0xff]
        %v866 = vld [vmem:[#allocation7 + $0xc8] sm:$0xff]
        %v867 = vld [vmem:[#allocation7 + $0xd0] sm:$0xff]
        %v868 = vld [vmem:[#allocation7 + $0xd8] sm:$0xff]
        %v869 = vld [vmem:[#allocation7 + $0xe0] sm:$0xff]
        %v870 = vld [vmem:[#allocation7 + $0xe8] sm:$0xff]
        %v871 = vld [vmem:[#allocation7 + $0xf0] sm:$0xff]
        %v872 = vld [vmem:[#allocation7 + $0xf8] sm:$0xff]
        %v873 = vld [vmem:[#allocation7 + $0x100] sm:$0xff]
        %v874 = vld [vmem:[#allocation7 + $0x108] sm:$0xff]
        %v875 = vld [vmem:[#allocation7 + $0x110] sm:$0xff]
        %v876 = vld [vmem:[#allocation7 + $0x118] sm:$0xff]
        %v877 = vld [vmem:[#allocation7 + $0x120] sm:$0xff]
        %v878 = vld [vmem:[#allocation7 + $0x128] sm:$0xff]
        %v879 = vld [vmem:[#allocation7 + $0x130] sm:$0xff]
        %v880 = vld [vmem:[#allocation7 + $0x138] sm:$0xff]
        %v881 = vld [vmem:[#allocation7 + $0x140] sm:$0xff]
        %v882 = vld [vmem:[#allocation7 + $0x148] sm:$0xff]
        %v883 = vld [vmem:[#allocation7 + $0x150] sm:$0xff]
        %v884 = vld [vmem:[#allocation7 + $0x158] sm:$0xff]
        %v885 = vld [vmem:[#allocation7 + $0x160] sm:$0xff]
        %v886 = vld [vmem:[#allocation7 + $0x168] sm:$0xff]
        %v887 = vld [vmem:[#allocation7 + $0x170] sm:$0xff]
        %v888 = vld [vmem:[#allocation7 + $0x178] sm:$0xff]
        %v889 = vld [vmem:[#allocation7 + $0x180] sm:$0xff]
        %v890 = vld [vmem:[#allocation7 + $0x188] sm:$0xff]
        %v891 = vld [vmem:[#allocation7 + $0x190] sm:$0xff]
        %v892 = vld [vmem:[#allocation7 + $0x198] sm:$0xff]
        %v893 = vld [vmem:[#allocation7 + $0x1a0] sm:$0xff]
        %v894 = vld [vmem:[#allocation7 + $0x1a8] sm:$0xff]
        %v895 = vld [vmem:[#allocation7 + $0x1b0] sm:$0xff]
        %v896 = vld [vmem:[#allocation7 + $0x1b8] sm:$0xff]
        %v897 = vld [vmem:[#allocation7 + $0x1c0] sm:$0xff]
        %v898 = vld [vmem:[#allocation7 + $0x1c8] sm:$0xff]
        %v899 = vld [vmem:[#allocation7 + $0x1d0] sm:$0xff]
        %v900 = vld [vmem:[#allocation7 + $0x1d8] sm:$0xff]
        %v901 = vld [vmem:[#allocation7 + $0x1e0] sm:$0xff]
        %v902 = vld [vmem:[#allocation7 + $0x1e8] sm:$0xff]
        %v903 = vld [vmem:[#allocation7 + $0x1f0] sm:$0xff]
        %v904 = vld [vmem:[#allocation7 + $0x1f8] sm:$0xff]
        %v905 = vld [vmem:[#allocation7 + $0x200] sm:$0xff]
        %v906 = vld [vmem:[#allocation7 + $0x208] sm:$0xff]
        %v907 = vld [vmem:[#allocation7 + $0x210] sm:$0xff]
        %v908 = vld [vmem:[#allocation7 + $0x218] sm:$0xff]
        %v909 = vld [vmem:[#allocation7 + $0x220] sm:$0xff]
        %v910 = vld [vmem:[#allocation7 + $0x228] sm:$0xff]
        %v911 = vld [vmem:[#allocation7 + $0x230] sm:$0xff]
        %v912 = vld [vmem:[#allocation7 + $0x238] sm:$0xff]
        %v913 = vld [vmem:[#allocation7 + $0x240] sm:$0xff]
        %v914 = vld [vmem:[#allocation7 + $0x248] sm:$0xff]
        %v915 = vld [vmem:[#allocation7 + $0x250] sm:$0xff]
        %v916 = vld [vmem:[#allocation7 + $0x258] sm:$0xff]
        %v917 = vld [vmem:[#allocation7 + $0x260] sm:$0xff]
        %v918 = vld [vmem:[#allocation7 + $0x268] sm:$0xff]
        %v919 = vld [vmem:[#allocation7 + $0x270] sm:$0xff]
        %v920 = vld [vmem:[#allocation7 + $0x278] sm:$0xff]
        %v921 = vld [vmem:[#allocation7 + $0x280] sm:$0xff]
        %v922 = vld [vmem:[#allocation7 + $0x288] sm:$0xff]
        %v923 = vld [vmem:[#allocation7 + $0x290] sm:$0xff]
        %v924 = vld [vmem:[#allocation7 + $0x298] sm:$0xff]
        %v925 = vld [vmem:[#allocation7 + $0x2a0] sm:$0xff]
        %v926 = vld [vmem:[#allocation7 + $0x2a8] sm:$0xff]
        %v927 = vld [vmem:[#allocation7 + $0x2b0] sm:$0xff]
        %v928 = vld [vmem:[#allocation7 + $0x2b8] sm:$0xff]
        %v929 = vld [vmem:[#allocation7 + $0x2c0] sm:$0xff]
        %v930 = vld [vmem:[#allocation7 + $0x2c8] sm:$0xff]
        %v931 = vld [vmem:[#allocation7 + $0x2d0] sm:$0xff]
        %v932 = vld [vmem:[#allocation7 + $0x2d8] sm:$0xff]
        %v933 = vld [vmem:[#allocation7 + $0x2e0] sm:$0xff]
        %v934 = vld [vmem:[#allocation7 + $0x2e8] sm:$0xff]
        %v935 = vld [vmem:[#allocation7 + $0x2f0] sm:$0xff]
        %v936 = vld [vmem:[#allocation7 + $0x2f8] sm:$0xff]
        %v937 = vld [vmem:[#allocation7 + $0x300] sm:$0xff]
        %v938 = vld [vmem:[#allocation7 + $0x308] sm:$0xff]
        %v939 = vld [vmem:[#allocation7 + $0x310] sm:$0xff]
        %v940 = vld [vmem:[#allocation7 + $0x318] sm:$0xff]
        %v941 = vld [vmem:[#allocation7 + $0x320] sm:$0xff]
        %v942 = vld [vmem:[#allocation7 + $0x328] sm:$0xff]
        %v943 = vld [vmem:[#allocation7 + $0x330] sm:$0xff]
        %v944 = vld [vmem:[#allocation7 + $0x338] sm:$0xff]
        %v945 = vld [vmem:[#allocation7 + $0x340] sm:$0xff]
        %v946 = vld [vmem:[#allocation7 + $0x348] sm:$0xff]
        %v947 = vld [vmem:[#allocation7 + $0x350] sm:$0xff]
        %v948 = vld [vmem:[#allocation7 + $0x358] sm:$0xff]
        %v949 = vld [vmem:[#allocation7 + $0x360] sm:$0xff]
        %v950 = vld [vmem:[#allocation7 + $0x368] sm:$0xff]
        %v951 = vld [vmem:[#allocation7 + $0x370] sm:$0xff]
        %v952 = vld [vmem:[#allocation7 + $0x378] sm:$0xff]
        %v953 = vld [vmem:[#allocation7 + $0x380] sm:$0xff]
        %v954 = vld [vmem:[#allocation7 + $0x388] sm:$0xff]
        %v955 = vld [vmem:[#allocation7 + $0x390] sm:$0xff]
        %v956 = vld [vmem:[#allocation7 + $0x398] sm:$0xff]
        %v957 = vld [vmem:[#allocation7 + $0x3a0] sm:$0xff]
        %v958 = vld [vmem:[#allocation7 + $0x3a8] sm:$0xff]
        %v959 = vld [vmem:[#allocation7 + $0x3b0] sm:$0xff]
        %v960 = vld [vmem:[#allocation7 + $0x3b8] sm:$0xff]
        %v961 = vld [vmem:[#allocation7 + $0x3c0] sm:$0xff]
        %v962 = vld [vmem:[#allocation7 + $0x3c8] sm:$0xff]
        %v963 = vld [vmem:[#allocation7 + $0x3d0] sm:$0xff]
        %v964 = vld [vmem:[#allocation7 + $0x3d8] sm:$0xff]
        %v965 = vld [vmem:[#allocation7 + $0x3e0] sm:$0xff]
        %v966 = vld [vmem:[#allocation7 + $0x3e8] sm:$0xff]
        %v967 = vld [vmem:[#allocation7 + $0x3f0] sm:$0xff]
        %v968 = vld [vmem:[#allocation7 + $0x3f8] sm:$0xff]
        %v969 = vld [vmem:[#allocation7 + $0x400] sm:$0xff]
        %v970 = vld [vmem:[#allocation7 + $0x408] sm:$0xff]
        %v971 = vld [vmem:[#allocation7 + $0x410] sm:$0xff]
        %v972 = vld [vmem:[#allocation7 + $0x418] sm:$0xff]
        %v973 = vld [vmem:[#allocation7 + $0x420] sm:$0xff]
        %v974 = vld [vmem:[#allocation7 + $0x428] sm:$0xff]
        %v975 = vld [vmem:[#allocation7 + $0x430] sm:$0xff]
        %v976 = vld [vmem:[#allocation7 + $0x438] sm:$0xff]
        %v977 = vld [vmem:[#allocation7 + $0x440] sm:$0xff]
        %v978 = vld [vmem:[#allocation7 + $0x448] sm:$0xff]
        %v979 = vld [vmem:[#allocation7 + $0x450] sm:$0xff]
        %v980 = vld [vmem:[#allocation7 + $0x458] sm:$0xff]
        %v981 = vld [vmem:[#allocation7 + $0x460] sm:$0xff]
        %v982 = vld [vmem:[#allocation7 + $0x468] sm:$0xff]
        %v983 = vld [vmem:[#allocation7 + $0x470] sm:$0xff]
        %v984 = vld [vmem:[#allocation7 + $0x478] sm:$0xff]
        %v985 = vld [vmem:[#allocation9] sm:$0x3]
        %v987 = vlaneseq
        %v988 = vshrl.u32 %v987, 7
        %v989 = vsub.s32 0, %v988
        %v990 = vrot.slane %v985, %v989
        %v991 = vlaneseq
        %v992 = vshrl.u32 %v991, 7
        %v993 = vsub.s32 1, %v992
        %v994 = vrot.slane %v985, %v993
        %v997 = vpack.c.b16 %v778, %v769
        %v998 = vpack.c.b16 %v779, %v770
        %v999 = vpack.c.b16 %v780, %v771
        %v1000 = vpack.c.b16 %v781, %v772
        %v1001 = vpack.c.b16 %v782, %v773
        %v1002 = vpack.c.b16 %v783, %v774
        %v1003 = vpack.c.b16 %v784, %v775
        %v1004 = vpack.c.b16 %v785, %v776
        %v1005 = vpack.c.b16 %v786, %v777
        %v1006 = vpack.c.b16 %v796, %v787
        %v1007 = vpack.c.b16 %v797, %v788
        %v1008 = vpack.c.b16 %v798, %v789
        %v1009 = vpack.c.b16 %v799, %v790
        %v1010 = vpack.c.b16 %v800, %v791
        %v1011 = vpack.c.b16 %v801, %v792
        %v1012 = vpack.c.b16 %v802, %v793
        %v1013 = vpack.c.b16 %v803, %v794
        %v1014 = vpack.c.b16 %v804, %v795
        %v1015 = vpack.c.b16 %v814, %v805
        %v1016 = vpack.c.b16 %v815, %v806
        %v1017 = vpack.c.b16 %v816, %v807
        %v1018 = vpack.c.b16 %v817, %v808
        %v1019 = vpack.c.b16 %v818, %v809
        %v1020 = vpack.c.b16 %v819, %v810
        %v1021 = vpack.c.b16 %v820, %v811
        %v1022 = vpack.c.b16 %v821, %v812
        %v1023 = vpack.c.b16 %v822, %v813
        %v1024 = vpack.c.b16 %v832, %v823
        %v1025 = vpack.c.b16 %v833, %v824
        %v1026 = vpack.c.b16 %v834, %v825
        %v1027 = vpack.c.b16 %v835, %v826
        %v1028 = vpack.c.b16 %v836, %v827
        %v1029 = vpack.c.b16 %v837, %v828
        %v1030 = vpack.c.b16 %v838, %v829
        %v1031 = vpack.c.b16 %v839, %v830
        %v1032 = vpack.c.b16 %v840, %v831
        %v1213 = vunpack.c.l.b16 %v841
        %v1214 = vunpack.c.h.b16 %v841
        %v1215 = vunpack.c.l.b16 %v842
        %v1216 = vunpack.c.h.b16 %v842
        %v1217 = vunpack.c.l.b16 %v843
        %v1218 = vunpack.c.h.b16 %v843
        %v1219 = vunpack.c.l.b16 %v844
        %v1220 = vunpack.c.h.b16 %v844
        %v1221 = vunpack.c.l.b16 %v845
        %v1222 = vunpack.c.h.b16 %v845
        %v1223 = vunpack.c.l.b16 %v846
        %v1224 = vunpack.c.h.b16 %v846
        %v1225 = vunpack.c.l.b16 %v847
        %v1226 = vunpack.c.h.b16 %v847
        %v1227 = vunpack.c.l.b16 %v848
        %v1228 = vunpack.c.h.b16 %v848
        %v1229 = vunpack.c.l.b16 %v849
        %v1230 = vunpack.c.h.b16 %v849
        %v1231 = vunpack.c.l.b16 %v850
        %v1232 = vunpack.c.h.b16 %v850
        %v1233 = vunpack.c.l.b16 %v851
        %v1234 = vunpack.c.h.b16 %v851
        %v1235 = vunpack.c.l.b16 %v852
        %v1236 = vunpack.c.h.b16 %v852
        %v1237 = vunpack.c.l.b16 %v853
        %v1238 = vunpack.c.h.b16 %v853
        %v1239 = vunpack.c.l.b16 %v854
        %v1240 = vunpack.c.h.b16 %v854
        %v1241 = vunpack.c.l.b16 %v855
        %v1242 = vunpack.c.h.b16 %v855
        %v1243 = vunpack.c.l.b16 %v856
        %v1244 = vunpack.c.h.b16 %v856
        %v1245 = vunpack.c.l.b16 %v857
        %v1246 = vunpack.c.h.b16 %v857
        %v1247 = vunpack.c.l.b16 %v858
        %v1248 = vunpack.c.h.b16 %v858
        %v1249 = vunpack.c.l.b16 %v859
        %v1250 = vunpack.c.h.b16 %v859
        %v1251 = vunpack.c.l.b16 %v860
        %v1252 = vunpack.c.h.b16 %v860
        %v1253 = vunpack.c.l.b16 %v861
        %v1254 = vunpack.c.h.b16 %v861
        %v1255 = vunpack.c.l.b16 %v862
        %v1256 = vunpack.c.h.b16 %v862
        %v1257 = vunpack.c.l.b16 %v863
        %v1258 = vunpack.c.h.b16 %v863
        %v1259 = vunpack.c.l.b16 %v864
        %v1260 = vunpack.c.h.b16 %v864
        %v1261 = vunpack.c.l.b16 %v865
        %v1262 = vunpack.c.h.b16 %v865
        %v1263 = vunpack.c.l.b16 %v866
        %v1264 = vunpack.c.h.b16 %v866
        %v1265 = vunpack.c.l.b16 %v867
        %v1266 = vunpack.c.h.b16 %v867
        %v1267 = vunpack.c.l.b16 %v868
        %v1268 = vunpack.c.h.b16 %v868
        %v1269 = vunpack.c.l.b16 %v869
        %v1270 = vunpack.c.h.b16 %v869
        %v1271 = vunpack.c.l.b16 %v870
        %v1272 = vunpack.c.h.b16 %v870
        %v1273 = vunpack.c.l.b16 %v871
        %v1274 = vunpack.c.h.b16 %v871
        %v1275 = vunpack.c.l.b16 %v872
        %v1276 = vunpack.c.h.b16 %v872
        %v1277 = vunpack.c.l.b16 %v873
        %v1278 = vunpack.c.h.b16 %v873
        %v1279 = vunpack.c.l.b16 %v874
        %v1280 = vunpack.c.h.b16 %v874
        %v1281 = vunpack.c.l.b16 %v875
        %v1282 = vunpack.c.h.b16 %v875
        %v1283 = vunpack.c.l.b16 %v876
        %v1284 = vunpack.c.h.b16 %v876
        %v1285 = vunpack.c.l.b16 %v877
        %v1286 = vunpack.c.h.b16 %v877
        %v1287 = vunpack.c.l.b16 %v878
        %v1288 = vunpack.c.h.b16 %v878
        %v1289 = vunpack.c.l.b16 %v879
        %v1290 = vunpack.c.h.b16 %v879
        %v1291 = vunpack.c.l.b16 %v880
        %v1292 = vunpack.c.h.b16 %v880
        %v1293 = vunpack.c.l.b16 %v881
        %v1294 = vunpack.c.h.b16 %v881
        %v1295 = vunpack.c.l.b16 %v882
        %v1296 = vunpack.c.h.b16 %v882
        %v1297 = vunpack.c.l.b16 %v883
        %v1298 = vunpack.c.h.b16 %v883
        %v1299 = vunpack.c.l.b16 %v884
        %v1300 = vunpack.c.h.b16 %v884
        %v1301 = vunpack.c.l.b16 %v885
        %v1302 = vunpack.c.h.b16 %v885
        %v1303 = vunpack.c.l.b16 %v886
        %v1304 = vunpack.c.h.b16 %v886
        %v1305 = vunpack.c.l.b16 %v887
        %v1306 = vunpack.c.h.b16 %v887
        %v1307 = vunpack.c.l.b16 %v888
        %v1308 = vunpack.c.h.b16 %v888
        %v1309 = vunpack.c.l.b16 %v889
        %v1310 = vunpack.c.h.b16 %v889
        %v1311 = vunpack.c.l.b16 %v890
        %v1312 = vunpack.c.h.b16 %v890
        %v1313 = vunpack.c.l.b16 %v891
        %v1314 = vunpack.c.h.b16 %v891
        %v1315 = vunpack.c.l.b16 %v892
        %v1316 = vunpack.c.h.b16 %v892
        %v1317 = vunpack.c.l.b16 %v893
        %v1318 = vunpack.c.h.b16 %v893
        %v1319 = vunpack.c.l.b16 %v894
        %v1320 = vunpack.c.h.b16 %v894
        %v1321 = vunpack.c.l.b16 %v895
        %v1322 = vunpack.c.h.b16 %v895
        %v1323 = vunpack.c.l.b16 %v896
        %v1324 = vunpack.c.h.b16 %v896
        %v1325 = vunpack.c.l.b16 %v897
        %v1326 = vunpack.c.h.b16 %v897
        %v1327 = vunpack.c.l.b16 %v898
        %v1328 = vunpack.c.h.b16 %v898
        %v1329 = vunpack.c.l.b16 %v899
        %v1330 = vunpack.c.h.b16 %v899
        %v1331 = vunpack.c.l.b16 %v900
        %v1332 = vunpack.c.h.b16 %v900
        %v1333 = vunpack.c.l.b16 %v901
        %v1334 = vunpack.c.h.b16 %v901
        %v1335 = vunpack.c.l.b16 %v902
        %v1336 = vunpack.c.h.b16 %v902
        %v1337 = vunpack.c.l.b16 %v903
        %v1338 = vunpack.c.h.b16 %v903
        %v1339 = vunpack.c.l.b16 %v904
        %v1340 = vunpack.c.h.b16 %v904
        %v1341 = vunpack.c.l.b16 %v905
        %v1342 = vunpack.c.h.b16 %v905
        %v1343 = vunpack.c.l.b16 %v906
        %v1344 = vunpack.c.h.b16 %v906
        %v1345 = vunpack.c.l.b16 %v907
        %v1346 = vunpack.c.h.b16 %v907
        %v1347 = vunpack.c.l.b16 %v908
        %v1348 = vunpack.c.h.b16 %v908
        %v1349 = vunpack.c.l.b16 %v909
        %v1350 = vunpack.c.h.b16 %v909
        %v1351 = vunpack.c.l.b16 %v910
        %v1352 = vunpack.c.h.b16 %v910
        %v1353 = vunpack.c.l.b16 %v911
        %v1354 = vunpack.c.h.b16 %v911
        %v1355 = vunpack.c.l.b16 %v912
        %v1356 = vunpack.c.h.b16 %v912
        %v1357 = vunpack.c.l.b16 %v913
        %v1358 = vunpack.c.h.b16 %v913
        %v1359 = vunpack.c.l.b16 %v914
        %v1360 = vunpack.c.h.b16 %v914
        %v1361 = vunpack.c.l.b16 %v915
        %v1362 = vunpack.c.h.b16 %v915
        %v1363 = vunpack.c.l.b16 %v916
        %v1364 = vunpack.c.h.b16 %v916
        %v1365 = vunpack.c.l.b16 %v917
        %v1366 = vunpack.c.h.b16 %v917
        %v1367 = vunpack.c.l.b16 %v918
        %v1368 = vunpack.c.h.b16 %v918
        %v1369 = vunpack.c.l.b16 %v919
        %v1370 = vunpack.c.h.b16 %v919
        %v1371 = vunpack.c.l.b16 %v920
        %v1372 = vunpack.c.h.b16 %v920
        %v1373 = vunpack.c.l.b16 %v921
        %v1374 = vunpack.c.h.b16 %v921
        %v1375 = vunpack.c.l.b16 %v922
        %v1376 = vunpack.c.h.b16 %v922
        %v1377 = vunpack.c.l.b16 %v923
        %v1378 = vunpack.c.h.b16 %v923
        %v1379 = vunpack.c.l.b16 %v924
        %v1380 = vunpack.c.h.b16 %v924
        %v1381 = vunpack.c.l.b16 %v925
        %v1382 = vunpack.c.h.b16 %v925
        %v1383 = vunpack.c.l.b16 %v926
        %v1384 = vunpack.c.h.b16 %v926
        %v1385 = vunpack.c.l.b16 %v927
        %v1386 = vunpack.c.h.b16 %v927
        %v1387 = vunpack.c.l.b16 %v928
        %v1388 = vunpack.c.h.b16 %v928
        %v1389 = vunpack.c.l.b16 %v929
        %v1390 = vunpack.c.h.b16 %v929
        %v1391 = vunpack.c.l.b16 %v930
        %v1392 = vunpack.c.h.b16 %v930
        %v1393 = vunpack.c.l.b16 %v931
        %v1394 = vunpack.c.h.b16 %v931
        %v1395 = vunpack.c.l.b16 %v932
        %v1396 = vunpack.c.h.b16 %v932
        %v1397 = vunpack.c.l.b16 %v933
        %v1398 = vunpack.c.h.b16 %v933
        %v1399 = vunpack.c.l.b16 %v934
        %v1400 = vunpack.c.h.b16 %v934
        %v1401 = vunpack.c.l.b16 %v935
        %v1402 = vunpack.c.h.b16 %v935
        %v1403 = vunpack.c.l.b16 %v936
        %v1404 = vunpack.c.h.b16 %v936
        %v1405 = vunpack.c.l.b16 %v937
        %v1406 = vunpack.c.h.b16 %v937
        %v1407 = vunpack.c.l.b16 %v938
        %v1408 = vunpack.c.h.b16 %v938
        %v1409 = vunpack.c.l.b16 %v939
        %v1410 = vunpack.c.h.b16 %v939
        %v1411 = vunpack.c.l.b16 %v940
        %v1412 = vunpack.c.h.b16 %v940
        %v1413 = vunpack.c.l.b16 %v941
        %v1414 = vunpack.c.h.b16 %v941
        %v1415 = vunpack.c.l.b16 %v942
        %v1416 = vunpack.c.h.b16 %v942
        %v1417 = vunpack.c.l.b16 %v943
        %v1418 = vunpack.c.h.b16 %v943
        %v1419 = vunpack.c.l.b16 %v944
        %v1420 = vunpack.c.h.b16 %v944
        %v1421 = vunpack.c.l.b16 %v945
        %v1422 = vunpack.c.h.b16 %v945
        %v1423 = vunpack.c.l.b16 %v946
        %v1424 = vunpack.c.h.b16 %v946
        %v1425 = vunpack.c.l.b16 %v947
        %v1426 = vunpack.c.h.b16 %v947
        %v1427 = vunpack.c.l.b16 %v948
        %v1428 = vunpack.c.h.b16 %v948
        %v1429 = vunpack.c.l.b16 %v949
        %v1430 = vunpack.c.h.b16 %v949
        %v1431 = vunpack.c.l.b16 %v950
        %v1432 = vunpack.c.h.b16 %v950
        %v1433 = vunpack.c.l.b16 %v951
        %v1434 = vunpack.c.h.b16 %v951
        %v1435 = vunpack.c.l.b16 %v952
        %v1436 = vunpack.c.h.b16 %v952
        %v1437 = vunpack.c.l.b16 %v953
        %v1438 = vunpack.c.h.b16 %v953
        %v1439 = vunpack.c.l.b16 %v954
        %v1440 = vunpack.c.h.b16 %v954
        %v1441 = vunpack.c.l.b16 %v955
        %v1442 = vunpack.c.h.b16 %v955
        %v1443 = vunpack.c.l.b16 %v956
        %v1444 = vunpack.c.h.b16 %v956
        %v1445 = vunpack.c.l.b16 %v957
        %v1446 = vunpack.c.h.b16 %v957
        %v1447 = vunpack.c.l.b16 %v958
        %v1448 = vunpack.c.h.b16 %v958
        %v1449 = vunpack.c.l.b16 %v959
        %v1450 = vunpack.c.h.b16 %v959
        %v1451 = vunpack.c.l.b16 %v960
        %v1452 = vunpack.c.h.b16 %v960
        %v1453 = vunpack.c.l.b16 %v961
        %v1454 = vunpack.c.h.b16 %v961
        %v1455 = vunpack.c.l.b16 %v962
        %v1456 = vunpack.c.h.b16 %v962
        %v1457 = vunpack.c.l.b16 %v963
        %v1458 = vunpack.c.h.b16 %v963
        %v1459 = vunpack.c.l.b16 %v964
        %v1460 = vunpack.c.h.b16 %v964
        %v1461 = vunpack.c.l.b16 %v965
        %v1462 = vunpack.c.h.b16 %v965
        %v1463 = vunpack.c.l.b16 %v966
        %v1464 = vunpack.c.h.b16 %v966
        %v1465 = vunpack.c.l.b16 %v967
        %v1466 = vunpack.c.h.b16 %v967
        %v1467 = vunpack.c.l.b16 %v968
        %v1468 = vunpack.c.h.b16 %v968
        %v1469 = vunpack.c.l.b16 %v969
        %v1470 = vunpack.c.h.b16 %v969
        %v1471 = vunpack.c.l.b16 %v970
        %v1472 = vunpack.c.h.b16 %v970
        %v1473 = vunpack.c.l.b16 %v971
        %v1474 = vunpack.c.h.b16 %v971
        %v1475 = vunpack.c.l.b16 %v972
        %v1476 = vunpack.c.h.b16 %v972
        %v1477 = vunpack.c.l.b16 %v973
        %v1478 = vunpack.c.h.b16 %v973
        %v1479 = vunpack.c.l.b16 %v974
        %v1480 = vunpack.c.h.b16 %v974
        %v1481 = vunpack.c.l.b16 %v975
        %v1482 = vunpack.c.h.b16 %v975
        %v1483 = vunpack.c.l.b16 %v976
        %v1484 = vunpack.c.h.b16 %v976
        %v1485 = vunpack.c.l.b16 %v977
        %v1486 = vunpack.c.h.b16 %v977
        %v1487 = vunpack.c.l.b16 %v978
        %v1488 = vunpack.c.h.b16 %v978
        %v1489 = vunpack.c.l.b16 %v979
        %v1490 = vunpack.c.h.b16 %v979
        %v1491 = vunpack.c.l.b16 %v980
        %v1492 = vunpack.c.h.b16 %v980
        %v1493 = vunpack.c.l.b16 %v981
        %v1494 = vunpack.c.h.b16 %v981
        %v1495 = vunpack.c.l.b16 %v982
        %v1496 = vunpack.c.h.b16 %v982
        %v1497 = vunpack.c.l.b16 %v983
        %v1498 = vunpack.c.h.b16 %v983
        %v1499 = vunpack.c.l.b16 %v984
        %v1500 = vunpack.c.h.b16 %v984
        %v1501 = vpack.c.b16 %v1215, %v1213
        %v1502 = vpack.c.b16 %v1216, %v1214
        %v1503 = vpack.c.b16 %v1219, %v1217
        %v1504 = vpack.c.b16 %v1220, %v1218
        %v1505 = vpack.c.b16 %v1223, %v1221
        %v1506 = vpack.c.b16 %v1224, %v1222
        %v1507 = vpack.c.b16 %v1227, %v1225
        %v1508 = vpack.c.b16 %v1228, %v1226
        %v1509 = vpack.c.b16 %v1231, %v1229
        %v1510 = vpack.c.b16 %v1232, %v1230
        %v1511 = vpack.c.b16 %v1235, %v1233
        %v1512 = vpack.c.b16 %v1236, %v1234
        %v1513 = vpack.c.b16 %v1239, %v1237
        %v1514 = vpack.c.b16 %v1240, %v1238
        %v1515 = vpack.c.b16 %v1243, %v1241
        %v1516 = vpack.c.b16 %v1244, %v1242
        %v1517 = vpack.c.b16 %v1247, %v1245
        %v1518 = vpack.c.b16 %v1248, %v1246
        %v1519 = vpack.c.b16 %v1251, %v1249
        %v1520 = vpack.c.b16 %v1252, %v1250
        %v1521 = vpack.c.b16 %v1255, %v1253
        %v1522 = vpack.c.b16 %v1256, %v1254
        %v1523 = vpack.c.b16 %v1259, %v1257
        %v1524 = vpack.c.b16 %v1260, %v1258
        %v1525 = vpack.c.b16 %v1263, %v1261
        %v1526 = vpack.c.b16 %v1264, %v1262
        %v1527 = vpack.c.b16 %v1267, %v1265
        %v1528 = vpack.c.b16 %v1268, %v1266
        %v1529 = vpack.c.b16 %v1271, %v1269
        %v1530 = vpack.c.b16 %v1272, %v1270
        %v1531 = vpack.c.b16 %v1275, %v1273
        %v1532 = vpack.c.b16 %v1276, %v1274
        %v1533 = vpack.c.b16 %v1279, %v1277
        %v1534 = vpack.c.b16 %v1280, %v1278
        %v1535 = vpack.c.b16 %v1283, %v1281
        %v1536 = vpack.c.b16 %v1284, %v1282
        %v1537 = vpack.c.b16 %v1287, %v1285
        %v1538 = vpack.c.b16 %v1288, %v1286
        %v1539 = vpack.c.b16 %v1291, %v1289
        %v1540 = vpack.c.b16 %v1292, %v1290
        %v1541 = vpack.c.b16 %v1295, %v1293
        %v1542 = vpack.c.b16 %v1296, %v1294
        %v1543 = vpack.c.b16 %v1299, %v1297
        %v1544 = vpack.c.b16 %v1300, %v1298
        %v1545 = vpack.c.b16 %v1303, %v1301
        %v1546 = vpack.c.b16 %v1304, %v1302
        %v1547 = vpack.c.b16 %v1307, %v1305
        %v1548 = vpack.c.b16 %v1308, %v1306
        %v1549 = vpack.c.b16 %v1311, %v1309
        %v1550 = vpack.c.b16 %v1312, %v1310
        %v1551 = vpack.c.b16 %v1315, %v1313
        %v1552 = vpack.c.b16 %v1316, %v1314
        %v1553 = vpack.c.b16 %v1319, %v1317
        %v1554 = vpack.c.b16 %v1320, %v1318
        %v1555 = vpack.c.b16 %v1323, %v1321
        %v1556 = vpack.c.b16 %v1324, %v1322
        %v1557 = vpack.c.b16 %v1327, %v1325
        %v1558 = vpack.c.b16 %v1328, %v1326
        %v1559 = vpack.c.b16 %v1331, %v1329
        %v1560 = vpack.c.b16 %v1332, %v1330
        %v1561 = vpack.c.b16 %v1335, %v1333
        %v1562 = vpack.c.b16 %v1336, %v1334
        %v1563 = vpack.c.b16 %v1339, %v1337
        %v1564 = vpack.c.b16 %v1340, %v1338
        %v1565 = vpack.c.b16 %v1343, %v1341
        %v1566 = vpack.c.b16 %v1344, %v1342
        %v1567 = vpack.c.b16 %v1347, %v1345
        %v1568 = vpack.c.b16 %v1348, %v1346
        %v1569 = vpack.c.b16 %v1351, %v1349
        %v1570 = vpack.c.b16 %v1352, %v1350
        %v1571 = vpack.c.b16 %v1355, %v1353
        %v1572 = vpack.c.b16 %v1356, %v1354
        %v1573 = vpack.c.b16 %v1359, %v1357
        %v1574 = vpack.c.b16 %v1360, %v1358
        %v1575 = vpack.c.b16 %v1363, %v1361
        %v1576 = vpack.c.b16 %v1364, %v1362
        %v1577 = vpack.c.b16 %v1367, %v1365
        %v1578 = vpack.c.b16 %v1368, %v1366
        %v1579 = vpack.c.b16 %v1371, %v1369
        %v1580 = vpack.c.b16 %v1372, %v1370
        %v1581 = vpack.c.b16 %v1375, %v1373
        %v1582 = vpack.c.b16 %v1376, %v1374
        %v1583 = vpack.c.b16 %v1379, %v1377
        %v1584 = vpack.c.b16 %v1380, %v1378
        %v1585 = vpack.c.b16 %v1383, %v1381
        %v1586 = vpack.c.b16 %v1384, %v1382
        %v1587 = vpack.c.b16 %v1387, %v1385
        %v1588 = vpack.c.b16 %v1388, %v1386
        %v1589 = vpack.c.b16 %v1391, %v1389
        %v1590 = vpack.c.b16 %v1392, %v1390
        %v1591 = vpack.c.b16 %v1395, %v1393
        %v1592 = vpack.c.b16 %v1396, %v1394
        %v1593 = vpack.c.b16 %v1399, %v1397
        %v1594 = vpack.c.b16 %v1400, %v1398
        %v1595 = vpack.c.b16 %v1403, %v1401
        %v1596 = vpack.c.b16 %v1404, %v1402
        %v1597 = vpack.c.b16 %v1407, %v1405
        %v1598 = vpack.c.b16 %v1408, %v1406
        %v1599 = vpack.c.b16 %v1411, %v1409
        %v1600 = vpack.c.b16 %v1412, %v1410
        %v1601 = vpack.c.b16 %v1415, %v1413
        %v1602 = vpack.c.b16 %v1416, %v1414
        %v1603 = vpack.c.b16 %v1419, %v1417
        %v1604 = vpack.c.b16 %v1420, %v1418
        %v1605 = vpack.c.b16 %v1423, %v1421
        %v1606 = vpack.c.b16 %v1424, %v1422
        %v1607 = vpack.c.b16 %v1427, %v1425
        %v1608 = vpack.c.b16 %v1428, %v1426
        %v1609 = vpack.c.b16 %v1431, %v1429
        %v1610 = vpack.c.b16 %v1432, %v1430
        %v1611 = vpack.c.b16 %v1435, %v1433
        %v1612 = vpack.c.b16 %v1436, %v1434
        %v1613 = vpack.c.b16 %v1439, %v1437
        %v1614 = vpack.c.b16 %v1440, %v1438
        %v1615 = vpack.c.b16 %v1443, %v1441
        %v1616 = vpack.c.b16 %v1444, %v1442
        %v1617 = vpack.c.b16 %v1447, %v1445
        %v1618 = vpack.c.b16 %v1448, %v1446
        %v1619 = vpack.c.b16 %v1451, %v1449
        %v1620 = vpack.c.b16 %v1452, %v1450
        %v1621 = vpack.c.b16 %v1455, %v1453
        %v1622 = vpack.c.b16 %v1456, %v1454
        %v1623 = vpack.c.b16 %v1459, %v1457
        %v1624 = vpack.c.b16 %v1460, %v1458
        %v1625 = vpack.c.b16 %v1463, %v1461
        %v1626 = vpack.c.b16 %v1464, %v1462
        %v1627 = vpack.c.b16 %v1467, %v1465
        %v1628 = vpack.c.b16 %v1468, %v1466
        %v1629 = vpack.c.b16 %v1471, %v1469
        %v1630 = vpack.c.b16 %v1472, %v1470
        %v1631 = vpack.c.b16 %v1475, %v1473
        %v1632 = vpack.c.b16 %v1476, %v1474
        %v1633 = vpack.c.b16 %v1479, %v1477
        %v1634 = vpack.c.b16 %v1480, %v1478
        %v1635 = vpack.c.b16 %v1483, %v1481
        %v1636 = vpack.c.b16 %v1484, %v1482
        %v1637 = vpack.c.b16 %v1487, %v1485
        %v1638 = vpack.c.b16 %v1488, %v1486
        %v1639 = vpack.c.b16 %v1491, %v1489
        %v1640 = vpack.c.b16 %v1492, %v1490
        %v1641 = vpack.c.b16 %v1495, %v1493
        %v1642 = vpack.c.b16 %v1496, %v1494
        %v1643 = vpack.c.b16 %v1499, %v1497
        %v1644 = vpack.c.b16 %v1500, %v1498
        %1789 = vmatprep.subr.bf16.mxu0 %v1502
        %1790 = vmatpush1.bf16.msra.mxu0 %v1501
        %1791 = vmatprep.subr.bf16.mxu0 %v1504
        %1792 = vmatpush1.bf16.msra.mxu0 %v1503
        %1793 = vmatprep.subr.bf16.mxu0 %v1506
        %1794 = vmatpush1.bf16.msra.mxu0 %v1505
        %1795 = vmatprep.subr.bf16.mxu0 %v1508
        %1796 = vmatpush1.bf16.msra.mxu0 %v1507
        %1797 = vmatprep.subr.bf16.mxu0 %v1510
        %1798 = vmatpush1.bf16.msra.mxu0 %v1509
        %1799 = vmatprep.subr.bf16.mxu0 %v1512
        %1800 = vmatpush1.bf16.msra.mxu0 %v1511
        %1801 = vmatprep.subr.bf16.mxu0 %v1514
        %1802 = vmatpush1.bf16.msra.mxu0 %v1513
        %1803 = vmatprep.subr.bf16.mxu0 %v1516
        %1804 = vmatpush1.bf16.msra.mxu0 %v1515
        %1805 = vmatprep.subr.bf16.mxu0 %v1518
        %1806 = vmatpush1.bf16.msra.mxu0 %v1517
        %1807 = vmatprep.subr.bf16.mxu0 %v1520
        %1808 = vmatpush1.bf16.msra.mxu0 %v1519
        %1809 = vmatprep.subr.bf16.mxu0 %v1522
        %1810 = vmatpush1.bf16.msra.mxu0 %v1521
        %1811 = vmatprep.subr.bf16.mxu0 %v1524
        %1812 = vmatpush1.bf16.msra.mxu0 %v1523
        %1813 = vmatprep.subr.bf16.mxu0 %v1526
        %1814 = vmatpush1.bf16.msra.mxu0 %v1525
        %1815 = vmatprep.subr.bf16.mxu0 %v1528
        %1816 = vmatpush1.bf16.msra.mxu0 %v1527
        %1817 = vmatprep.subr.bf16.mxu0 %v1530
        %1818 = vmatpush1.bf16.msra.mxu0 %v1529
        %1819 = vmatprep.subr.bf16.mxu0 %v1532
        %1820 = vmatpush1.bf16.msra.mxu0 %v1531
        %1821 = vmatprep.mubr.bf16.mxu0 %v998
        %1822 = vmatmul.mubr.bf16.gmra.mrb[0].mxu0 %v997
        %v1823 = vpop.f32.mrb[0].mxu0
        %v1824 = vadd.f32 %v990, %v1823
        %v1825 = vpop.f32.mrb[0].mxu0
        %v1826 = vadd.f32 %v994, %v1825
        %v1827 = vpop.f32.mrb[0].mxu0
        %v1828 = vadd.f32 %v990, %v1827
        %v1829 = vpop.f32.mrb[0].mxu0
        %v1830 = vadd.f32 %v994, %v1829
        %1831 = vmatprep.mubr.bf16.mxu0 %v1007
        %1832 = vmatmul.mubr.bf16.gmra.mrb[0].mxu0 %v1006
        %v1833 = vpop.f32.mrb[0].mxu0
        %v1834 = vadd.f32 %v990, %v1833
        %v1835 = vpop.f32.mrb[0].mxu0
        %v1836 = vadd.f32 %v994, %v1835
        %v1837 = vpop.f32.mrb[0].mxu0
        %v1838 = vadd.f32 %v990, %v1837
        %v1839 = vpop.f32.mrb[0].mxu0
        %v1840 = vadd.f32 %v994, %v1839
        %1841 = vmatprep.mubr.bf16.mxu0 %v1016
        %1842 = vmatmul.mubr.bf16.gmra.mrb[0].mxu0 %v1015
        %v1843 = vpop.f32.mrb[0].mxu0
        %v1844 = vadd.f32 %v990, %v1843
        %v1845 = vpop.f32.mrb[0].mxu0
        %v1846 = vadd.f32 %v994, %v1845
        %v1847 = vpop.f32.mrb[0].mxu0
        %v1848 = vadd.f32 %v990, %v1847
        %v1849 = vpop.f32.mrb[0].mxu0
        %v1850 = vadd.f32 %v994, %v1849
        %1851 = vmatprep.mubr.bf16.mxu0 %v1025
        %1852 = vmatmul.mubr.bf16.gmra.mrb[0].mxu0 %v1024
        %v1853 = vpop.f32.mrb[0].mxu0
        %v1854 = vadd.f32 %v990, %v1853
        %v1855 = vpop.f32.mrb[0].mxu0
        %v1856 = vadd.f32 %v994, %v1855
        %v1857 = vpop.f32.mrb[0].mxu0
        %v1858 = vadd.f32 %v990, %v1857
        %v1859 = vpop.f32.mrb[0].mxu0
        %v1860 = vadd.f32 %v994, %v1859
        %1861 = vdwg.mxu0
        %1862 = vmatprep.subr.bf16.mxu0 %v1534
        %1863 = vmatpush1.bf16.msra.mxu0 %v1533
        %1864 = vmatprep.subr.bf16.mxu0 %v1536
        %1865 = vmatpush1.bf16.msra.mxu0 %v1535
        %1866 = vmatprep.subr.bf16.mxu0 %v1538
        %1867 = vmatpush1.bf16.msra.mxu0 %v1537
        %1868 = vmatprep.subr.bf16.mxu0 %v1540
        %1869 = vmatpush1.bf16.msra.mxu0 %v1539
        %1870 = vmatprep.subr.bf16.mxu0 %v1542
        %1871 = vmatpush1.bf16.msra.mxu0 %v1541
        %1872 = vmatprep.subr.bf16.mxu0 %v1544
        %1873 = vmatpush1.bf16.msra.mxu0 %v1543
        %1874 = vmatprep.subr.bf16.mxu0 %v1546
        %1875 = vmatpush1.bf16.msra.mxu0 %v1545
        %1876 = vmatprep.subr.bf16.mxu0 %v1548
        %1877 = vmatpush1.bf16.msra.mxu0 %v1547
        %1878 = vmatprep.subr.bf16.mxu0 %v1550
        %1879 = vmatpush1.bf16.msra.mxu0 %v1549
        %1880 = vmatprep.subr.bf16.mxu0 %v1552
        %1881 = vmatpush1.bf16.msra.mxu0 %v1551
        %1882 = vmatprep.subr.bf16.mxu0 %v1554
        %1883 = vmatpush1.bf16.msra.mxu0 %v1553
        %1884 = vmatprep.subr.bf16.mxu0 %v1556
        %1885 = vmatpush1.bf16.msra.mxu0 %v1555
        %1886 = vmatprep.subr.bf16.mxu0 %v1558
        %1887 = vmatpush1.bf16.msra.mxu0 %v1557
        %1888 = vmatprep.subr.bf16.mxu0 %v1560
        %1889 = vmatpush1.bf16.msra.mxu0 %v1559
        %1890 = vmatprep.subr.bf16.mxu0 %v1562
        %1891 = vmatpush1.bf16.msra.mxu0 %v1561
        %1892 = vmatprep.subr.bf16.mxu0 %v1564
        %1893 = vmatpush1.bf16.msra.mxu0 %v1563
        %1894 = vmatprep.mubr.bf16.mxu0 %v1000
        %1895 = vmatmul.mubr.bf16.gmra.mrb[0].mxu0 %v999
        %v1896 = vpop.f32.mrb[0].mxu0
        %v1897 = vadd.f32 %v1824, %v1896
        %v1898 = vpop.f32.mrb[0].mxu0
        %v1899 = vadd.f32 %v1826, %v1898
        %v1900 = vpop.f32.mrb[0].mxu0
        %v1901 = vadd.f32 %v1828, %v1900
        %v1902 = vpop.f32.mrb[0].mxu0
        %v1903 = vadd.f32 %v1830, %v1902
        %1904 = vmatprep.mubr.bf16.mxu0 %v1009
        %1905 = vmatmul.mubr.bf16.gmra.mrb[0].mxu0 %v1008
        %v1906 = vpop.f32.mrb[0].mxu0
        %v1907 = vadd.f32 %v1834, %v1906
        %v1908 = vpop.f32.mrb[0].mxu0
        %v1909 = vadd.f32 %v1836, %v1908
        %v1910 = vpop.f32.mrb[0].mxu0
        %v1911 = vadd.f32 %v1838, %v1910
        %v1912 = vpop.f32.mrb[0].mxu0
        %v1913 = vadd.f32 %v1840, %v1912
        %1914 = vmatprep.mubr.bf16.mxu0 %v1018
        %1915 = vmatmul.mubr.bf16.gmra.mrb[0].mxu0 %v1017
        %v1916 = vpop.f32.mrb[0].mxu0
        %v1917 = vadd.f32 %v1844, %v1916
        %v1918 = vpop.f32.mrb[0].mxu0
        %v1919 = vadd.f32 %v1846, %v1918
        %v1920 = vpop.f32.mrb[0].mxu0
        %v1921 = vadd.f32 %v1848, %v1920
        %v1922 = vpop.f32.mrb[0].mxu0
        %v1923 = vadd.f32 %v1850, %v1922
        %1924 = vmatprep.mubr.bf16.mxu0 %v1027
        %1925 = vmatmul.mubr.bf16.gmra.mrb[0].mxu0 %v1026
        %v1926 = vpop.f32.mrb[0].mxu0
        %v1927 = vadd.f32 %v1854, %v1926
        %v1928 = vpop.f32.mrb[0].mxu0
        %v1929 = vadd.f32 %v1856, %v1928
        %v1930 = vpop.f32.mrb[0].mxu0
        %v1931 = vadd.f32 %v1858, %v1930
        %v1932 = vpop.f32.mrb[0].mxu0
        %v1933 = vadd.f32 %v1860, %v1932
        %1934 = vdwg.mxu0
        %1935 = vmatprep.subr.bf16.mxu0 %v1566
        %1936 = vmatpush1.bf16.msra.mxu0 %v1565
        %1937 = vmatprep.subr.bf16.mxu0 %v1568
        %1938 = vmatpush1.bf16.msra.mxu0 %v1567
        %1939 = vmatprep.subr.bf16.mxu0 %v1570
        %1940 = vmatpush1.bf16.msra.mxu0 %v1569
        %1941 = vmatprep.subr.bf16.mxu0 %v1572
        %1942 = vmatpush1.bf16.msra.mxu0 %v1571
        %1943 = vmatprep.subr.bf16.mxu0 %v1574
        %1944 = vmatpush1.bf16.msra.mxu0 %v1573
        %1945 = vmatprep.subr.bf16.mxu0 %v1576
        %1946 = vmatpush1.bf16.msra.mxu0 %v1575
        %1947 = vmatprep.subr.bf16.mxu0 %v1578
        %1948 = vmatpush1.bf16.msra.mxu0 %v1577
        %1949 = vmatprep.subr.bf16.mxu0 %v1580
        %1950 = vmatpush1.bf16.msra.mxu0 %v1579
        %1951 = vmatprep.subr.bf16.mxu0 %v1582
        %1952 = vmatpush1.bf16.msra.mxu0 %v1581
        %1953 = vmatprep.subr.bf16.mxu0 %v1584
        %1954 = vmatpush1.bf16.msra.mxu0 %v1583
        %1955 = vmatprep.subr.bf16.mxu0 %v1586
        %1956 = vmatpush1.bf16.msra.mxu0 %v1585
        %1957 = vmatprep.subr.bf16.mxu0 %v1588
        %1958 = vmatpush1.bf16.msra.mxu0 %v1587
        %1959 = vmatprep.subr.bf16.mxu0 %v1590
        %1960 = vmatpush1.bf16.msra.mxu0 %v1589
        %1961 = vmatprep.subr.bf16.mxu0 %v1592
        %1962 = vmatpush1.bf16.msra.mxu0 %v1591
        %1963 = vmatprep.subr.bf16.mxu0 %v1594
        %1964 = vmatpush1.bf16.msra.mxu0 %v1593
        %1965 = vmatprep.subr.bf16.mxu0 %v1596
        %1966 = vmatpush1.bf16.msra.mxu0 %v1595
        %1967 = vmatprep.mubr.bf16.mxu0 %v1002
        %1968 = vmatmul.mubr.bf16.gmra.mrb[0].mxu0 %v1001
        %v1969 = vpop.f32.mrb[0].mxu0
        %v1970 = vadd.f32 %v1897, %v1969
        %v1971 = vpop.f32.mrb[0].mxu0
        %v1972 = vadd.f32 %v1899, %v1971
        %v1973 = vpop.f32.mrb[0].mxu0
        %v1974 = vadd.f32 %v1901, %v1973
        %v1975 = vpop.f32.mrb[0].mxu0
        %v1976 = vadd.f32 %v1903, %v1975
        %1977 = vmatprep.mubr.bf16.mxu0 %v1011
        %1978 = vmatmul.mubr.bf16.gmra.mrb[0].mxu0 %v1010
        %v1979 = vpop.f32.mrb[0].mxu0
        %v1980 = vadd.f32 %v1907, %v1979
        %v1981 = vpop.f32.mrb[0].mxu0
        %v1982 = vadd.f32 %v1909, %v1981
        %v1983 = vpop.f32.mrb[0].mxu0
        %v1984 = vadd.f32 %v1911, %v1983
        %v1985 = vpop.f32.mrb[0].mxu0
        %v1986 = vadd.f32 %v1913, %v1985
        %1987 = vmatprep.mubr.bf16.mxu0 %v1020
        %1988 = vmatmul.mubr.bf16.gmra.mrb[0].mxu0 %v1019
        %v1989 = vpop.f32.mrb[0].mxu0
        %v1990 = vadd.f32 %v1917, %v1989
        %v1991 = vpop.f32.mrb[0].mxu0
        %v1992 = vadd.f32 %v1919, %v1991
        %v1993 = vpop.f32.mrb[0].mxu0
        %v1994 = vadd.f32 %v1921, %v1993
        %v1995 = vpop.f32.mrb[0].mxu0
        %v1996 = vadd.f32 %v1923, %v1995
        %1997 = vmatprep.mubr.bf16.mxu0 %v1029
        %1998 = vmatmul.mubr.bf16.gmra.mrb[0].mxu0 %v1028
        %v1999 = vpop.f32.mrb[0].mxu0
        %v2000 = vadd.f32 %v1927, %v1999
        %v2001 = vpop.f32.mrb[0].mxu0
        %v2002 = vadd.f32 %v1929, %v2001
        %v2003 = vpop.f32.mrb[0].mxu0
        %v2004 = vadd.f32 %v1931, %v2003
        %v2005 = vpop.f32.mrb[0].mxu0
        %v2006 = vadd.f32 %v1933, %v2005
        %2007 = vdwg.mxu0
        %2008 = vmatprep.subr.bf16.mxu0 %v1598
        %2009 = vmatpush1.bf16.msra.mxu0 %v1597
        %2010 = vmatprep.subr.bf16.mxu0 %v1600
        %2011 = vmatpush1.bf16.msra.mxu0 %v1599
        %2012 = vmatprep.subr.bf16.mxu0 %v1602
        %2013 = vmatpush1.bf16.msra.mxu0 %v1601
        %2014 = vmatprep.subr.bf16.mxu0 %v1604
        %2015 = vmatpush1.bf16.msra.mxu0 %v1603
        %2016 = vmatprep.subr.bf16.mxu0 %v1606
        %2017 = vmatpush1.bf16.msra.mxu0 %v1605
        %2018 = vmatprep.subr.bf16.mxu0 %v1608
        %2019 = vmatpush1.bf16.msra.mxu0 %v1607
        %2020 = vmatprep.subr.bf16.mxu0 %v1610
        %2021 = vmatpush1.bf16.msra.mxu0 %v1609
        %2022 = vmatprep.subr.bf16.mxu0 %v1612
        %2023 = vmatpush1.bf16.msra.mxu0 %v1611
        %2024 = vmatprep.subr.bf16.mxu0 %v1614
        %2025 = vmatpush1.bf16.msra.mxu0 %v1613
        %2026 = vmatprep.subr.bf16.mxu0 %v1616
        %2027 = vmatpush1.bf16.msra.mxu0 %v1615
        %2028 = vmatprep.subr.bf16.mxu0 %v1618
        %2029 = vmatpush1.bf16.msra.mxu0 %v1617
        %2030 = vmatprep.subr.bf16.mxu0 %v1620
        %2031 = vmatpush1.bf16.msra.mxu0 %v1619
        %2032 = vmatprep.subr.bf16.mxu0 %v1622
        %2033 = vmatpush1.bf16.msra.mxu0 %v1621
        %2034 = vmatprep.subr.bf16.mxu0 %v1624
        %2035 = vmatpush1.bf16.msra.mxu0 %v1623
        %2036 = vmatprep.subr.bf16.mxu0 %v1626
        %2037 = vmatpush1.bf16.msra.mxu0 %v1625
        %2038 = vmatprep.subr.bf16.mxu0 %v1628
        %2039 = vmatpush1.bf16.msra.mxu0 %v1627
        %2040 = vmatprep.mubr.bf16.mxu0 %v1004
        %2041 = vmatmul.mubr.bf16.gmra.mrb[0].mxu0 %v1003
        %v2042 = vpop.f32.mrb[0].mxu0
        %v2043 = vadd.f32 %v1970, %v2042
        %v2044 = vpop.f32.mrb[0].mxu0
        %v2045 = vadd.f32 %v1972, %v2044
        %v2046 = vpop.f32.mrb[0].mxu0
        %v2047 = vadd.f32 %v1974, %v2046
        %v2048 = vpop.f32.mrb[0].mxu0
        %v2049 = vadd.f32 %v1976, %v2048
        %2050 = vmatprep.mubr.bf16.mxu0 %v1013
        %2051 = vmatmul.mubr.bf16.gmra.mrb[0].mxu0 %v1012
        %v2052 = vpop.f32.mrb[0].mxu0
        %v2053 = vadd.f32 %v1980, %v2052
        %v2054 = vpop.f32.mrb[0].mxu0
        %v2055 = vadd.f32 %v1982, %v2054
        %v2056 = vpop.f32.mrb[0].mxu0
        %v2057 = vadd.f32 %v1984, %v2056
        %v2058 = vpop.f32.mrb[0].mxu0
        %v2059 = vadd.f32 %v1986, %v2058
        %2060 = vmatprep.mubr.bf16.mxu0 %v1022
        %2061 = vmatmul.mubr.bf16.gmra.mrb[0].mxu0 %v1021
        %v2062 = vpop.f32.mrb[0].mxu0
        %v2063 = vadd.f32 %v1990, %v2062
        %v2064 = vpop.f32.mrb[0].mxu0
        %v2065 = vadd.f32 %v1992, %v2064
        %v2066 = vpop.f32.mrb[0].mxu0
        %v2067 = vadd.f32 %v1994, %v2066
        %v2068 = vpop.f32.mrb[0].mxu0
        %v2069 = vadd.f32 %v1996, %v2068
        %2070 = vmatprep.mubr.bf16.mxu0 %v1031
        %2071 = vmatmul.mubr.bf16.gmra.mrb[0].mxu0 %v1030
        %v2072 = vpop.f32.mrb[0].mxu0
        %v2073 = vadd.f32 %v2000, %v2072
        %v2074 = vpop.f32.mrb[0].mxu0
        %v2075 = vadd.f32 %v2002, %v2074
        %v2076 = vpop.f32.mrb[0].mxu0
        %v2077 = vadd.f32 %v2004, %v2076
        %v2078 = vpop.f32.mrb[0].mxu0
        %v2079 = vadd.f32 %v2006, %v2078
        %2080 = vdwg.mxu0
        %2081 = vmatprep.subr.bf16.mxu0 %v1630
        %2082 = vmatpush1.bf16.msra.mxu0 %v1629
        %2083 = vmatprep.subr.bf16.mxu0 %v1632
        %2084 = vmatpush1.bf16.msra.mxu0 %v1631
        %2085 = vmatprep.subr.bf16.mxu0 %v1634
        %2086 = vmatpush1.bf16.msra.mxu0 %v1633
        %2087 = vmatprep.subr.bf16.mxu0 %v1636
        %2088 = vmatpush1.bf16.msra.mxu0 %v1635
        %2089 = vmatprep.subr.bf16.mxu0 %v1638
        %2090 = vmatpush1.bf16.msra.mxu0 %v1637
        %2091 = vmatprep.subr.bf16.mxu0 %v1640
        %2092 = vmatpush1.bf16.msra.mxu0 %v1639
        %2093 = vmatprep.subr.bf16.mxu0 %v1642
        %2094 = vmatpush1.bf16.msra.mxu0 %v1641
        %2095 = vmatprep.subr.bf16.mxu0 %v1644
        %2096 = vmatpush1.bf16.msra.mxu0 %v1643
        %2097 = vmatprep.subr.bf16.mxu0 0
        %2098 = vmatpush1.bf16.msra.mxu0 0
        %2099 = vmatprep.subr.bf16.mxu0 0
        %2100 = vmatpush1.bf16.msra.mxu0 0
        %2101 = vmatprep.subr.bf16.mxu0 0
        %2102 = vmatpush1.bf16.msra.mxu0 0
        %2103 = vmatprep.subr.bf16.mxu0 0
        %2104 = vmatpush1.bf16.msra.mxu0 0
        %2105 = vmatprep.subr.bf16.mxu0 0
        %2106 = vmatpush1.bf16.msra.mxu0 0
        %2107 = vmatprep.subr.bf16.mxu0 0
        %2108 = vmatpush1.bf16.msra.mxu0 0
        %2109 = vmatprep.subr.bf16.mxu0 0
        %2110 = vmatpush1.bf16.msra.mxu0 0
        %2111 = vmatprep.subr.bf16.mxu0 0
        %2112 = vmatpush1.bf16.msra.mxu0 0
        %2113 = vmatprep.mubr.bf16.mxu0 0
        %2114 = vmatmul.mubr.bf16.gmra.mrb[0].mxu0 %v1005
        %v2115 = vpop.f32.mrb[0].mxu0
        %v2116 = vadd.f32 %v2043, %v2115
        %v2117 = vpop.f32.mrb[0].mxu0
        %v2118 = vadd.f32 %v2045, %v2117
        %v2119 = vpop.f32.mrb[0].mxu0
        %v2120 = vadd.f32 %v2047, %v2119
        %v2121 = vpop.f32.mrb[0].mxu0
        %v2122 = vadd.f32 %v2049, %v2121
        %2123 = vmatprep.mubr.bf16.mxu0 0
        %2124 = vmatmul.mubr.bf16.gmra.mrb[0].mxu0 %v1014
        %v2125 = vpop.f32.mrb[0].mxu0
        %v2126 = vadd.f32 %v2053, %v2125
        %v2127 = vpop.f32.mrb[0].mxu0
        %v2128 = vadd.f32 %v2055, %v2127
        %v2129 = vpop.f32.mrb[0].mxu0
        %v2130 = vadd.f32 %v2057, %v2129
        %v2131 = vpop.f32.mrb[0].mxu0
        %v2132 = vadd.f32 %v2059, %v2131
        %2133 = vmatprep.mubr.bf16.mxu0 0
        %2134 = vmatmul.mubr.bf16.gmra.mrb[0].mxu0 %v1023
        %v2135 = vpop.f32.mrb[0].mxu0
        %v2136 = vadd.f32 %v2063, %v2135
        %v2137 = vpop.f32.mrb[0].mxu0
        %v2138 = vadd.f32 %v2065, %v2137
        %v2139 = vpop.f32.mrb[0].mxu0
        %v2140 = vadd.f32 %v2067, %v2139
        %v2141 = vpop.f32.mrb[0].mxu0
        %v2142 = vadd.f32 %v2069, %v2141
        %2143 = vmatprep.mubr.bf16.mxu0 0
        %2144 = vmatmul.mubr.bf16.gmra.mrb[0].mxu0 %v1032
        %v2145 = vpop.f32.mrb[0].mxu0
        %v2146 = vadd.f32 %v2073, %v2145
        %v2147 = vpop.f32.mrb[0].mxu0
        %v2148 = vadd.f32 %v2075, %v2147
        %v2149 = vpop.f32.mrb[0].mxu0
        %v2150 = vadd.f32 %v2077, %v2149
        %v2151 = vpop.f32.mrb[0].mxu0
        %v2152 = vadd.f32 %v2079, %v2151
        %2153 = vdwg.mxu0
        %v2154 = vmax.f32 %v2116, 0.0
        %v2155 = vmax.f32 %v2118, 0.0
        %v2156 = vmax.f32 %v2120, 0.0
        %v2157 = vmax.f32 %v2122, 0.0
        %v2158 = vmax.f32 %v2126, 0.0
        %v2159 = vmax.f32 %v2128, 0.0
        %v2160 = vmax.f32 %v2130, 0.0
        %v2161 = vmax.f32 %v2132, 0.0
        %v2162 = vmax.f32 %v2136, 0.0
        %v2163 = vmax.f32 %v2138, 0.0
        %v2164 = vmax.f32 %v2140, 0.0
        %v2165 = vmax.f32 %v2142, 0.0
        %v2166 = vmax.f32 %v2146, 0.0
        %v2167 = vmax.f32 %v2148, 0.0
        %v2168 = vmax.f32 %v2150, 0.0
        %v2169 = vmax.f32 %v2152, 0.0
        %2170 = vst [vmem:[#allocation3] sm:$0xff] 0.0
        %2171 = vst [vmem:[#allocation3 + $0x8] sm:$0xff] 0.0
        %2172 = vst [vmem:[#allocation3 + $0x10] sm:$0x3] 0.0
        %2173 = vst [vmem:[#allocation3 + $0x18] sm:$0x3] 0.0
        %s2174 = scalar_lea.vmem [#allocation3], 288
        %2175 = vst [vmem:[%s2174] sm:$0xff] 0.0
        %2176 = vst [vmem:[%s2174 + $0x8] sm:$0xff] 0.0
        %2177 = vst [vmem:[%s2174 + $0x10] sm:$0x3] 0.0
        %2178 = vst [vmem:[%s2174 + $0x18] sm:$0x3] 0.0
        %s2179 = scalar_lea.vmem [#allocation3], 32
        %v2180 = vlaneseq
        %vm2181 = vcmp.ge.s32.totalorder %v2180, 0
        %vm2182 = vcmp.lt.s32.totalorder %v2180, 256
        %vm2183 = vmand %vm2181, %vm2182
        %2184 = vst.msk [vmem:[%s2179] ss:$8 sm:$0x3] %vm2183, 0.0
        %2185 = vst.msk [vmem:[%s2179] ss:$8 sm:$0x0] %vm2183, 0.0
        %s2186 = scalar_lea.vmem %s2179, 32 [#allocation3]
        %2187 = vst.msk [vmem:[%s2186] ss:$8 sm:$0x3] %vm2183, 0.0
        %2188 = vst.msk [vmem:[%s2186] ss:$8 sm:$0x0] %vm2183, 0.0
        %s2189 = scalar_lea.vmem %s2179, 64 [#allocation3]
        %2190 = vst.msk [vmem:[%s2189] ss:$8 sm:$0x3] %vm2183, 0.0
        %2191 = vst.msk [vmem:[%s2189] ss:$8 sm:$0x0] %vm2183, 0.0
        %s2192 = scalar_lea.vmem %s2179, 96 [#allocation3]
        %2193 = vst.msk [vmem:[%s2192] ss:$8 sm:$0x3] %vm2183, 0.0
        %2194 = vst.msk [vmem:[%s2192] ss:$8 sm:$0x0] %vm2183, 0.0
        %s2195 = scalar_lea.vmem %s2179, 128 [#allocation3]
        %2196 = vst.msk [vmem:[%s2195] ss:$8 sm:$0x3] %vm2183, 0.0
        %2197 = vst.msk [vmem:[%s2195] ss:$8 sm:$0x0] %vm2183, 0.0
        %s2198 = scalar_lea.vmem %s2179, 160 [#allocation3]
        %2199 = vst.msk [vmem:[%s2198] ss:$8 sm:$0x3] %vm2183, 0.0
        %2200 = vst.msk [vmem:[%s2198] ss:$8 sm:$0x0] %vm2183, 0.0
        %s2201 = scalar_lea.vmem %s2179, 192 [#allocation3]
        %2202 = vst.msk [vmem:[%s2201] ss:$8 sm:$0x3] %vm2183, 0.0
        %2203 = vst.msk [vmem:[%s2201] ss:$8 sm:$0x0] %vm2183, 0.0
        %s2204 = scalar_lea.vmem %s2179, 224 [#allocation3]
        %2205 = vst.msk [vmem:[%s2204] ss:$8 sm:$0x3] %vm2183, 0.0
        %2206 = vst.msk [vmem:[%s2204] ss:$8 sm:$0x0] %vm2183, 0.0
        %s2207 = scalar_lea.vmem %s2179, 17 [#allocation3]
        %2208 = vst.msk [vmem:[%s2207] ss:$8 sm:$0x3] %vm2183, 0.0
        %2209 = vst.msk [vmem:[%s2207] ss:$8 sm:$0x0] %vm2183, 0.0
        %s2210 = scalar_lea.vmem %s2179, 49 [#allocation3]
        %2211 = vst.msk [vmem:[%s2210] ss:$8 sm:$0x3] %vm2183, 0.0
        %2212 = vst.msk [vmem:[%s2210] ss:$8 sm:$0x0] %vm2183, 0.0
        %s2213 = scalar_lea.vmem %s2179, 81 [#allocation3]
        %2214 = vst.msk [vmem:[%s2213] ss:$8 sm:$0x3] %vm2183, 0.0
        %2215 = vst.msk [vmem:[%s2213] ss:$8 sm:$0x0] %vm2183, 0.0
        %s2216 = scalar_lea.vmem %s2179, 113 [#allocation3]
        %2217 = vst.msk [vmem:[%s2216] ss:$8 sm:$0x3] %vm2183, 0.0
        %2218 = vst.msk [vmem:[%s2216] ss:$8 sm:$0x0] %vm2183, 0.0
        %s2219 = scalar_lea.vmem %s2179, 145 [#allocation3]
        %2220 = vst.msk [vmem:[%s2219] ss:$8 sm:$0x3] %vm2183, 0.0
        %2221 = vst.msk [vmem:[%s2219] ss:$8 sm:$0x0] %vm2183, 0.0
        %s2222 = scalar_lea.vmem %s2179, 177 [#allocation3]
        %2223 = vst.msk [vmem:[%s2222] ss:$8 sm:$0x3] %vm2183, 0.0
        %2224 = vst.msk [vmem:[%s2222] ss:$8 sm:$0x0] %vm2183, 0.0
        %s2225 = scalar_lea.vmem %s2179, 209 [#allocation3]
        %2226 = vst.msk [vmem:[%s2225] ss:$8 sm:$0x3] %vm2183, 0.0
        %2227 = vst.msk [vmem:[%s2225] ss:$8 sm:$0x0] %vm2183, 0.0
        %s2228 = scalar_lea.vmem %s2179, 241 [#allocation3]
        %2229 = vst.msk [vmem:[%s2228] ss:$8 sm:$0x3] %vm2183, 0.0
        %2230 = vst.msk [vmem:[%s2228] ss:$8 sm:$0x0] %vm2183, 0.0
        %v2247 = vrot.slane %v2154, 7
        %v2248 = vrot.slane %v2155, 7
        %v2249 = vrot.slane %v2156, 7
        %v2250 = vrot.slane %v2157, 7
        %v2251 = vrot.slane %v2158, 7
        %v2252 = vrot.slane %v2159, 7
        %v2253 = vrot.slane %v2160, 7
        %v2254 = vrot.slane %v2161, 7
        %v2255 = vrot.slane %v2162, 7
        %v2256 = vrot.slane %v2163, 7
        %v2257 = vrot.slane %v2164, 7
        %v2258 = vrot.slane %v2165, 7
        %v2259 = vrot.slane %v2166, 7
        %v2260 = vrot.slane %v2167, 7
        %v2261 = vrot.slane %v2168, 7
        %v2262 = vrot.slane %v2169, 7
        %2279 = vst [vmem:[%s2179] sm:$0xfe] %v2247
        %2280 = vst [vmem:[%s2179 + $0x8] sm:$0xfe] %v2248
        %2281 = vst [vmem:[%s2179 + $0x10] sm:$0x1] %v2247
        %2282 = vst [vmem:[%s2179 + $0x18] sm:$0x1] %v2248
        %2283 = vst [vmem:[%s2179 + $0x20] sm:$0xfe] %v2249
        %2284 = vst [vmem:[%s2179 + $0x28] sm:$0xfe] %v2250
        %2285 = vst [vmem:[%s2179 + $0x30] sm:$0x1] %v2249
        %2286 = vst [vmem:[%s2179 + $0x38] sm:$0x1] %v2250
        %2287 = vst [vmem:[%s2179 + $0x40] sm:$0xfe] %v2251
        %2288 = vst [vmem:[%s2179 + $0x48] sm:$0xfe] %v2252
        %2289 = vst [vmem:[%s2179 + $0x50] sm:$0x1] %v2251
        %2290 = vst [vmem:[%s2179 + $0x58] sm:$0x1] %v2252
        %2291 = vst [vmem:[%s2179 + $0x60] sm:$0xfe] %v2253
        %2292 = vst [vmem:[%s2179 + $0x68] sm:$0xfe] %v2254
        %2293 = vst [vmem:[%s2179 + $0x70] sm:$0x1] %v2253
        %2294 = vst [vmem:[%s2179 + $0x78] sm:$0x1] %v2254
        %2295 = vst [vmem:[%s2179 + $0x80] sm:$0xfe] %v2255
        %2296 = vst [vmem:[%s2179 + $0x88] sm:$0xfe] %v2256
        %2297 = vst [vmem:[%s2179 + $0x90] sm:$0x1] %v2255
        %2298 = vst [vmem:[%s2179 + $0x98] sm:$0x1] %v2256
        %2299 = vst [vmem:[%s2179 + $0xa0] sm:$0xfe] %v2257
        %2300 = vst [vmem:[%s2179 + $0xa8] sm:$0xfe] %v2258
        %2301 = vst [vmem:[%s2179 + $0xb0] sm:$0x1] %v2257
        %2302 = vst [vmem:[%s2179 + $0xb8] sm:$0x1] %v2258
        %2303 = vst [vmem:[%s2179 + $0xc0] sm:$0xfe] %v2259
        %2304 = vst [vmem:[%s2179 + $0xc8] sm:$0xfe] %v2260
        %2305 = vst [vmem:[%s2179 + $0xd0] sm:$0x1] %v2259
        %2306 = vst [vmem:[%s2179 + $0xd8] sm:$0x1] %v2260
        %2307 = vst [vmem:[%s2179 + $0xe0] sm:$0xfe] %v2261
        %2308 = vst [vmem:[%s2179 + $0xe8] sm:$0xfe] %v2262
        %2309 = vst [vmem:[%s2179 + $0xf0] sm:$0x1] %v2261
        %2310 = vst [vmem:[%s2179 + $0xf8] sm:$0x1] %v2262
        %v2311 = vld [vmem:[#allocation3] sm:$0xff]
        %v2312 = vld [vmem:[#allocation3 + $0x8] sm:$0xff]
        %v2313 = vld [vmem:[#allocation3 + $0x20] sm:$0xff]
        %v2314 = vld [vmem:[#allocation3 + $0x28] sm:$0xff]
        %v2315 = vld [vmem:[#allocation3 + $0x40] sm:$0xff]
        %v2316 = vld [vmem:[#allocation3 + $0x48] sm:$0xff]
        %v2317 = vld [vmem:[#allocation3 + $0x60] sm:$0xff]
        %v2318 = vld [vmem:[#allocation3 + $0x68] sm:$0xff]
        %v2319 = vld [vmem:[#allocation3 + $0x80] sm:$0xff]
        %v2320 = vld [vmem:[#allocation3 + $0x88] sm:$0xff]
        %v2321 = vld [vmem:[#allocation3 + $0xa0] sm:$0xff]
        %v2322 = vld [vmem:[#allocation3 + $0xa8] sm:$0xff]
        %v2323 = vld [vmem:[#allocation3 + $0xc0] sm:$0xff]
        %v2324 = vld [vmem:[#allocation3 + $0xc8] sm:$0xff]
        %v2325 = vld [vmem:[#allocation3 + $0xe0] sm:$0xff]
        %v2326 = vld [vmem:[#allocation3 + $0xe8] sm:$0xff]
        %v2327 = vpack.c.bf16 %v2311, %v2311
        %v2328 = vpack.c.bf16 %v2312, %v2312
        %v2329 = vpack.c.bf16 %v2313, %v2313
        %v2330 = vpack.c.bf16 %v2314, %v2314
        %v2331 = vpack.c.bf16 %v2315, %v2315
        %v2332 = vpack.c.bf16 %v2316, %v2316
        %v2333 = vpack.c.bf16 %v2317, %v2317
        %v2334 = vpack.c.bf16 %v2318, %v2318
        %v2335 = vpack.c.bf16 %v2319, %v2319
        %v2336 = vpack.c.bf16 %v2320, %v2320
        %v2337 = vpack.c.bf16 %v2321, %v2321
        %v2338 = vpack.c.bf16 %v2322, %v2322
        %v2339 = vpack.c.bf16 %v2323, %v2323
        %v2340 = vpack.c.bf16 %v2324, %v2324
        %v2341 = vpack.c.bf16 %v2325, %v2325
        %v2342 = vpack.c.bf16 %v2326, %v2326
        %v2343 = vld [vmem:[#allocation3] sm:$0xfe]
        %v2344 = vld [vmem:[#allocation3 + $0x8] sm:$0xfe]
        %v2345 = vld [vmem:[#allocation3 + $0x10] sm:$0x1]
        %v2346 = vld [vmem:[#allocation3 + $0x18] sm:$0x1]
        %v2347 = vld [vmem:[#allocation3 + $0x20] sm:$0xfe]
        %v2348 = vld [vmem:[#allocation3 + $0x28] sm:$0xfe]
        %v2349 = vld [vmem:[#allocation3 + $0x30] sm:$0x1]
        %v2350 = vld [vmem:[#allocation3 + $0x38] sm:$0x1]
        %v2351 = vld [vmem:[#allocation3 + $0x40] sm:$0xfe]
        %v2352 = vld [vmem:[#allocation3 + $0x48] sm:$0xfe]
        %v2353 = vld [vmem:[#allocation3 + $0x50] sm:$0x1]
        %v2354 = vld [vmem:[#allocation3 + $0x58] sm:$0x1]
        %v2355 = vld [vmem:[#allocation3 + $0x60] sm:$0xfe]
        %v2356 = vld [vmem:[#allocation3 + $0x68] sm:$0xfe]
        %v2357 = vld [vmem:[#allocation3 + $0x70] sm:$0x1]
        %v2358 = vld [vmem:[#allocation3 + $0x78] sm:$0x1]
        %v2359 = vld [vmem:[#allocation3 + $0x80] sm:$0xfe]
        %v2360 = vld [vmem:[#allocation3 + $0x88] sm:$0xfe]
        %v2361 = vld [vmem:[#allocation3 + $0x90] sm:$0x1]
        %v2362 = vld [vmem:[#allocation3 + $0x98] sm:$0x1]
        %v2363 = vld [vmem:[#allocation3 + $0xa0] sm:$0xfe]
        %v2364 = vld [vmem:[#allocation3 + $0xa8] sm:$0xfe]
        %v2365 = vld [vmem:[#allocation3 + $0xb0] sm:$0x1]
        %v2366 = vld [vmem:[#allocation3 + $0xb8] sm:$0x1]
        %v2367 = vld [vmem:[#allocation3 + $0xc0] sm:$0xfe]
        %v2368 = vld [vmem:[#allocation3 + $0xc8] sm:$0xfe]
        %v2369 = vld [vmem:[#allocation3 + $0xd0] sm:$0x1]
        %v2370 = vld [vmem:[#allocation3 + $0xd8] sm:$0x1]
        %v2371 = vld [vmem:[#allocation3 + $0xe0] sm:$0xfe]
        %v2372 = vld [vmem:[#allocation3 + $0xe8] sm:$0xfe]
        %v2373 = vld [vmem:[#allocation3 + $0xf0] sm:$0x1]
        %v2374 = vld [vmem:[#allocation3 + $0xf8] sm:$0x1]
        %v2375 = vpack.c.bf16 %v2345, %v2343
        %v2376 = vpack.c.bf16 %v2346, %v2344
        %v2377 = vpack.c.bf16 %v2349, %v2347
        %v2378 = vpack.c.bf16 %v2350, %v2348
        %v2379 = vpack.c.bf16 %v2353, %v2351
        %v2380 = vpack.c.bf16 %v2354, %v2352
        %v2381 = vpack.c.bf16 %v2357, %v2355
        %v2382 = vpack.c.bf16 %v2358, %v2356
        %v2383 = vpack.c.bf16 %v2361, %v2359
        %v2384 = vpack.c.bf16 %v2362, %v2360
        %v2385 = vpack.c.bf16 %v2365, %v2363
        %v2386 = vpack.c.bf16 %v2366, %v2364
        %v2387 = vpack.c.bf16 %v2369, %v2367
        %v2388 = vpack.c.bf16 %v2370, %v2368
        %v2389 = vpack.c.bf16 %v2373, %v2371
        %v2390 = vpack.c.bf16 %v2374, %v2372
        %v2391 = vld [vmem:[#allocation3] sm:$0xfc]
        %v2392 = vld [vmem:[#allocation3 + $0x8] sm:$0xfc]
        %v2393 = vld [vmem:[#allocation3 + $0x10] sm:$0x3]
        %v2394 = vld [vmem:[#allocation3 + $0x18] sm:$0x3]
        %v2395 = vld [vmem:[#allocation3 + $0x20] sm:$0xfc]
        %v2396 = vld [vmem:[#allocation3 + $0x28] sm:$0xfc]
        %v2397 = vld [vmem:[#allocation3 + $0x30] sm:$0x3]
        %v2398 = vld [vmem:[#allocation3 + $0x38] sm:$0x3]
        %v2399 = vld [vmem:[#allocation3 + $0x40] sm:$0xfc]
        %v2400 = vld [vmem:[#allocation3 + $0x48] sm:$0xfc]
        %v2401 = vld [vmem:[#allocation3 + $0x50] sm:$0x3]
        %v2402 = vld [vmem:[#allocation3 + $0x58] sm:$0x3]
        %v2403 = vld [vmem:[#allocation3 + $0x60] sm:$0xfc]
        %v2404 = vld [vmem:[#allocation3 + $0x68] sm:$0xfc]
        %v2405 = vld [vmem:[#allocation3 + $0x70] sm:$0x3]
        %v2406 = vld [vmem:[#allocation3 + $0x78] sm:$0x3]
        %v2407 = vld [vmem:[#allocation3 + $0x80] sm:$0xfc]
        %v2408 = vld [vmem:[#allocation3 + $0x88] sm:$0xfc]
        %v2409 = vld [vmem:[#allocation3 + $0x90] sm:$0x3]
        %v2410 = vld [vmem:[#allocation3 + $0x98] sm:$0x3]
        %v2411 = vld [vmem:[#allocation3 + $0xa0] sm:$0xfc]
        %v2412 = vld [vmem:[#allocation3 + $0xa8] sm:$0xfc]
        %v2413 = vld [vmem:[#allocation3 + $0xb0] sm:$0x3]
        %v2414 = vld [vmem:[#allocation3 + $0xb8] sm:$0x3]
        %v2415 = vld [vmem:[#allocation3 + $0xc0] sm:$0xfc]
        %v2416 = vld [vmem:[#allocation3 + $0xc8] sm:$0xfc]
        %v2417 = vld [vmem:[#allocation3 + $0xd0] sm:$0x3]
        %v2418 = vld [vmem:[#allocation3 + $0xd8] sm:$0x3]
        %v2419 = vld [vmem:[#allocation3 + $0xe0] sm:$0xfc]
        %v2420 = vld [vmem:[#allocation3 + $0xe8] sm:$0xfc]
        %v2421 = vld [vmem:[#allocation3 + $0xf0] sm:$0x3]
        %v2422 = vld [vmem:[#allocation3 + $0xf8] sm:$0x3]
        %v2423 = vpack.c.bf16 %v2393, %v2391
        %v2424 = vpack.c.bf16 %v2394, %v2392
        %v2425 = vpack.c.bf16 %v2397, %v2395
        %v2426 = vpack.c.bf16 %v2398, %v2396
        %v2427 = vpack.c.bf16 %v2401, %v2399
        %v2428 = vpack.c.bf16 %v2402, %v2400
        %v2429 = vpack.c.bf16 %v2405, %v2403
        %v2430 = vpack.c.bf16 %v2406, %v2404
        %v2431 = vpack.c.bf16 %v2409, %v2407
        %v2432 = vpack.c.bf16 %v2410, %v2408
        %v2433 = vpack.c.bf16 %v2413, %v2411
        %v2434 = vpack.c.bf16 %v2414, %v2412
        %v2435 = vpack.c.bf16 %v2417, %v2415
        %v2436 = vpack.c.bf16 %v2418, %v2416
        %v2437 = vpack.c.bf16 %v2421, %v2419
        %v2438 = vpack.c.bf16 %v2422, %v2420
        %v2439 = vld [vmem:[%s2179] sm:$0xff]
        %v2440 = vld [vmem:[%s2179 + $0x8] sm:$0xff]
        %v2441 = vld [vmem:[%s2179 + $0x20] sm:$0xff]
        %v2442 = vld [vmem:[%s2179 + $0x28] sm:$0xff]
        %v2443 = vld [vmem:[%s2179 + $0x40] sm:$0xff]
        %v2444 = vld [vmem:[%s2179 + $0x48] sm:$0xff]
        %v2445 = vld [vmem:[%s2179 + $0x60] sm:$0xff]
        %v2446 = vld [vmem:[%s2179 + $0x68] sm:$0xff]
        %v2447 = vld [vmem:[%s2179 + $0x80] sm:$0xff]
        %v2448 = vld [vmem:[%s2179 + $0x88] sm:$0xff]
        %v2449 = vld [vmem:[%s2179 + $0xa0] sm:$0xff]
        %v2450 = vld [vmem:[%s2179 + $0xa8] sm:$0xff]
        %v2451 = vld [vmem:[%s2179 + $0xc0] sm:$0xff]
        %v2452 = vld [vmem:[%s2179 + $0xc8] sm:$0xff]
        %v2453 = vld [vmem:[%s2179 + $0xe0] sm:$0xff]
        %v2454 = vld [vmem:[%s2179 + $0xe8] sm:$0xff]
        %v2455 = vpack.c.bf16 %v2439, %v2439
        %v2456 = vpack.c.bf16 %v2440, %v2440
        %v2457 = vpack.c.bf16 %v2441, %v2441
        %v2458 = vpack.c.bf16 %v2442, %v2442
        %v2459 = vpack.c.bf16 %v2443, %v2443
        %v2460 = vpack.c.bf16 %v2444, %v2444
        %v2461 = vpack.c.bf16 %v2445, %v2445
        %v2462 = vpack.c.bf16 %v2446, %v2446
        %v2463 = vpack.c.bf16 %v2447, %v2447
        %v2464 = vpack.c.bf16 %v2448, %v2448
        %v2465 = vpack.c.bf16 %v2449, %v2449
        %v2466 = vpack.c.bf16 %v2450, %v2450
        %v2467 = vpack.c.bf16 %v2451, %v2451
        %v2468 = vpack.c.bf16 %v2452, %v2452
        %v2469 = vpack.c.bf16 %v2453, %v2453
        %v2470 = vpack.c.bf16 %v2454, %v2454
        %v2471 = vld [vmem:[%s2179] sm:$0xfe]
        %v2472 = vld [vmem:[%s2179 + $0x8] sm:$0xfe]
        %v2473 = vld [vmem:[%s2179 + $0x10] sm:$0x1]
        %v2474 = vld [vmem:[%s2179 + $0x18] sm:$0x1]
        %v2475 = vld [vmem:[%s2179 + $0x20] sm:$0xfe]
        %v2476 = vld [vmem:[%s2179 + $0x28] sm:$0xfe]
        %v2477 = vld [vmem:[%s2179 + $0x30] sm:$0x1]
        %v2478 = vld [vmem:[%s2179 + $0x38] sm:$0x1]
        %v2479 = vld [vmem:[%s2179 + $0x40] sm:$0xfe]
        %v2480 = vld [vmem:[%s2179 + $0x48] sm:$0xfe]
        %v2481 = vld [vmem:[%s2179 + $0x50] sm:$0x1]
        %v2482 = vld [vmem:[%s2179 + $0x58] sm:$0x1]
        %v2483 = vld [vmem:[%s2179 + $0x60] sm:$0xfe]
        %v2484 = vld [vmem:[%s2179 + $0x68] sm:$0xfe]
        %v2485 = vld [vmem:[%s2179 + $0x70] sm:$0x1]
        %v2486 = vld [vmem:[%s2179 + $0x78] sm:$0x1]
        %v2487 = vld [vmem:[%s2179 + $0x80] sm:$0xfe]
        %v2488 = vld [vmem:[%s2179 + $0x88] sm:$0xfe]
        %v2489 = vld [vmem:[%s2179 + $0x90] sm:$0x1]
        %v2490 = vld [vmem:[%s2179 + $0x98] sm:$0x1]
        %v2491 = vld [vmem:[%s2179 + $0xa0] sm:$0xfe]
        %v2492 = vld [vmem:[%s2179 + $0xa8] sm:$0xfe]
        %v2493 = vld [vmem:[%s2179 + $0xb0] sm:$0x1]
        %v2494 = vld [vmem:[%s2179 + $0xb8] sm:$0x1]
        %v2495 = vld [vmem:[%s2179 + $0xc0] sm:$0xfe]
        %v2496 = vld [vmem:[%s2179 + $0xc8] sm:$0xfe]
        %v2497 = vld [vmem:[%s2179 + $0xd0] sm:$0x1]
        %v2498 = vld [vmem:[%s2179 + $0xd8] sm:$0x1]
        %v2499 = vld [vmem:[%s2179 + $0xe0] sm:$0xfe]
        %v2500 = vld [vmem:[%s2179 + $0xe8] sm:$0xfe]
        %v2501 = vld [vmem:[%s2179 + $0xf0] sm:$0x1]
        %v2502 = vld [vmem:[%s2179 + $0xf8] sm:$0x1]
        %v2503 = vpack.c.bf16 %v2473, %v2471
        %v2504 = vpack.c.bf16 %v2474, %v2472
        %v2505 = vpack.c.bf16 %v2477, %v2475
        %v2506 = vpack.c.bf16 %v2478, %v2476
        %v2507 = vpack.c.bf16 %v2481, %v2479
        %v2508 = vpack.c.bf16 %v2482, %v2480
        %v2509 = vpack.c.bf16 %v2485, %v2483
        %v2510 = vpack.c.bf16 %v2486, %v2484
        %v2511 = vpack.c.bf16 %v2489, %v2487
        %v2512 = vpack.c.bf16 %v2490, %v2488
        %v2513 = vpack.c.bf16 %v2493, %v2491
        %v2514 = vpack.c.bf16 %v2494, %v2492
        %v2515 = vpack.c.bf16 %v2497, %v2495
        %v2516 = vpack.c.bf16 %v2498, %v2496
        %v2517 = vpack.c.bf16 %v2501, %v2499
        %v2518 = vpack.c.bf16 %v2502, %v2500
        %v2519 = vld [vmem:[%s2179] sm:$0xfc]
        %v2520 = vld [vmem:[%s2179 + $0x8] sm:$0xfc]
        %v2521 = vld [vmem:[%s2179 + $0x10] sm:$0x3]
        %v2522 = vld [vmem:[%s2179 + $0x18] sm:$0x3]
        %v2523 = vld [vmem:[%s2179 + $0x20] sm:$0xfc]
        %v2524 = vld [vmem:[%s2179 + $0x28] sm:$0xfc]
        %v2525 = vld [vmem:[%s2179 + $0x30] sm:$0x3]
        %v2526 = vld [vmem:[%s2179 + $0x38] sm:$0x3]
        %v2527 = vld [vmem:[%s2179 + $0x40] sm:$0xfc]
        %v2528 = vld [vmem:[%s2179 + $0x48] sm:$0xfc]
        %v2529 = vld [vmem:[%s2179 + $0x50] sm:$0x3]
        %v2530 = vld [vmem:[%s2179 + $0x58] sm:$0x3]
        %v2531 = vld [vmem:[%s2179 + $0x60] sm:$0xfc]
        %v2532 = vld [vmem:[%s2179 + $0x68] sm:$0xfc]
        %v2533 = vld [vmem:[%s2179 + $0x70] sm:$0x3]
        %v2534 = vld [vmem:[%s2179 + $0x78] sm:$0x3]
        %v2535 = vld [vmem:[%s2179 + $0x80] sm:$0xfc]
        %v2536 = vld [vmem:[%s2179 + $0x88] sm:$0xfc]
        %v2537 = vld [vmem:[%s2179 + $0x90] sm:$0x3]
        %v2538 = vld [vmem:[%s2179 + $0x98] sm:$0x3]
        %v2539 = vld [vmem:[%s2179 + $0xa0] sm:$0xfc]
        %v2540 = vld [vmem:[%s2179 + $0xa8] sm:$0xfc]
        %v2541 = vld [vmem:[%s2179 + $0xb0] sm:$0x3]
        %v2542 = vld [vmem:[%s2179 + $0xb8] sm:$0x3]
        %v2543 = vld [vmem:[%s2179 + $0xc0] sm:$0xfc]
        %v2544 = vld [vmem:[%s2179 + $0xc8] sm:$0xfc]
        %v2545 = vld [vmem:[%s2179 + $0xd0] sm:$0x3]
        %v2546 = vld [vmem:[%s2179 + $0xd8] sm:$0x3]
        %v2547 = vld [vmem:[%s2179 + $0xe0] sm:$0xfc]
        %v2548 = vld [vmem:[%s2179 + $0xe8] sm:$0xfc]
        %v2549 = vld [vmem:[%s2179 + $0xf0] sm:$0x3]
        %v2550 = vld [vmem:[%s2179 + $0xf8] sm:$0x3]
        %v2551 = vpack.c.bf16 %v2521, %v2519
        %v2552 = vpack.c.bf16 %v2522, %v2520
        %v2553 = vpack.c.bf16 %v2525, %v2523
        %v2554 = vpack.c.bf16 %v2526, %v2524
        %v2555 = vpack.c.bf16 %v2529, %v2527
        %v2556 = vpack.c.bf16 %v2530, %v2528
        %v2557 = vpack.c.bf16 %v2533, %v2531
        %v2558 = vpack.c.bf16 %v2534, %v2532
        %v2559 = vpack.c.bf16 %v2537, %v2535
        %v2560 = vpack.c.bf16 %v2538, %v2536
        %v2561 = vpack.c.bf16 %v2541, %v2539
        %v2562 = vpack.c.bf16 %v2542, %v2540
        %v2563 = vpack.c.bf16 %v2545, %v2543
        %v2564 = vpack.c.bf16 %v2546, %v2544
        %v2565 = vpack.c.bf16 %v2549, %v2547
        %v2566 = vpack.c.bf16 %v2550, %v2548
        %s2567 = scalar_lea.vmem [#allocation3], 64
        %v2568 = vld [vmem:[%s2567] sm:$0xff]
        %v2569 = vld [vmem:[%s2567 + $0x8] sm:$0xff]
        %v2570 = vld [vmem:[%s2567 + $0x20] sm:$0xff]
        %v2571 = vld [vmem:[%s2567 + $0x28] sm:$0xff]
        %v2572 = vld [vmem:[%s2567 + $0x40] sm:$0xff]
        %v2573 = vld [vmem:[%s2567 + $0x48] sm:$0xff]
        %v2574 = vld [vmem:[%s2567 + $0x60] sm:$0xff]
        %v2575 = vld [vmem:[%s2567 + $0x68] sm:$0xff]
        %v2576 = vld [vmem:[%s2567 + $0x80] sm:$0xff]
        %v2577 = vld [vmem:[%s2567 + $0x88] sm:$0xff]
        %v2578 = vld [vmem:[%s2567 + $0xa0] sm:$0xff]
        %v2579 = vld [vmem:[%s2567 + $0xa8] sm:$0xff]
        %v2580 = vld [vmem:[%s2567 + $0xc0] sm:$0xff]
        %v2581 = vld [vmem:[%s2567 + $0xc8] sm:$0xff]
        %v2582 = vld [vmem:[%s2567 + $0xe0] sm:$0xff]
        %v2583 = vld [vmem:[%s2567 + $0xe8] sm:$0xff]
        %v2584 = vpack.c.bf16 %v2568, %v2568
        %v2585 = vpack.c.bf16 %v2569, %v2569
        %v2586 = vpack.c.bf16 %v2570, %v2570
        %v2587 = vpack.c.bf16 %v2571, %v2571
        %v2588 = vpack.c.bf16 %v2572, %v2572
        %v2589 = vpack.c.bf16 %v2573, %v2573
        %v2590 = vpack.c.bf16 %v2574, %v2574
        %v2591 = vpack.c.bf16 %v2575, %v2575
        %v2592 = vpack.c.bf16 %v2576, %v2576
        %v2593 = vpack.c.bf16 %v2577, %v2577
        %v2594 = vpack.c.bf16 %v2578, %v2578
        %v2595 = vpack.c.bf16 %v2579, %v2579
        %v2596 = vpack.c.bf16 %v2580, %v2580
        %v2597 = vpack.c.bf16 %v2581, %v2581
        %v2598 = vpack.c.bf16 %v2582, %v2582
        %v2599 = vpack.c.bf16 %v2583, %v2583
        %v2600 = vld [vmem:[%s2567] sm:$0xfe]
        %v2601 = vld [vmem:[%s2567 + $0x8] sm:$0xfe]
        %v2602 = vld [vmem:[%s2567 + $0x10] sm:$0x1]
        %v2603 = vld [vmem:[%s2567 + $0x18] sm:$0x1]
        %v2604 = vld [vmem:[%s2567 + $0x20] sm:$0xfe]
        %v2605 = vld [vmem:[%s2567 + $0x28] sm:$0xfe]
        %v2606 = vld [vmem:[%s2567 + $0x30] sm:$0x1]
        %v2607 = vld [vmem:[%s2567 + $0x38] sm:$0x1]
        %v2608 = vld [vmem:[%s2567 + $0x40] sm:$0xfe]
        %v2609 = vld [vmem:[%s2567 + $0x48] sm:$0xfe]
        %v2610 = vld [vmem:[%s2567 + $0x50] sm:$0x1]
        %v2611 = vld [vmem:[%s2567 + $0x58] sm:$0x1]
        %v2612 = vld [vmem:[%s2567 + $0x60] sm:$0xfe]
        %v2613 = vld [vmem:[%s2567 + $0x68] sm:$0xfe]
        %v2614 = vld [vmem:[%s2567 + $0x70] sm:$0x1]
        %v2615 = vld [vmem:[%s2567 + $0x78] sm:$0x1]
        %v2616 = vld [vmem:[%s2567 + $0x80] sm:$0xfe]
        %v2617 = vld [vmem:[%s2567 + $0x88] sm:$0xfe]
        %v2618 = vld [vmem:[%s2567 + $0x90] sm:$0x1]
        %v2619 = vld [vmem:[%s2567 + $0x98] sm:$0x1]
        %v2620 = vld [vmem:[%s2567 + $0xa0] sm:$0xfe]
        %v2621 = vld [vmem:[%s2567 + $0xa8] sm:$0xfe]
        %v2622 = vld [vmem:[%s2567 + $0xb0] sm:$0x1]
        %v2623 = vld [vmem:[%s2567 + $0xb8] sm:$0x1]
        %v2624 = vld [vmem:[%s2567 + $0xc0] sm:$0xfe]
        %v2625 = vld [vmem:[%s2567 + $0xc8] sm:$0xfe]
        %v2626 = vld [vmem:[%s2567 + $0xd0] sm:$0x1]
        %v2627 = vld [vmem:[%s2567 + $0xd8] sm:$0x1]
        %v2628 = vld [vmem:[%s2567 + $0xe0] sm:$0xfe]
        %v2629 = vld [vmem:[%s2567 + $0xe8] sm:$0xfe]
        %v2630 = vld [vmem:[%s2567 + $0xf0] sm:$0x1]
        %v2631 = vld [vmem:[%s2567 + $0xf8] sm:$0x1]
        %v2632 = vpack.c.bf16 %v2602, %v2600
        %v2633 = vpack.c.bf16 %v2603, %v2601
        %v2634 = vpack.c.bf16 %v2606, %v2604
        %v2635 = vpack.c.bf16 %v2607, %v2605
        %v2636 = vpack.c.bf16 %v2610, %v2608
        %v2637 = vpack.c.bf16 %v2611, %v2609
        %v2638 = vpack.c.bf16 %v2614, %v2612
        %v2639 = vpack.c.bf16 %v2615, %v2613
        %v2640 = vpack.c.bf16 %v2618, %v2616
        %v2641 = vpack.c.bf16 %v2619, %v2617
        %v2642 = vpack.c.bf16 %v2622, %v2620
        %v2643 = vpack.c.bf16 %v2623, %v2621
        %v2644 = vpack.c.bf16 %v2626, %v2624
        %v2645 = vpack.c.bf16 %v2627, %v2625
        %v2646 = vpack.c.bf16 %v2630, %v2628
        %v2647 = vpack.c.bf16 %v2631, %v2629
        %v2648 = vld [vmem:[%s2567] sm:$0xfc]
        %v2649 = vld [vmem:[%s2567 + $0x8] sm:$0xfc]
        %v2650 = vld [vmem:[%s2567 + $0x10] sm:$0x3]
        %v2651 = vld [vmem:[%s2567 + $0x18] sm:$0x3]
        %v2652 = vld [vmem:[%s2567 + $0x20] sm:$0xfc]
        %v2653 = vld [vmem:[%s2567 + $0x28] sm:$0xfc]
        %v2654 = vld [vmem:[%s2567 + $0x30] sm:$0x3]
        %v2655 = vld [vmem:[%s2567 + $0x38] sm:$0x3]
        %v2656 = vld [vmem:[%s2567 + $0x40] sm:$0xfc]
        %v2657 = vld [vmem:[%s2567 + $0x48] sm:$0xfc]
        %v2658 = vld [vmem:[%s2567 + $0x50] sm:$0x3]
        %v2659 = vld [vmem:[%s2567 + $0x58] sm:$0x3]
        %v2660 = vld [vmem:[%s2567 + $0x60] sm:$0xfc]
        %v2661 = vld [vmem:[%s2567 + $0x68] sm:$0xfc]
        %v2662 = vld [vmem:[%s2567 + $0x70] sm:$0x3]
        %v2663 = vld [vmem:[%s2567 + $0x78] sm:$0x3]
        %v2664 = vld [vmem:[%s2567 + $0x80] sm:$0xfc]
        %v2665 = vld [vmem:[%s2567 + $0x88] sm:$0xfc]
        %v2666 = vld [vmem:[%s2567 + $0x90] sm:$0x3]
        %v2667 = vld [vmem:[%s2567 + $0x98] sm:$0x3]
        %v2668 = vld [vmem:[%s2567 + $0xa0] sm:$0xfc]
        %v2669 = vld [vmem:[%s2567 + $0xa8] sm:$0xfc]
        %v2670 = vld [vmem:[%s2567 + $0xb0] sm:$0x3]
        %v2671 = vld [vmem:[%s2567 + $0xb8] sm:$0x3]
        %v2672 = vld [vmem:[%s2567 + $0xc0] sm:$0xfc]
        %v2673 = vld [vmem:[%s2567 + $0xc8] sm:$0xfc]
        %v2674 = vld [vmem:[%s2567 + $0xd0] sm:$0x3]
        %v2675 = vld [vmem:[%s2567 + $0xd8] sm:$0x3]
        %v2676 = vld [vmem:[%s2567 + $0xe0] sm:$0xfc]
        %v2677 = vld [vmem:[%s2567 + $0xe8] sm:$0xfc]
        %v2678 = vld [vmem:[%s2567 + $0xf0] sm:$0x3]
        %v2679 = vld [vmem:[%s2567 + $0xf8] sm:$0x3]
        %v2680 = vpack.c.bf16 %v2650, %v2648
        %v2681 = vpack.c.bf16 %v2651, %v2649
        %v2682 = vpack.c.bf16 %v2654, %v2652
        %v2683 = vpack.c.bf16 %v2655, %v2653
        %v2684 = vpack.c.bf16 %v2658, %v2656
        %v2685 = vpack.c.bf16 %v2659, %v2657
        %v2686 = vpack.c.bf16 %v2662, %v2660
        %v2687 = vpack.c.bf16 %v2663, %v2661
        %v2688 = vpack.c.bf16 %v2666, %v2664
        %v2689 = vpack.c.bf16 %v2667, %v2665
        %v2690 = vpack.c.bf16 %v2670, %v2668
        %v2691 = vpack.c.bf16 %v2671, %v2669
        %v2692 = vpack.c.bf16 %v2674, %v2672
        %v2693 = vpack.c.bf16 %v2675, %v2673
        %v2694 = vpack.c.bf16 %v2678, %v2676
        %v2695 = vpack.c.bf16 %v2679, %v2677
        %v2697 = vshrl.u32 %v2375, 16
        %v2699 = vshll.u32 %v2375, 16
        %v2701 = vrot.slane %v2699, 1
        %v2702 = vor.u32 %v2697, %v2701
        %v2704 = vshrl.u32 %v2376, 16
        %v2706 = vshll.u32 %v2376, 16
        %v2708 = vrot.slane %v2706, 1
        %v2709 = vor.u32 %v2704, %v2708
        %v2711 = vshrl.u32 %v2377, 16
        %v2713 = vshll.u32 %v2377, 16
        %v2715 = vrot.slane %v2713, 1
        %v2716 = vor.u32 %v2711, %v2715
        %v2718 = vshrl.u32 %v2378, 16
        %v2720 = vshll.u32 %v2378, 16
        %v2722 = vrot.slane %v2720, 1
        %v2723 = vor.u32 %v2718, %v2722
        %v2725 = vshrl.u32 %v2379, 16
        %v2727 = vshll.u32 %v2379, 16
        %v2729 = vrot.slane %v2727, 1
        %v2730 = vor.u32 %v2725, %v2729
        %v2732 = vshrl.u32 %v2380, 16
        %v2734 = vshll.u32 %v2380, 16
        %v2736 = vrot.slane %v2734, 1
        %v2737 = vor.u32 %v2732, %v2736
        %v2739 = vshrl.u32 %v2381, 16
        %v2741 = vshll.u32 %v2381, 16
        %v2743 = vrot.slane %v2741, 1
        %v2744 = vor.u32 %v2739, %v2743
        %v2746 = vshrl.u32 %v2382, 16
        %v2748 = vshll.u32 %v2382, 16
        %v2750 = vrot.slane %v2748, 1
        %v2751 = vor.u32 %v2746, %v2750
        %v2753 = vshrl.u32 %v2383, 16
        %v2755 = vshll.u32 %v2383, 16
        %v2757 = vrot.slane %v2755, 1
        %v2758 = vor.u32 %v2753, %v2757
        %v2760 = vshrl.u32 %v2384, 16
        %v2762 = vshll.u32 %v2384, 16
        %v2764 = vrot.slane %v2762, 1
        %v2765 = vor.u32 %v2760, %v2764
        %v2767 = vshrl.u32 %v2385, 16
        %v2769 = vshll.u32 %v2385, 16
        %v2771 = vrot.slane %v2769, 1
        %v2772 = vor.u32 %v2767, %v2771
        %v2774 = vshrl.u32 %v2386, 16
        %v2776 = vshll.u32 %v2386, 16
        %v2778 = vrot.slane %v2776, 1
        %v2779 = vor.u32 %v2774, %v2778
        %v2781 = vshrl.u32 %v2387, 16
        %v2783 = vshll.u32 %v2387, 16
        %v2785 = vrot.slane %v2783, 1
        %v2786 = vor.u32 %v2781, %v2785
        %v2788 = vshrl.u32 %v2388, 16
        %v2790 = vshll.u32 %v2388, 16
        %v2792 = vrot.slane %v2790, 1
        %v2793 = vor.u32 %v2788, %v2792
        %v2795 = vshrl.u32 %v2389, 16
        %v2797 = vshll.u32 %v2389, 16
        %v2799 = vrot.slane %v2797, 1
        %v2800 = vor.u32 %v2795, %v2799
        %v2802 = vshrl.u32 %v2390, 16
        %v2804 = vshll.u32 %v2390, 16
        %v2806 = vrot.slane %v2804, 1
        %v2807 = vor.u32 %v2802, %v2806
        %v2824 = vrot.slane %v2423, 1
        %v2825 = vrot.slane %v2424, 1
        %v2826 = vrot.slane %v2425, 1
        %v2827 = vrot.slane %v2426, 1
        %v2828 = vrot.slane %v2427, 1
        %v2829 = vrot.slane %v2428, 1
        %v2830 = vrot.slane %v2429, 1
        %v2831 = vrot.slane %v2430, 1
        %v2832 = vrot.slane %v2431, 1
        %v2833 = vrot.slane %v2432, 1
        %v2834 = vrot.slane %v2433, 1
        %v2835 = vrot.slane %v2434, 1
        %v2836 = vrot.slane %v2435, 1
        %v2837 = vrot.slane %v2436, 1
        %v2838 = vrot.slane %v2437, 1
        %v2839 = vrot.slane %v2438, 1
        %v2841 = vshrl.u32 %v2503, 16
        %v2843 = vshll.u32 %v2503, 16
        %v2845 = vrot.slane %v2843, 1
        %v2846 = vor.u32 %v2841, %v2845
        %v2848 = vshrl.u32 %v2504, 16
        %v2850 = vshll.u32 %v2504, 16
        %v2852 = vrot.slane %v2850, 1
        %v2853 = vor.u32 %v2848, %v2852
        %v2855 = vshrl.u32 %v2505, 16
        %v2857 = vshll.u32 %v2505, 16
        %v2859 = vrot.slane %v2857, 1
        %v2860 = vor.u32 %v2855, %v2859
        %v2862 = vshrl.u32 %v2506, 16
        %v2864 = vshll.u32 %v2506, 16
        %v2866 = vrot.slane %v2864, 1
        %v2867 = vor.u32 %v2862, %v2866
        %v2869 = vshrl.u32 %v2507, 16
        %v2871 = vshll.u32 %v2507, 16
        %v2873 = vrot.slane %v2871, 1
        %v2874 = vor.u32 %v2869, %v2873
        %v2876 = vshrl.u32 %v2508, 16
        %v2878 = vshll.u32 %v2508, 16
        %v2880 = vrot.slane %v2878, 1
        %v2881 = vor.u32 %v2876, %v2880
        %v2883 = vshrl.u32 %v2509, 16
        %v2885 = vshll.u32 %v2509, 16
        %v2887 = vrot.slane %v2885, 1
        %v2888 = vor.u32 %v2883, %v2887
        %v2890 = vshrl.u32 %v2510, 16
        %v2892 = vshll.u32 %v2510, 16
        %v2894 = vrot.slane %v2892, 1
        %v2895 = vor.u32 %v2890, %v2894
        %v2897 = vshrl.u32 %v2511, 16
        %v2899 = vshll.u32 %v2511, 16
        %v2901 = vrot.slane %v2899, 1
        %v2902 = vor.u32 %v2897, %v2901
        %v2904 = vshrl.u32 %v2512, 16
        %v2906 = vshll.u32 %v2512, 16
        %v2908 = vrot.slane %v2906, 1
        %v2909 = vor.u32 %v2904, %v2908
        %v2911 = vshrl.u32 %v2513, 16
        %v2913 = vshll.u32 %v2513, 16
        %v2915 = vrot.slane %v2913, 1
        %v2916 = vor.u32 %v2911, %v2915
        %v2918 = vshrl.u32 %v2514, 16
        %v2920 = vshll.u32 %v2514, 16
        %v2922 = vrot.slane %v2920, 1
        %v2923 = vor.u32 %v2918, %v2922
        %v2925 = vshrl.u32 %v2515, 16
        %v2927 = vshll.u32 %v2515, 16
        %v2929 = vrot.slane %v2927, 1
        %v2930 = vor.u32 %v2925, %v2929
        %v2932 = vshrl.u32 %v2516, 16
        %v2934 = vshll.u32 %v2516, 16
        %v2936 = vrot.slane %v2934, 1
        %v2937 = vor.u32 %v2932, %v2936
        %v2939 = vshrl.u32 %v2517, 16
        %v2941 = vshll.u32 %v2517, 16
        %v2943 = vrot.slane %v2941, 1
        %v2944 = vor.u32 %v2939, %v2943
        %v2946 = vshrl.u32 %v2518, 16
        %v2948 = vshll.u32 %v2518, 16
        %v2950 = vrot.slane %v2948, 1
        %v2951 = vor.u32 %v2946, %v2950
        %v2968 = vrot.slane %v2551, 1
        %v2969 = vrot.slane %v2552, 1
        %v2970 = vrot.slane %v2553, 1
        %v2971 = vrot.slane %v2554, 1
        %v2972 = vrot.slane %v2555, 1
        %v2973 = vrot.slane %v2556, 1
        %v2974 = vrot.slane %v2557, 1
        %v2975 = vrot.slane %v2558, 1
        %v2976 = vrot.slane %v2559, 1
        %v2977 = vrot.slane %v2560, 1
        %v2978 = vrot.slane %v2561, 1
        %v2979 = vrot.slane %v2562, 1
        %v2980 = vrot.slane %v2563, 1
        %v2981 = vrot.slane %v2564, 1
        %v2982 = vrot.slane %v2565, 1
        %v2983 = vrot.slane %v2566, 1
        %v2985 = vshrl.u32 %v2632, 16
        %v2987 = vshll.u32 %v2632, 16
        %v2989 = vrot.slane %v2987, 1
        %v2990 = vor.u32 %v2985, %v2989
        %v2992 = vshrl.u32 %v2633, 16
        %v2994 = vshll.u32 %v2633, 16
        %v2996 = vrot.slane %v2994, 1
        %v2997 = vor.u32 %v2992, %v2996
        %v2999 = vshrl.u32 %v2634, 16
        %v3001 = vshll.u32 %v2634, 16
        %v3003 = vrot.slane %v3001, 1
        %v3004 = vor.u32 %v2999, %v3003
        %v3006 = vshrl.u32 %v2635, 16
        %v3008 = vshll.u32 %v2635, 16
        %v3010 = vrot.slane %v3008, 1
        %v3011 = vor.u32 %v3006, %v3010
        %v3013 = vshrl.u32 %v2636, 16
        %v3015 = vshll.u32 %v2636, 16
        %v3017 = vrot.slane %v3015, 1
        %v3018 = vor.u32 %v3013, %v3017
        %v3020 = vshrl.u32 %v2637, 16
        %v3022 = vshll.u32 %v2637, 16
        %v3024 = vrot.slane %v3022, 1
        %v3025 = vor.u32 %v3020, %v3024
        %v3027 = vshrl.u32 %v2638, 16
        %v3029 = vshll.u32 %v2638, 16
        %v3031 = vrot.slane %v3029, 1
        %v3032 = vor.u32 %v3027, %v3031
        %v3034 = vshrl.u32 %v2639, 16
        %v3036 = vshll.u32 %v2639, 16
        %v3038 = vrot.slane %v3036, 1
        %v3039 = vor.u32 %v3034, %v3038
        %v3041 = vshrl.u32 %v2640, 16
        %v3043 = vshll.u32 %v2640, 16
        %v3045 = vrot.slane %v3043, 1
        %v3046 = vor.u32 %v3041, %v3045
        %v3048 = vshrl.u32 %v2641, 16
        %v3050 = vshll.u32 %v2641, 16
        %v3052 = vrot.slane %v3050, 1
        %v3053 = vor.u32 %v3048, %v3052
        %v3055 = vshrl.u32 %v2642, 16
        %v3057 = vshll.u32 %v2642, 16
        %v3059 = vrot.slane %v3057, 1
        %v3060 = vor.u32 %v3055, %v3059
        %v3062 = vshrl.u32 %v2643, 16
        %v3064 = vshll.u32 %v2643, 16
        %v3066 = vrot.slane %v3064, 1
        %v3067 = vor.u32 %v3062, %v3066
        %v3069 = vshrl.u32 %v2644, 16
        %v3071 = vshll.u32 %v2644, 16
        %v3073 = vrot.slane %v3071, 1
        %v3074 = vor.u32 %v3069, %v3073
        %v3076 = vshrl.u32 %v2645, 16
        %v3078 = vshll.u32 %v2645, 16
        %v3080 = vrot.slane %v3078, 1
        %v3081 = vor.u32 %v3076, %v3080
        %v3083 = vshrl.u32 %v2646, 16
        %v3085 = vshll.u32 %v2646, 16
        %v3087 = vrot.slane %v3085, 1
        %v3088 = vor.u32 %v3083, %v3087
        %v3090 = vshrl.u32 %v2647, 16
        %v3092 = vshll.u32 %v2647, 16
        %v3094 = vrot.slane %v3092, 1
        %v3095 = vor.u32 %v3090, %v3094
        %v3112 = vrot.slane %v2680, 1
        %v3113 = vrot.slane %v2681, 1
        %v3114 = vrot.slane %v2682, 1
        %v3115 = vrot.slane %v2683, 1
        %v3116 = vrot.slane %v2684, 1
        %v3117 = vrot.slane %v2685, 1
        %v3118 = vrot.slane %v2686, 1
        %v3119 = vrot.slane %v2687, 1
        %v3120 = vrot.slane %v2688, 1
        %v3121 = vrot.slane %v2689, 1
        %v3122 = vrot.slane %v2690, 1
        %v3123 = vrot.slane %v2691, 1
        %v3124 = vrot.slane %v2692, 1
        %v3125 = vrot.slane %v2693, 1
        %v3126 = vrot.slane %v2694, 1
        %v3127 = vrot.slane %v2695, 1
        %v3176 = vunpack.c.l.b16 %v2327
        %v3177 = vunpack.c.l.b16 %v2328
        %v3178 = vunpack.c.l.b16 %v2702
        %v3179 = vunpack.c.l.b16 %v2709
        %v3180 = vunpack.c.l.b16 %v2824
        %v3181 = vunpack.c.l.b16 %v2825
        %v3182 = vunpack.c.l.b16 %v2455
        %v3183 = vunpack.c.l.b16 %v2456
        %v3184 = vunpack.c.l.b16 %v2846
        %v3185 = vunpack.c.l.b16 %v2853
        %v3186 = vunpack.c.l.b16 %v2968
        %v3187 = vunpack.c.l.b16 %v2969
        %v3188 = vunpack.c.l.b16 %v2584
        %v3189 = vunpack.c.l.b16 %v2585
        %v3190 = vunpack.c.l.b16 %v2990
        %v3191 = vunpack.c.l.b16 %v2997
        %v3192 = vunpack.c.l.b16 %v3112
        %v3193 = vunpack.c.l.b16 %v3113
        %v3194 = vunpack.c.l.b16 %v2329
        %v3195 = vunpack.c.l.b16 %v2330
        %v3196 = vunpack.c.l.b16 %v2716
        %v3197 = vunpack.c.l.b16 %v2723
        %v3198 = vunpack.c.l.b16 %v2826
        %v3199 = vunpack.c.l.b16 %v2827
        %v3200 = vunpack.c.l.b16 %v2457
        %v3201 = vunpack.c.l.b16 %v2458
        %v3202 = vunpack.c.l.b16 %v2860
        %v3203 = vunpack.c.l.b16 %v2867
        %v3204 = vunpack.c.l.b16 %v2970
        %v3205 = vunpack.c.l.b16 %v2971
        %v3206 = vunpack.c.l.b16 %v2586
        %v3207 = vunpack.c.l.b16 %v2587
        %v3208 = vunpack.c.l.b16 %v3004
        %v3209 = vunpack.c.l.b16 %v3011
        %v3210 = vunpack.c.l.b16 %v3114
        %v3211 = vunpack.c.l.b16 %v3115
        %v3212 = vunpack.c.l.b16 %v2331
        %v3213 = vunpack.c.l.b16 %v2332
        %v3214 = vunpack.c.l.b16 %v2730
        %v3215 = vunpack.c.l.b16 %v2737
        %v3216 = vunpack.c.l.b16 %v2828
        %v3217 = vunpack.c.l.b16 %v2829
        %v3218 = vunpack.c.l.b16 %v2459
        %v3219 = vunpack.c.l.b16 %v2460
        %v3220 = vunpack.c.l.b16 %v2874
        %v3221 = vunpack.c.l.b16 %v2881
        %v3222 = vunpack.c.l.b16 %v2972
        %v3223 = vunpack.c.l.b16 %v2973
        %v3224 = vunpack.c.l.b16 %v2588
        %v3225 = vunpack.c.l.b16 %v2589
        %v3226 = vunpack.c.l.b16 %v3018
        %v3227 = vunpack.c.l.b16 %v3025
        %v3228 = vunpack.c.l.b16 %v3116
        %v3229 = vunpack.c.l.b16 %v3117
        %v3230 = vunpack.c.l.b16 %v2333
        %v3231 = vunpack.c.l.b16 %v2334
        %v3232 = vunpack.c.l.b16 %v2744
        %v3233 = vunpack.c.l.b16 %v2751
        %v3234 = vunpack.c.l.b16 %v2830
        %v3235 = vunpack.c.l.b16 %v2831
        %v3236 = vunpack.c.l.b16 %v2461
        %v3237 = vunpack.c.l.b16 %v2462
        %v3238 = vunpack.c.l.b16 %v2888
        %v3239 = vunpack.c.l.b16 %v2895
        %v3240 = vunpack.c.l.b16 %v2974
        %v3241 = vunpack.c.l.b16 %v2975
        %v3242 = vunpack.c.l.b16 %v2590
        %v3243 = vunpack.c.l.b16 %v2591
        %v3244 = vunpack.c.l.b16 %v3032
        %v3245 = vunpack.c.l.b16 %v3039
        %v3246 = vunpack.c.l.b16 %v3118
        %v3247 = vunpack.c.l.b16 %v3119
        %v3248 = vunpack.c.l.b16 %v2335
        %v3249 = vunpack.c.l.b16 %v2336
        %v3250 = vunpack.c.l.b16 %v2758
        %v3251 = vunpack.c.l.b16 %v2765
        %v3252 = vunpack.c.l.b16 %v2832
        %v3253 = vunpack.c.l.b16 %v2833
        %v3254 = vunpack.c.l.b16 %v2463
        %v3255 = vunpack.c.l.b16 %v2464
        %v3256 = vunpack.c.l.b16 %v2902
        %v3257 = vunpack.c.l.b16 %v2909
        %v3258 = vunpack.c.l.b16 %v2976
        %v3259 = vunpack.c.l.b16 %v2977
        %v3260 = vunpack.c.l.b16 %v2592
        %v3261 = vunpack.c.l.b16 %v2593
        %v3262 = vunpack.c.l.b16 %v3046
        %v3263 = vunpack.c.l.b16 %v3053
        %v3264 = vunpack.c.l.b16 %v3120
        %v3265 = vunpack.c.l.b16 %v3121
        %v3266 = vunpack.c.l.b16 %v2337
        %v3267 = vunpack.c.l.b16 %v2338
        %v3268 = vunpack.c.l.b16 %v2772
        %v3269 = vunpack.c.l.b16 %v2779
        %v3270 = vunpack.c.l.b16 %v2834
        %v3271 = vunpack.c.l.b16 %v2835
        %v3272 = vunpack.c.l.b16 %v2465
        %v3273 = vunpack.c.l.b16 %v2466
        %v3274 = vunpack.c.l.b16 %v2916
        %v3275 = vunpack.c.l.b16 %v2923
        %v3276 = vunpack.c.l.b16 %v2978
        %v3277 = vunpack.c.l.b16 %v2979
        %v3278 = vunpack.c.l.b16 %v2594
        %v3279 = vunpack.c.l.b16 %v2595
        %v3280 = vunpack.c.l.b16 %v3060
        %v3281 = vunpack.c.l.b16 %v3067
        %v3282 = vunpack.c.l.b16 %v3122
        %v3283 = vunpack.c.l.b16 %v3123
        %v3284 = vunpack.c.l.b16 %v2339
        %v3285 = vunpack.c.l.b16 %v2340
        %v3286 = vunpack.c.l.b16 %v2786
        %v3287 = vunpack.c.l.b16 %v2793
        %v3288 = vunpack.c.l.b16 %v2836
        %v3289 = vunpack.c.l.b16 %v2837
        %v3290 = vunpack.c.l.b16 %v2467
        %v3291 = vunpack.c.l.b16 %v2468
        %v3292 = vunpack.c.l.b16 %v2930
        %v3293 = vunpack.c.l.b16 %v2937
        %v3294 = vunpack.c.l.b16 %v2980
        %v3295 = vunpack.c.l.b16 %v2981
        %v3296 = vunpack.c.l.b16 %v2596
        %v3297 = vunpack.c.l.b16 %v2597
        %v3298 = vunpack.c.l.b16 %v3074
        %v3299 = vunpack.c.l.b16 %v3081
        %v3300 = vunpack.c.l.b16 %v3124
        %v3301 = vunpack.c.l.b16 %v3125
        %v3302 = vunpack.c.l.b16 %v2341
        %v3303 = vunpack.c.l.b16 %v2342
        %v3304 = vunpack.c.l.b16 %v2800
        %v3305 = vunpack.c.l.b16 %v2807
        %v3306 = vunpack.c.l.b16 %v2838
        %v3307 = vunpack.c.l.b16 %v2839
        %v3308 = vunpack.c.l.b16 %v2469
        %v3309 = vunpack.c.l.b16 %v2470
        %v3310 = vunpack.c.l.b16 %v2944
        %v3311 = vunpack.c.l.b16 %v2951
        %v3312 = vunpack.c.l.b16 %v2982
        %v3313 = vunpack.c.l.b16 %v2983
        %v3314 = vunpack.c.l.b16 %v2598
        %v3315 = vunpack.c.l.b16 %v2599
        %v3316 = vunpack.c.l.b16 %v3088
        %v3317 = vunpack.c.l.b16 %v3095
        %v3318 = vunpack.c.l.b16 %v3126
        %v3319 = vunpack.c.l.b16 %v3127
        %v3320 = vld [vmem:[#allocation10] sm:$0xff]
        %v3321 = vld [vmem:[#allocation10 + $0x8] sm:$0xff]
        %v3322 = vld [vmem:[#allocation10 + $0x10] sm:$0xff]
        %v3323 = vld [vmem:[#allocation10 + $0x18] sm:$0xff]
        %v3324 = vld [vmem:[#allocation10 + $0x20] sm:$0xff]
        %v3325 = vld [vmem:[#allocation10 + $0x28] sm:$0xff]
        %v3326 = vld [vmem:[#allocation10 + $0x30] sm:$0xff]
        %v3327 = vld [vmem:[#allocation10 + $0x38] sm:$0xff]
        %v3328 = vld [vmem:[#allocation10 + $0x40] sm:$0xff]
        %v3329 = vld [vmem:[#allocation10 + $0x48] sm:$0xff]
        %v3330 = vld [vmem:[#allocation10 + $0x50] sm:$0xff]
        %v3331 = vld [vmem:[#allocation10 + $0x58] sm:$0xff]
        %v3332 = vld [vmem:[#allocation10 + $0x60] sm:$0xff]
        %v3333 = vld [vmem:[#allocation10 + $0x68] sm:$0xff]
        %v3334 = vld [vmem:[#allocation10 + $0x70] sm:$0xff]
        %v3335 = vld [vmem:[#allocation10 + $0x78] sm:$0xff]
        %v3336 = vld [vmem:[#allocation10 + $0x80] sm:$0xff]
        %v3337 = vld [vmem:[#allocation10 + $0x88] sm:$0xff]
        %v3338 = vld [vmem:[#allocation10 + $0x90] sm:$0xff]
        %v3339 = vld [vmem:[#allocation10 + $0x98] sm:$0xff]
        %v3340 = vld [vmem:[#allocation10 + $0xa0] sm:$0xff]
        %v3341 = vld [vmem:[#allocation10 + $0xa8] sm:$0xff]
        %v3342 = vld [vmem:[#allocation10 + $0xb0] sm:$0xff]
        %v3343 = vld [vmem:[#allocation10 + $0xb8] sm:$0xff]
        %v3344 = vld [vmem:[#allocation10 + $0xc0] sm:$0xff]
        %v3345 = vld [vmem:[#allocation10 + $0xc8] sm:$0xff]
        %v3346 = vld [vmem:[#allocation10 + $0xd0] sm:$0xff]
        %v3347 = vld [vmem:[#allocation10 + $0xd8] sm:$0xff]
        %v3348 = vld [vmem:[#allocation10 + $0xe0] sm:$0xff]
        %v3349 = vld [vmem:[#allocation10 + $0xe8] sm:$0xff]
        %v3350 = vld [vmem:[#allocation10 + $0xf0] sm:$0xff]
        %v3351 = vld [vmem:[#allocation10 + $0xf8] sm:$0xff]
        %v3352 = vld [vmem:[#allocation10 + $0x100] sm:$0xff]
        %v3353 = vld [vmem:[#allocation10 + $0x108] sm:$0xff]
        %v3354 = vld [vmem:[#allocation10 + $0x110] sm:$0xff]
        %v3355 = vld [vmem:[#allocation10 + $0x118] sm:$0xff]
        %v3356 = vld [vmem:[#allocation10 + $0x120] sm:$0xff]
        %v3357 = vld [vmem:[#allocation10 + $0x128] sm:$0xff]
        %v3358 = vld [vmem:[#allocation10 + $0x130] sm:$0xff]
        %v3359 = vld [vmem:[#allocation10 + $0x138] sm:$0xff]
        %v3360 = vld [vmem:[#allocation10 + $0x140] sm:$0xff]
        %v3361 = vld [vmem:[#allocation10 + $0x148] sm:$0xff]
        %v3362 = vld [vmem:[#allocation10 + $0x150] sm:$0xff]
        %v3363 = vld [vmem:[#allocation10 + $0x158] sm:$0xff]
        %v3364 = vld [vmem:[#allocation10 + $0x160] sm:$0xff]
        %v3365 = vld [vmem:[#allocation10 + $0x168] sm:$0xff]
        %v3366 = vld [vmem:[#allocation10 + $0x170] sm:$0xff]
        %v3367 = vld [vmem:[#allocation10 + $0x178] sm:$0xff]
        %v3368 = vld [vmem:[#allocation10 + $0x180] sm:$0xff]
        %v3369 = vld [vmem:[#allocation10 + $0x188] sm:$0xff]
        %v3370 = vld [vmem:[#allocation10 + $0x190] sm:$0xff]
        %v3371 = vld [vmem:[#allocation10 + $0x198] sm:$0xff]
        %v3372 = vld [vmem:[#allocation10 + $0x1a0] sm:$0xff]
        %v3373 = vld [vmem:[#allocation10 + $0x1a8] sm:$0xff]
        %v3374 = vld [vmem:[#allocation10 + $0x1b0] sm:$0xff]
        %v3375 = vld [vmem:[#allocation10 + $0x1b8] sm:$0xff]
        %v3376 = vld [vmem:[#allocation10 + $0x1c0] sm:$0xff]
        %v3377 = vld [vmem:[#allocation10 + $0x1c8] sm:$0xff]
        %v3378 = vld [vmem:[#allocation10 + $0x1d0] sm:$0xff]
        %v3379 = vld [vmem:[#allocation10 + $0x1d8] sm:$0xff]
        %v3380 = vld [vmem:[#allocation10 + $0x1e0] sm:$0xff]
        %v3381 = vld [vmem:[#allocation10 + $0x1e8] sm:$0xff]
        %v3382 = vld [vmem:[#allocation10 + $0x1f0] sm:$0xff]
        %v3383 = vld [vmem:[#allocation10 + $0x1f8] sm:$0xff]
        %v3384 = vld [vmem:[#allocation10 + $0x200] sm:$0xff]
        %v3385 = vld [vmem:[#allocation10 + $0x208] sm:$0xff]
        %v3386 = vld [vmem:[#allocation10 + $0x210] sm:$0xff]
        %v3387 = vld [vmem:[#allocation10 + $0x218] sm:$0xff]
        %v3388 = vld [vmem:[#allocation10 + $0x220] sm:$0xff]
        %v3389 = vld [vmem:[#allocation10 + $0x228] sm:$0xff]
        %v3390 = vld [vmem:[#allocation10 + $0x230] sm:$0xff]
        %v3391 = vld [vmem:[#allocation10 + $0x238] sm:$0xff]
        %v3392 = vld [vmem:[#allocation10 + $0x240] sm:$0xff]
        %v3393 = vld [vmem:[#allocation10 + $0x248] sm:$0xff]
        %v3394 = vld [vmem:[#allocation10 + $0x250] sm:$0xff]
        %v3395 = vld [vmem:[#allocation10 + $0x258] sm:$0xff]
        %v3396 = vld [vmem:[#allocation10 + $0x260] sm:$0xff]
        %v3397 = vld [vmem:[#allocation10 + $0x268] sm:$0xff]
        %v3398 = vld [vmem:[#allocation10 + $0x270] sm:$0xff]
        %v3399 = vld [vmem:[#allocation10 + $0x278] sm:$0xff]
        %v3400 = vld [vmem:[#allocation10 + $0x280] sm:$0xff]
        %v3401 = vld [vmem:[#allocation10 + $0x288] sm:$0xff]
        %v3402 = vld [vmem:[#allocation10 + $0x290] sm:$0xff]
        %v3403 = vld [vmem:[#allocation10 + $0x298] sm:$0xff]
        %v3404 = vld [vmem:[#allocation10 + $0x2a0] sm:$0xff]
        %v3405 = vld [vmem:[#allocation10 + $0x2a8] sm:$0xff]
        %v3406 = vld [vmem:[#allocation10 + $0x2b0] sm:$0xff]
        %v3407 = vld [vmem:[#allocation10 + $0x2b8] sm:$0xff]
        %v3408 = vld [vmem:[#allocation10 + $0x2c0] sm:$0xff]
        %v3409 = vld [vmem:[#allocation10 + $0x2c8] sm:$0xff]
        %v3410 = vld [vmem:[#allocation10 + $0x2d0] sm:$0xff]
        %v3411 = vld [vmem:[#allocation10 + $0x2d8] sm:$0xff]
        %v3412 = vld [vmem:[#allocation10 + $0x2e0] sm:$0xff]
        %v3413 = vld [vmem:[#allocation10 + $0x2e8] sm:$0xff]
        %v3414 = vld [vmem:[#allocation10 + $0x2f0] sm:$0xff]
        %v3415 = vld [vmem:[#allocation10 + $0x2f8] sm:$0xff]
        %v3416 = vld [vmem:[#allocation10 + $0x300] sm:$0xff]
        %v3417 = vld [vmem:[#allocation10 + $0x308] sm:$0xff]
        %v3418 = vld [vmem:[#allocation10 + $0x310] sm:$0xff]
        %v3419 = vld [vmem:[#allocation10 + $0x318] sm:$0xff]
        %v3420 = vld [vmem:[#allocation10 + $0x320] sm:$0xff]
        %v3421 = vld [vmem:[#allocation10 + $0x328] sm:$0xff]
        %v3422 = vld [vmem:[#allocation10 + $0x330] sm:$0xff]
        %v3423 = vld [vmem:[#allocation10 + $0x338] sm:$0xff]
        %v3424 = vld [vmem:[#allocation10 + $0x340] sm:$0xff]
        %v3425 = vld [vmem:[#allocation10 + $0x348] sm:$0xff]
        %v3426 = vld [vmem:[#allocation10 + $0x350] sm:$0xff]
        %v3427 = vld [vmem:[#allocation10 + $0x358] sm:$0xff]
        %v3428 = vld [vmem:[#allocation10 + $0x360] sm:$0xff]
        %v3429 = vld [vmem:[#allocation10 + $0x368] sm:$0xff]
        %v3430 = vld [vmem:[#allocation10 + $0x370] sm:$0xff]
        %v3431 = vld [vmem:[#allocation10 + $0x378] sm:$0xff]
        %v3432 = vld [vmem:[#allocation10 + $0x380] sm:$0xff]
        %v3433 = vld [vmem:[#allocation10 + $0x388] sm:$0xff]
        %v3434 = vld [vmem:[#allocation10 + $0x390] sm:$0xff]
        %v3435 = vld [vmem:[#allocation10 + $0x398] sm:$0xff]
        %v3436 = vld [vmem:[#allocation10 + $0x3a0] sm:$0xff]
        %v3437 = vld [vmem:[#allocation10 + $0x3a8] sm:$0xff]
        %v3438 = vld [vmem:[#allocation10 + $0x3b0] sm:$0xff]
        %v3439 = vld [vmem:[#allocation10 + $0x3b8] sm:$0xff]
        %v3440 = vld [vmem:[#allocation10 + $0x3c0] sm:$0xff]
        %v3441 = vld [vmem:[#allocation10 + $0x3c8] sm:$0xff]
        %v3442 = vld [vmem:[#allocation10 + $0x3d0] sm:$0xff]
        %v3443 = vld [vmem:[#allocation10 + $0x3d8] sm:$0xff]
        %v3444 = vld [vmem:[#allocation10 + $0x3e0] sm:$0xff]
        %v3445 = vld [vmem:[#allocation10 + $0x3e8] sm:$0xff]
        %v3446 = vld [vmem:[#allocation10 + $0x3f0] sm:$0xff]
        %v3447 = vld [vmem:[#allocation10 + $0x3f8] sm:$0xff]
        %v3448 = vld [vmem:[#allocation10 + $0x400] sm:$0xff]
        %v3449 = vld [vmem:[#allocation10 + $0x408] sm:$0xff]
        %v3450 = vld [vmem:[#allocation10 + $0x410] sm:$0xff]
        %v3451 = vld [vmem:[#allocation10 + $0x418] sm:$0xff]
        %v3452 = vld [vmem:[#allocation10 + $0x420] sm:$0xff]
        %v3453 = vld [vmem:[#allocation10 + $0x428] sm:$0xff]
        %v3454 = vld [vmem:[#allocation10 + $0x430] sm:$0xff]
        %v3455 = vld [vmem:[#allocation10 + $0x438] sm:$0xff]
        %v3456 = vld [vmem:[#allocation10 + $0x440] sm:$0xff]
        %v3457 = vld [vmem:[#allocation10 + $0x448] sm:$0xff]
        %v3458 = vld [vmem:[#allocation10 + $0x450] sm:$0xff]
        %v3459 = vld [vmem:[#allocation10 + $0x458] sm:$0xff]
        %v3460 = vld [vmem:[#allocation10 + $0x460] sm:$0xff]
        %v3461 = vld [vmem:[#allocation10 + $0x468] sm:$0xff]
        %v3462 = vld [vmem:[#allocation10 + $0x470] sm:$0xff]
        %v3463 = vld [vmem:[#allocation10 + $0x478] sm:$0xff]
        %v3464 = vld [vmem:[#allocation10 + $0x480] sm:$0xff]
        %v3465 = vld [vmem:[#allocation10 + $0x488] sm:$0xff]
        %v3466 = vld [vmem:[#allocation10 + $0x490] sm:$0xff]
        %v3467 = vld [vmem:[#allocation10 + $0x498] sm:$0xff]
        %v3468 = vld [vmem:[#allocation10 + $0x4a0] sm:$0xff]
        %v3469 = vld [vmem:[#allocation10 + $0x4a8] sm:$0xff]
        %v3470 = vld [vmem:[#allocation10 + $0x4b0] sm:$0xff]
        %v3471 = vld [vmem:[#allocation10 + $0x4b8] sm:$0xff]
        %v3472 = vld [vmem:[#allocation10 + $0x4c0] sm:$0xff]
        %v3473 = vld [vmem:[#allocation10 + $0x4c8] sm:$0xff]
        %v3474 = vld [vmem:[#allocation10 + $0x4d0] sm:$0xff]
        %v3475 = vld [vmem:[#allocation10 + $0x4d8] sm:$0xff]
        %v3476 = vld [vmem:[#allocation10 + $0x4e0] sm:$0xff]
        %v3477 = vld [vmem:[#allocation10 + $0x4e8] sm:$0xff]
        %v3478 = vld [vmem:[#allocation10 + $0x4f0] sm:$0xff]
        %v3479 = vld [vmem:[#allocation10 + $0x4f8] sm:$0xff]
        %v3480 = vld [vmem:[#allocation10 + $0x500] sm:$0xff]
        %v3481 = vld [vmem:[#allocation10 + $0x508] sm:$0xff]
        %v3482 = vld [vmem:[#allocation10 + $0x510] sm:$0xff]
        %v3483 = vld [vmem:[#allocation10 + $0x518] sm:$0xff]
        %v3484 = vld [vmem:[#allocation10 + $0x520] sm:$0xff]
        %v3485 = vld [vmem:[#allocation10 + $0x528] sm:$0xff]
        %v3486 = vld [vmem:[#allocation10 + $0x530] sm:$0xff]
        %v3487 = vld [vmem:[#allocation10 + $0x538] sm:$0xff]
        %v3488 = vld [vmem:[#allocation10 + $0x540] sm:$0xff]
        %v3489 = vld [vmem:[#allocation10 + $0x548] sm:$0xff]
        %v3490 = vld [vmem:[#allocation10 + $0x550] sm:$0xff]
        %v3491 = vld [vmem:[#allocation10 + $0x558] sm:$0xff]
        %v3492 = vld [vmem:[#allocation10 + $0x560] sm:$0xff]
        %v3493 = vld [vmem:[#allocation10 + $0x568] sm:$0xff]
        %v3494 = vld [vmem:[#allocation10 + $0x570] sm:$0xff]
        %v3495 = vld [vmem:[#allocation10 + $0x578] sm:$0xff]
        %v3496 = vld [vmem:[#allocation10 + $0x580] sm:$0xff]
        %v3497 = vld [vmem:[#allocation10 + $0x588] sm:$0xff]
        %v3498 = vld [vmem:[#allocation10 + $0x590] sm:$0xff]
        %v3499 = vld [vmem:[#allocation10 + $0x598] sm:$0xff]
        %v3500 = vld [vmem:[#allocation10 + $0x5a0] sm:$0xff]
        %v3501 = vld [vmem:[#allocation10 + $0x5a8] sm:$0xff]
        %v3502 = vld [vmem:[#allocation10 + $0x5b0] sm:$0xff]
        %v3503 = vld [vmem:[#allocation10 + $0x5b8] sm:$0xff]
        %v3504 = vld [vmem:[#allocation10 + $0x5c0] sm:$0xff]
        %v3505 = vld [vmem:[#allocation10 + $0x5c8] sm:$0xff]
        %v3506 = vld [vmem:[#allocation10 + $0x5d0] sm:$0xff]
        %v3507 = vld [vmem:[#allocation10 + $0x5d8] sm:$0xff]
        %v3508 = vld [vmem:[#allocation10 + $0x5e0] sm:$0xff]
        %v3509 = vld [vmem:[#allocation10 + $0x5e8] sm:$0xff]
        %v3510 = vld [vmem:[#allocation10 + $0x5f0] sm:$0xff]
        %v3511 = vld [vmem:[#allocation10 + $0x5f8] sm:$0xff]
        %v3512 = vld [vmem:[#allocation10 + $0x600] sm:$0xff]
        %v3513 = vld [vmem:[#allocation10 + $0x608] sm:$0xff]
        %v3514 = vld [vmem:[#allocation10 + $0x610] sm:$0xff]
        %v3515 = vld [vmem:[#allocation10 + $0x618] sm:$0xff]
        %v3516 = vld [vmem:[#allocation10 + $0x620] sm:$0xff]
        %v3517 = vld [vmem:[#allocation10 + $0x628] sm:$0xff]
        %v3518 = vld [vmem:[#allocation10 + $0x630] sm:$0xff]
        %v3519 = vld [vmem:[#allocation10 + $0x638] sm:$0xff]
        %v3520 = vld [vmem:[#allocation10 + $0x640] sm:$0xff]
        %v3521 = vld [vmem:[#allocation10 + $0x648] sm:$0xff]
        %v3522 = vld [vmem:[#allocation10 + $0x650] sm:$0xff]
        %v3523 = vld [vmem:[#allocation10 + $0x658] sm:$0xff]
        %v3524 = vld [vmem:[#allocation10 + $0x660] sm:$0xff]
        %v3525 = vld [vmem:[#allocation10 + $0x668] sm:$0xff]
        %v3526 = vld [vmem:[#allocation10 + $0x670] sm:$0xff]
        %v3527 = vld [vmem:[#allocation10 + $0x678] sm:$0xff]
        %v3528 = vld [vmem:[#allocation10 + $0x680] sm:$0xff]
        %v3529 = vld [vmem:[#allocation10 + $0x688] sm:$0xff]
        %v3530 = vld [vmem:[#allocation10 + $0x690] sm:$0xff]
        %v3531 = vld [vmem:[#allocation10 + $0x698] sm:$0xff]
        %v3532 = vld [vmem:[#allocation10 + $0x6a0] sm:$0xff]
        %v3533 = vld [vmem:[#allocation10 + $0x6a8] sm:$0xff]
        %v3534 = vld [vmem:[#allocation10 + $0x6b0] sm:$0xff]
        %v3535 = vld [vmem:[#allocation10 + $0x6b8] sm:$0xff]
        %v3536 = vld [vmem:[#allocation10 + $0x6c0] sm:$0xff]
        %v3537 = vld [vmem:[#allocation10 + $0x6c8] sm:$0xff]
        %v3538 = vld [vmem:[#allocation10 + $0x6d0] sm:$0xff]
        %v3539 = vld [vmem:[#allocation10 + $0x6d8] sm:$0xff]
        %v3540 = vld [vmem:[#allocation10 + $0x6e0] sm:$0xff]
        %v3541 = vld [vmem:[#allocation10 + $0x6e8] sm:$0xff]
        %v3542 = vld [vmem:[#allocation10 + $0x6f0] sm:$0xff]
        %v3543 = vld [vmem:[#allocation10 + $0x6f8] sm:$0xff]
        %v3544 = vld [vmem:[#allocation10 + $0x700] sm:$0xff]
        %v3545 = vld [vmem:[#allocation10 + $0x708] sm:$0xff]
        %v3546 = vld [vmem:[#allocation10 + $0x710] sm:$0xff]
        %v3547 = vld [vmem:[#allocation10 + $0x718] sm:$0xff]
        %v3548 = vld [vmem:[#allocation10 + $0x720] sm:$0xff]
        %v3549 = vld [vmem:[#allocation10 + $0x728] sm:$0xff]
        %v3550 = vld [vmem:[#allocation10 + $0x730] sm:$0xff]
        %v3551 = vld [vmem:[#allocation10 + $0x738] sm:$0xff]
        %v3552 = vld [vmem:[#allocation10 + $0x740] sm:$0xff]
        %v3553 = vld [vmem:[#allocation10 + $0x748] sm:$0xff]
        %v3554 = vld [vmem:[#allocation10 + $0x750] sm:$0xff]
        %v3555 = vld [vmem:[#allocation10 + $0x758] sm:$0xff]
        %v3556 = vld [vmem:[#allocation10 + $0x760] sm:$0xff]
        %v3557 = vld [vmem:[#allocation10 + $0x768] sm:$0xff]
        %v3558 = vld [vmem:[#allocation10 + $0x770] sm:$0xff]
        %v3559 = vld [vmem:[#allocation10 + $0x778] sm:$0xff]
        %v3560 = vld [vmem:[#allocation10 + $0x780] sm:$0xff]
        %v3561 = vld [vmem:[#allocation10 + $0x788] sm:$0xff]
        %v3562 = vld [vmem:[#allocation10 + $0x790] sm:$0xff]
        %v3563 = vld [vmem:[#allocation10 + $0x798] sm:$0xff]
        %v3564 = vld [vmem:[#allocation10 + $0x7a0] sm:$0xff]
        %v3565 = vld [vmem:[#allocation10 + $0x7a8] sm:$0xff]
        %v3566 = vld [vmem:[#allocation10 + $0x7b0] sm:$0xff]
        %v3567 = vld [vmem:[#allocation10 + $0x7b8] sm:$0xff]
        %v3568 = vld [vmem:[#allocation10 + $0x7c0] sm:$0xff]
        %v3569 = vld [vmem:[#allocation10 + $0x7c8] sm:$0xff]
        %v3570 = vld [vmem:[#allocation10 + $0x7d0] sm:$0xff]
        %v3571 = vld [vmem:[#allocation10 + $0x7d8] sm:$0xff]
        %v3572 = vld [vmem:[#allocation10 + $0x7e0] sm:$0xff]
        %v3573 = vld [vmem:[#allocation10 + $0x7e8] sm:$0xff]
        %v3574 = vld [vmem:[#allocation10 + $0x7f0] sm:$0xff]
        %v3575 = vld [vmem:[#allocation10 + $0x7f8] sm:$0xff]
        %v3576 = vld [vmem:[#allocation10 + $0x800] sm:$0xff]
        %v3577 = vld [vmem:[#allocation10 + $0x808] sm:$0xff]
        %v3578 = vld [vmem:[#allocation10 + $0x810] sm:$0xff]
        %v3579 = vld [vmem:[#allocation10 + $0x818] sm:$0xff]
        %v3580 = vld [vmem:[#allocation10 + $0x820] sm:$0xff]
        %v3581 = vld [vmem:[#allocation10 + $0x828] sm:$0xff]
        %v3582 = vld [vmem:[#allocation10 + $0x830] sm:$0xff]
        %v3583 = vld [vmem:[#allocation10 + $0x838] sm:$0xff]
        %v3584 = vld [vmem:[#allocation10 + $0x840] sm:$0xff]
        %v3585 = vld [vmem:[#allocation10 + $0x848] sm:$0xff]
        %v3586 = vld [vmem:[#allocation10 + $0x850] sm:$0xff]
        %v3587 = vld [vmem:[#allocation10 + $0x858] sm:$0xff]
        %v3588 = vld [vmem:[#allocation10 + $0x860] sm:$0xff]
        %v3589 = vld [vmem:[#allocation10 + $0x868] sm:$0xff]
        %v3590 = vld [vmem:[#allocation10 + $0x870] sm:$0xff]
        %v3591 = vld [vmem:[#allocation10 + $0x878] sm:$0xff]
        %v3592 = vld [vmem:[#allocation10 + $0x880] sm:$0xff]
        %v3593 = vld [vmem:[#allocation10 + $0x888] sm:$0xff]
        %v3594 = vld [vmem:[#allocation10 + $0x890] sm:$0xff]
        %v3595 = vld [vmem:[#allocation10 + $0x898] sm:$0xff]
        %v3596 = vld [vmem:[#allocation10 + $0x8a0] sm:$0xff]
        %v3597 = vld [vmem:[#allocation10 + $0x8a8] sm:$0xff]
        %v3598 = vld [vmem:[#allocation10 + $0x8b0] sm:$0xff]
        %v3599 = vld [vmem:[#allocation10 + $0x8b8] sm:$0xff]
        %v3600 = vld [vmem:[#allocation10 + $0x8c0] sm:$0xff]
        %v3601 = vld [vmem:[#allocation10 + $0x8c8] sm:$0xff]
        %v3602 = vld [vmem:[#allocation10 + $0x8d0] sm:$0xff]
        %v3603 = vld [vmem:[#allocation10 + $0x8d8] sm:$0xff]
        %v3604 = vld [vmem:[#allocation10 + $0x8e0] sm:$0xff]
        %v3605 = vld [vmem:[#allocation10 + $0x8e8] sm:$0xff]
        %v3606 = vld [vmem:[#allocation10 + $0x8f0] sm:$0xff]
        %v3607 = vld [vmem:[#allocation10 + $0x8f8] sm:$0xff]
        %v3608 = vld [vmem:[#allocation12] sm:$0x3]
        %v3610 = vlaneseq
        %v3611 = vshrl.u32 %v3610, 7
        %v3612 = vsub.s32 0, %v3611
        %v3613 = vrot.slane %v3608, %v3612
        %v3614 = vlaneseq
        %v3615 = vshrl.u32 %v3614, 7
        %v3616 = vsub.s32 1, %v3615
        %v3617 = vrot.slane %v3608, %v3616
        %v3620 = vpack.c.b16 %v3194, %v3176
        %v3621 = vpack.c.b16 %v3195, %v3177
        %v3622 = vpack.c.b16 %v3196, %v3178
        %v3623 = vpack.c.b16 %v3197, %v3179
        %v3624 = vpack.c.b16 %v3198, %v3180
        %v3625 = vpack.c.b16 %v3199, %v3181
        %v3626 = vpack.c.b16 %v3200, %v3182
        %v3627 = vpack.c.b16 %v3201, %v3183
        %v3628 = vpack.c.b16 %v3202, %v3184
        %v3629 = vpack.c.b16 %v3203, %v3185
        %v3630 = vpack.c.b16 %v3204, %v3186
        %v3631 = vpack.c.b16 %v3205, %v3187
        %v3632 = vpack.c.b16 %v3206, %v3188
        %v3633 = vpack.c.b16 %v3207, %v3189
        %v3634 = vpack.c.b16 %v3208, %v3190
        %v3635 = vpack.c.b16 %v3209, %v3191
        %v3636 = vpack.c.b16 %v3210, %v3192
        %v3637 = vpack.c.b16 %v3211, %v3193
        %v3638 = vpack.c.b16 %v3230, %v3212
        %v3639 = vpack.c.b16 %v3231, %v3213
        %v3640 = vpack.c.b16 %v3232, %v3214
        %v3641 = vpack.c.b16 %v3233, %v3215
        %v3642 = vpack.c.b16 %v3234, %v3216
        %v3643 = vpack.c.b16 %v3235, %v3217
        %v3644 = vpack.c.b16 %v3236, %v3218
        %v3645 = vpack.c.b16 %v3237, %v3219
        %v3646 = vpack.c.b16 %v3238, %v3220
        %v3647 = vpack.c.b16 %v3239, %v3221
        %v3648 = vpack.c.b16 %v3240, %v3222
        %v3649 = vpack.c.b16 %v3241, %v3223
        %v3650 = vpack.c.b16 %v3242, %v3224
        %v3651 = vpack.c.b16 %v3243, %v3225
        %v3652 = vpack.c.b16 %v3244, %v3226
        %v3653 = vpack.c.b16 %v3245, %v3227
        %v3654 = vpack.c.b16 %v3246, %v3228
        %v3655 = vpack.c.b16 %v3247, %v3229
        %v3656 = vpack.c.b16 %v3266, %v3248
        %v3657 = vpack.c.b16 %v3267, %v3249
        %v3658 = vpack.c.b16 %v3268, %v3250
        %v3659 = vpack.c.b16 %v3269, %v3251
        %v3660 = vpack.c.b16 %v3270, %v3252
        %v3661 = vpack.c.b16 %v3271, %v3253
        %v3662 = vpack.c.b16 %v3272, %v3254
        %v3663 = vpack.c.b16 %v3273, %v3255
        %v3664 = vpack.c.b16 %v3274, %v3256
        %v3665 = vpack.c.b16 %v3275, %v3257
        %v3666 = vpack.c.b16 %v3276, %v3258
        %v3667 = vpack.c.b16 %v3277, %v3259
        %v3668 = vpack.c.b16 %v3278, %v3260
        %v3669 = vpack.c.b16 %v3279, %v3261
        %v3670 = vpack.c.b16 %v3280, %v3262
        %v3671 = vpack.c.b16 %v3281, %v3263
        %v3672 = vpack.c.b16 %v3282, %v3264
        %v3673 = vpack.c.b16 %v3283, %v3265
        %v3674 = vpack.c.b16 %v3302, %v3284
        %v3675 = vpack.c.b16 %v3303, %v3285
        %v3676 = vpack.c.b16 %v3304, %v3286
        %v3677 = vpack.c.b16 %v3305, %v3287
        %v3678 = vpack.c.b16 %v3306, %v3288
        %v3679 = vpack.c.b16 %v3307, %v3289
        %v3680 = vpack.c.b16 %v3308, %v3290
        %v3681 = vpack.c.b16 %v3309, %v3291
        %v3682 = vpack.c.b16 %v3310, %v3292
        %v3683 = vpack.c.b16 %v3311, %v3293
        %v3684 = vpack.c.b16 %v3312, %v3294
        %v3685 = vpack.c.b16 %v3313, %v3295
        %v3686 = vpack.c.b16 %v3314, %v3296
        %v3687 = vpack.c.b16 %v3315, %v3297
        %v3688 = vpack.c.b16 %v3316, %v3298
        %v3689 = vpack.c.b16 %v3317, %v3299
        %v3690 = vpack.c.b16 %v3318, %v3300
        %v3691 = vpack.c.b16 %v3319, %v3301
        %v4052 = vunpack.c.l.b16 %v3320
        %v4053 = vunpack.c.h.b16 %v3320
        %v4054 = vunpack.c.l.b16 %v3321
        %v4055 = vunpack.c.h.b16 %v3321
        %v4056 = vunpack.c.l.b16 %v3322
        %v4057 = vunpack.c.h.b16 %v3322
        %v4058 = vunpack.c.l.b16 %v3323
        %v4059 = vunpack.c.h.b16 %v3323
        %v4060 = vunpack.c.l.b16 %v3324
        %v4061 = vunpack.c.h.b16 %v3324
        %v4062 = vunpack.c.l.b16 %v3325
        %v4063 = vunpack.c.h.b16 %v3325
        %v4064 = vunpack.c.l.b16 %v3326
        %v4065 = vunpack.c.h.b16 %v3326
        %v4066 = vunpack.c.l.b16 %v3327
        %v4067 = vunpack.c.h.b16 %v3327
        %v4068 = vunpack.c.l.b16 %v3328
        %v4069 = vunpack.c.h.b16 %v3328
        %v4070 = vunpack.c.l.b16 %v3329
        %v4071 = vunpack.c.h.b16 %v3329
        %v4072 = vunpack.c.l.b16 %v3330
        %v4073 = vunpack.c.h.b16 %v3330
        %v4074 = vunpack.c.l.b16 %v3331
        %v4075 = vunpack.c.h.b16 %v3331
        %v4076 = vunpack.c.l.b16 %v3332
        %v4077 = vunpack.c.h.b16 %v3332
        %v4078 = vunpack.c.l.b16 %v3333
        %v4079 = vunpack.c.h.b16 %v3333
        %v4080 = vunpack.c.l.b16 %v3334
        %v4081 = vunpack.c.h.b16 %v3334
        %v4082 = vunpack.c.l.b16 %v3335
        %v4083 = vunpack.c.h.b16 %v3335
        %v4084 = vunpack.c.l.b16 %v3336
        %v4085 = vunpack.c.h.b16 %v3336
        %v4086 = vunpack.c.l.b16 %v3337
        %v4087 = vunpack.c.h.b16 %v3337
        %v4088 = vunpack.c.l.b16 %v3338
        %v4089 = vunpack.c.h.b16 %v3338
        %v4090 = vunpack.c.l.b16 %v3339
        %v4091 = vunpack.c.h.b16 %v3339
        %v4092 = vunpack.c.l.b16 %v3340
        %v4093 = vunpack.c.h.b16 %v3340
        %v4094 = vunpack.c.l.b16 %v3341
        %v4095 = vunpack.c.h.b16 %v3341
        %v4096 = vunpack.c.l.b16 %v3342
        %v4097 = vunpack.c.h.b16 %v3342
        %v4098 = vunpack.c.l.b16 %v3343
        %v4099 = vunpack.c.h.b16 %v3343
        %v4100 = vunpack.c.l.b16 %v3344
        %v4101 = vunpack.c.h.b16 %v3344
        %v4102 = vunpack.c.l.b16 %v3345
        %v4103 = vunpack.c.h.b16 %v3345
        %v4104 = vunpack.c.l.b16 %v3346
        %v4105 = vunpack.c.h.b16 %v3346
        %v4106 = vunpack.c.l.b16 %v3347
        %v4107 = vunpack.c.h.b16 %v3347
        %v4108 = vunpack.c.l.b16 %v3348
        %v4109 = vunpack.c.h.b16 %v3348
        %v4110 = vunpack.c.l.b16 %v3349
        %v4111 = vunpack.c.h.b16 %v3349
        %v4112 = vunpack.c.l.b16 %v3350
        %v4113 = vunpack.c.h.b16 %v3350
        %v4114 = vunpack.c.l.b16 %v3351
        %v4115 = vunpack.c.h.b16 %v3351
        %v4116 = vunpack.c.l.b16 %v3352
        %v4117 = vunpack.c.h.b16 %v3352
        %v4118 = vunpack.c.l.b16 %v3353
        %v4119 = vunpack.c.h.b16 %v3353
        %v4120 = vunpack.c.l.b16 %v3354
        %v4121 = vunpack.c.h.b16 %v3354
        %v4122 = vunpack.c.l.b16 %v3355
        %v4123 = vunpack.c.h.b16 %v3355
        %v4124 = vunpack.c.l.b16 %v3356
        %v4125 = vunpack.c.h.b16 %v3356
        %v4126 = vunpack.c.l.b16 %v3357
        %v4127 = vunpack.c.h.b16 %v3357
        %v4128 = vunpack.c.l.b16 %v3358
        %v4129 = vunpack.c.h.b16 %v3358
        %v4130 = vunpack.c.l.b16 %v3359
        %v4131 = vunpack.c.h.b16 %v3359
        %v4132 = vunpack.c.l.b16 %v3360
        %v4133 = vunpack.c.h.b16 %v3360
        %v4134 = vunpack.c.l.b16 %v3361
        %v4135 = vunpack.c.h.b16 %v3361
        %v4136 = vunpack.c.l.b16 %v3362
        %v4137 = vunpack.c.h.b16 %v3362
        %v4138 = vunpack.c.l.b16 %v3363
        %v4139 = vunpack.c.h.b16 %v3363
        %v4140 = vunpack.c.l.b16 %v3364
        %v4141 = vunpack.c.h.b16 %v3364
        %v4142 = vunpack.c.l.b16 %v3365
        %v4143 = vunpack.c.h.b16 %v3365
        %v4144 = vunpack.c.l.b16 %v3366
        %v4145 = vunpack.c.h.b16 %v3366
        %v4146 = vunpack.c.l.b16 %v3367
        %v4147 = vunpack.c.h.b16 %v3367
        %v4148 = vunpack.c.l.b16 %v3368
        %v4149 = vunpack.c.h.b16 %v3368
        %v4150 = vunpack.c.l.b16 %v3369
        %v4151 = vunpack.c.h.b16 %v3369
        %v4152 = vunpack.c.l.b16 %v3370
        %v4153 = vunpack.c.h.b16 %v3370
        %v4154 = vunpack.c.l.b16 %v3371
        %v4155 = vunpack.c.h.b16 %v3371
        %v4156 = vunpack.c.l.b16 %v3372
        %v4157 = vunpack.c.h.b16 %v3372
        %v4158 = vunpack.c.l.b16 %v3373
        %v4159 = vunpack.c.h.b16 %v3373
        %v4160 = vunpack.c.l.b16 %v3374
        %v4161 = vunpack.c.h.b16 %v3374
        %v4162 = vunpack.c.l.b16 %v3375
        %v4163 = vunpack.c.h.b16 %v3375
        %v4164 = vunpack.c.l.b16 %v3376
        %v4165 = vunpack.c.h.b16 %v3376
        %v4166 = vunpack.c.l.b16 %v3377
        %v4167 = vunpack.c.h.b16 %v3377
        %v4168 = vunpack.c.l.b16 %v3378
        %v4169 = vunpack.c.h.b16 %v3378
        %v4170 = vunpack.c.l.b16 %v3379
        %v4171 = vunpack.c.h.b16 %v3379
        %v4172 = vunpack.c.l.b16 %v3380
        %v4173 = vunpack.c.h.b16 %v3380
        %v4174 = vunpack.c.l.b16 %v3381
        %v4175 = vunpack.c.h.b16 %v3381
        %v4176 = vunpack.c.l.b16 %v3382
        %v4177 = vunpack.c.h.b16 %v3382
        %v4178 = vunpack.c.l.b16 %v3383
        %v4179 = vunpack.c.h.b16 %v3383
        %v4180 = vunpack.c.l.b16 %v3384
        %v4181 = vunpack.c.h.b16 %v3384
        %v4182 = vunpack.c.l.b16 %v3385
        %v4183 = vunpack.c.h.b16 %v3385
        %v4184 = vunpack.c.l.b16 %v3386
        %v4185 = vunpack.c.h.b16 %v3386
        %v4186 = vunpack.c.l.b16 %v3387
        %v4187 = vunpack.c.h.b16 %v3387
        %v4188 = vunpack.c.l.b16 %v3388
        %v4189 = vunpack.c.h.b16 %v3388
        %v4190 = vunpack.c.l.b16 %v3389
        %v4191 = vunpack.c.h.b16 %v3389
        %v4192 = vunpack.c.l.b16 %v3390
        %v4193 = vunpack.c.h.b16 %v3390
        %v4194 = vunpack.c.l.b16 %v3391
        %v4195 = vunpack.c.h.b16 %v3391
        %v4196 = vunpack.c.l.b16 %v3392
        %v4197 = vunpack.c.h.b16 %v3392
        %v4198 = vunpack.c.l.b16 %v3393
        %v4199 = vunpack.c.h.b16 %v3393
        %v4200 = vunpack.c.l.b16 %v3394
        %v4201 = vunpack.c.h.b16 %v3394
        %v4202 = vunpack.c.l.b16 %v3395
        %v4203 = vunpack.c.h.b16 %v3395
        %v4204 = vunpack.c.l.b16 %v3396
        %v4205 = vunpack.c.h.b16 %v3396
        %v4206 = vunpack.c.l.b16 %v3397
        %v4207 = vunpack.c.h.b16 %v3397
        %v4208 = vunpack.c.l.b16 %v3398
        %v4209 = vunpack.c.h.b16 %v3398
        %v4210 = vunpack.c.l.b16 %v3399
        %v4211 = vunpack.c.h.b16 %v3399
        %v4212 = vunpack.c.l.b16 %v3400
        %v4213 = vunpack.c.h.b16 %v3400
        %v4214 = vunpack.c.l.b16 %v3401
        %v4215 = vunpack.c.h.b16 %v3401
        %v4216 = vunpack.c.l.b16 %v3402
        %v4217 = vunpack.c.h.b16 %v3402
        %v4218 = vunpack.c.l.b16 %v3403
        %v4219 = vunpack.c.h.b16 %v3403
        %v4220 = vunpack.c.l.b16 %v3404
        %v4221 = vunpack.c.h.b16 %v3404
        %v4222 = vunpack.c.l.b16 %v3405
        %v4223 = vunpack.c.h.b16 %v3405
        %v4224 = vunpack.c.l.b16 %v3406
        %v4225 = vunpack.c.h.b16 %v3406
        %v4226 = vunpack.c.l.b16 %v3407
        %v4227 = vunpack.c.h.b16 %v3407
        %v4228 = vunpack.c.l.b16 %v3408
        %v4229 = vunpack.c.h.b16 %v3408
        %v4230 = vunpack.c.l.b16 %v3409
        %v4231 = vunpack.c.h.b16 %v3409
        %v4232 = vunpack.c.l.b16 %v3410
        %v4233 = vunpack.c.h.b16 %v3410
        %v4234 = vunpack.c.l.b16 %v3411
        %v4235 = vunpack.c.h.b16 %v3411
        %v4236 = vunpack.c.l.b16 %v3412
        %v4237 = vunpack.c.h.b16 %v3412
        %v4238 = vunpack.c.l.b16 %v3413
        %v4239 = vunpack.c.h.b16 %v3413
        %v4240 = vunpack.c.l.b16 %v3414
        %v4241 = vunpack.c.h.b16 %v3414
        %v4242 = vunpack.c.l.b16 %v3415
        %v4243 = vunpack.c.h.b16 %v3415
        %v4244 = vunpack.c.l.b16 %v3416
        %v4245 = vunpack.c.h.b16 %v3416
        %v4246 = vunpack.c.l.b16 %v3417
        %v4247 = vunpack.c.h.b16 %v3417
        %v4248 = vunpack.c.l.b16 %v3418
        %v4249 = vunpack.c.h.b16 %v3418
        %v4250 = vunpack.c.l.b16 %v3419
        %v4251 = vunpack.c.h.b16 %v3419
        %v4252 = vunpack.c.l.b16 %v3420
        %v4253 = vunpack.c.h.b16 %v3420
        %v4254 = vunpack.c.l.b16 %v3421
        %v4255 = vunpack.c.h.b16 %v3421
        %v4256 = vunpack.c.l.b16 %v3422
        %v4257 = vunpack.c.h.b16 %v3422
        %v4258 = vunpack.c.l.b16 %v3423
        %v4259 = vunpack.c.h.b16 %v3423
        %v4260 = vunpack.c.l.b16 %v3424
        %v4261 = vunpack.c.h.b16 %v3424
        %v4262 = vunpack.c.l.b16 %v3425
        %v4263 = vunpack.c.h.b16 %v3425
        %v4264 = vunpack.c.l.b16 %v3426
        %v4265 = vunpack.c.h.b16 %v3426
        %v4266 = vunpack.c.l.b16 %v3427
        %v4267 = vunpack.c.h.b16 %v3427
        %v4268 = vunpack.c.l.b16 %v3428
        %v4269 = vunpack.c.h.b16 %v3428
        %v4270 = vunpack.c.l.b16 %v3429
        %v4271 = vunpack.c.h.b16 %v3429
        %v4272 = vunpack.c.l.b16 %v3430
        %v4273 = vunpack.c.h.b16 %v3430
        %v4274 = vunpack.c.l.b16 %v3431
        %v4275 = vunpack.c.h.b16 %v3431
        %v4276 = vunpack.c.l.b16 %v3432
        %v4277 = vunpack.c.h.b16 %v3432
        %v4278 = vunpack.c.l.b16 %v3433
        %v4279 = vunpack.c.h.b16 %v3433
        %v4280 = vunpack.c.l.b16 %v3434
        %v4281 = vunpack.c.h.b16 %v3434
        %v4282 = vunpack.c.l.b16 %v3435
        %v4283 = vunpack.c.h.b16 %v3435
        %v4284 = vunpack.c.l.b16 %v3436
        %v4285 = vunpack.c.h.b16 %v3436
        %v4286 = vunpack.c.l.b16 %v3437
        %v4287 = vunpack.c.h.b16 %v3437
        %v4288 = vunpack.c.l.b16 %v3438
        %v4289 = vunpack.c.h.b16 %v3438
        %v4290 = vunpack.c.l.b16 %v3439
        %v4291 = vunpack.c.h.b16 %v3439
        %v4292 = vunpack.c.l.b16 %v3440
        %v4293 = vunpack.c.h.b16 %v3440
        %v4294 = vunpack.c.l.b16 %v3441
        %v4295 = vunpack.c.h.b16 %v3441
        %v4296 = vunpack.c.l.b16 %v3442
        %v4297 = vunpack.c.h.b16 %v3442
        %v4298 = vunpack.c.l.b16 %v3443
        %v4299 = vunpack.c.h.b16 %v3443
        %v4300 = vunpack.c.l.b16 %v3444
        %v4301 = vunpack.c.h.b16 %v3444
        %v4302 = vunpack.c.l.b16 %v3445
        %v4303 = vunpack.c.h.b16 %v3445
        %v4304 = vunpack.c.l.b16 %v3446
        %v4305 = vunpack.c.h.b16 %v3446
        %v4306 = vunpack.c.l.b16 %v3447
        %v4307 = vunpack.c.h.b16 %v3447
        %v4308 = vunpack.c.l.b16 %v3448
        %v4309 = vunpack.c.h.b16 %v3448
        %v4310 = vunpack.c.l.b16 %v3449
        %v4311 = vunpack.c.h.b16 %v3449
        %v4312 = vunpack.c.l.b16 %v3450
        %v4313 = vunpack.c.h.b16 %v3450
        %v4314 = vunpack.c.l.b16 %v3451
        %v4315 = vunpack.c.h.b16 %v3451
        %v4316 = vunpack.c.l.b16 %v3452
        %v4317 = vunpack.c.h.b16 %v3452
        %v4318 = vunpack.c.l.b16 %v3453
        %v4319 = vunpack.c.h.b16 %v3453
        %v4320 = vunpack.c.l.b16 %v3454
        %v4321 = vunpack.c.h.b16 %v3454
        %v4322 = vunpack.c.l.b16 %v3455
        %v4323 = vunpack.c.h.b16 %v3455
        %v4324 = vunpack.c.l.b16 %v3456
        %v4325 = vunpack.c.h.b16 %v3456
        %v4326 = vunpack.c.l.b16 %v3457
        %v4327 = vunpack.c.h.b16 %v3457
        %v4328 = vunpack.c.l.b16 %v3458
        %v4329 = vunpack.c.h.b16 %v3458
        %v4330 = vunpack.c.l.b16 %v3459
        %v4331 = vunpack.c.h.b16 %v3459
        %v4332 = vunpack.c.l.b16 %v3460
        %v4333 = vunpack.c.h.b16 %v3460
        %v4334 = vunpack.c.l.b16 %v3461
        %v4335 = vunpack.c.h.b16 %v3461
        %v4336 = vunpack.c.l.b16 %v3462
        %v4337 = vunpack.c.h.b16 %v3462
        %v4338 = vunpack.c.l.b16 %v3463
        %v4339 = vunpack.c.h.b16 %v3463
        %v4340 = vunpack.c.l.b16 %v3464
        %v4341 = vunpack.c.h.b16 %v3464
        %v4342 = vunpack.c.l.b16 %v3465
        %v4343 = vunpack.c.h.b16 %v3465
        %v4344 = vunpack.c.l.b16 %v3466
        %v4345 = vunpack.c.h.b16 %v3466
        %v4346 = vunpack.c.l.b16 %v3467
        %v4347 = vunpack.c.h.b16 %v3467
        %v4348 = vunpack.c.l.b16 %v3468
        %v4349 = vunpack.c.h.b16 %v3468
        %v4350 = vunpack.c.l.b16 %v3469
        %v4351 = vunpack.c.h.b16 %v3469
        %v4352 = vunpack.c.l.b16 %v3470
        %v4353 = vunpack.c.h.b16 %v3470
        %v4354 = vunpack.c.l.b16 %v3471
        %v4355 = vunpack.c.h.b16 %v3471
        %v4356 = vunpack.c.l.b16 %v3472
        %v4357 = vunpack.c.h.b16 %v3472
        %v4358 = vunpack.c.l.b16 %v3473
        %v4359 = vunpack.c.h.b16 %v3473
        %v4360 = vunpack.c.l.b16 %v3474
        %v4361 = vunpack.c.h.b16 %v3474
        %v4362 = vunpack.c.l.b16 %v3475
        %v4363 = vunpack.c.h.b16 %v3475
        %v4364 = vunpack.c.l.b16 %v3476
        %v4365 = vunpack.c.h.b16 %v3476
        %v4366 = vunpack.c.l.b16 %v3477
        %v4367 = vunpack.c.h.b16 %v3477
        %v4368 = vunpack.c.l.b16 %v3478
        %v4369 = vunpack.c.h.b16 %v3478
        %v4370 = vunpack.c.l.b16 %v3479
        %v4371 = vunpack.c.h.b16 %v3479
        %v4372 = vunpack.c.l.b16 %v3480
        %v4373 = vunpack.c.h.b16 %v3480
        %v4374 = vunpack.c.l.b16 %v3481
        %v4375 = vunpack.c.h.b16 %v3481
        %v4376 = vunpack.c.l.b16 %v3482
        %v4377 = vunpack.c.h.b16 %v3482
        %v4378 = vunpack.c.l.b16 %v3483
        %v4379 = vunpack.c.h.b16 %v3483
        %v4380 = vunpack.c.l.b16 %v3484
        %v4381 = vunpack.c.h.b16 %v3484
        %v4382 = vunpack.c.l.b16 %v3485
        %v4383 = vunpack.c.h.b16 %v3485
        %v4384 = vunpack.c.l.b16 %v3486
        %v4385 = vunpack.c.h.b16 %v3486
        %v4386 = vunpack.c.l.b16 %v3487
        %v4387 = vunpack.c.h.b16 %v3487
        %v4388 = vunpack.c.l.b16 %v3488
        %v4389 = vunpack.c.h.b16 %v3488
        %v4390 = vunpack.c.l.b16 %v3489
        %v4391 = vunpack.c.h.b16 %v3489
        %v4392 = vunpack.c.l.b16 %v3490
        %v4393 = vunpack.c.h.b16 %v3490
        %v4394 = vunpack.c.l.b16 %v3491
        %v4395 = vunpack.c.h.b16 %v3491
        %v4396 = vunpack.c.l.b16 %v3492
        %v4397 = vunpack.c.h.b16 %v3492
        %v4398 = vunpack.c.l.b16 %v3493
        %v4399 = vunpack.c.h.b16 %v3493
        %v4400 = vunpack.c.l.b16 %v3494
        %v4401 = vunpack.c.h.b16 %v3494
        %v4402 = vunpack.c.l.b16 %v3495
        %v4403 = vunpack.c.h.b16 %v3495
        %v4404 = vunpack.c.l.b16 %v3496
        %v4405 = vunpack.c.h.b16 %v3496
        %v4406 = vunpack.c.l.b16 %v3497
        %v4407 = vunpack.c.h.b16 %v3497
        %v4408 = vunpack.c.l.b16 %v3498
        %v4409 = vunpack.c.h.b16 %v3498
        %v4410 = vunpack.c.l.b16 %v3499
        %v4411 = vunpack.c.h.b16 %v3499
        %v4412 = vunpack.c.l.b16 %v3500
        %v4413 = vunpack.c.h.b16 %v3500
        %v4414 = vunpack.c.l.b16 %v3501
        %v4415 = vunpack.c.h.b16 %v3501
        %v4416 = vunpack.c.l.b16 %v3502
        %v4417 = vunpack.c.h.b16 %v3502
        %v4418 = vunpack.c.l.b16 %v3503
        %v4419 = vunpack.c.h.b16 %v3503
        %v4420 = vunpack.c.l.b16 %v3504
        %v4421 = vunpack.c.h.b16 %v3504
        %v4422 = vunpack.c.l.b16 %v3505
        %v4423 = vunpack.c.h.b16 %v3505
        %v4424 = vunpack.c.l.b16 %v3506
        %v4425 = vunpack.c.h.b16 %v3506
        %v4426 = vunpack.c.l.b16 %v3507
        %v4427 = vunpack.c.h.b16 %v3507
        %v4428 = vunpack.c.l.b16 %v3508
        %v4429 = vunpack.c.h.b16 %v3508
        %v4430 = vunpack.c.l.b16 %v3509
        %v4431 = vunpack.c.h.b16 %v3509
        %v4432 = vunpack.c.l.b16 %v3510
        %v4433 = vunpack.c.h.b16 %v3510
        %v4434 = vunpack.c.l.b16 %v3511
        %v4435 = vunpack.c.h.b16 %v3511
        %v4436 = vunpack.c.l.b16 %v3512
        %v4437 = vunpack.c.h.b16 %v3512
        %v4438 = vunpack.c.l.b16 %v3513
        %v4439 = vunpack.c.h.b16 %v3513
        %v4440 = vunpack.c.l.b16 %v3514
        %v4441 = vunpack.c.h.b16 %v3514
        %v4442 = vunpack.c.l.b16 %v3515
        %v4443 = vunpack.c.h.b16 %v3515
        %v4444 = vunpack.c.l.b16 %v3516
        %v4445 = vunpack.c.h.b16 %v3516
        %v4446 = vunpack.c.l.b16 %v3517
        %v4447 = vunpack.c.h.b16 %v3517
        %v4448 = vunpack.c.l.b16 %v3518
        %v4449 = vunpack.c.h.b16 %v3518
        %v4450 = vunpack.c.l.b16 %v3519
        %v4451 = vunpack.c.h.b16 %v3519
        %v4452 = vunpack.c.l.b16 %v3520
        %v4453 = vunpack.c.h.b16 %v3520
        %v4454 = vunpack.c.l.b16 %v3521
        %v4455 = vunpack.c.h.b16 %v3521
        %v4456 = vunpack.c.l.b16 %v3522
        %v4457 = vunpack.c.h.b16 %v3522
        %v4458 = vunpack.c.l.b16 %v3523
        %v4459 = vunpack.c.h.b16 %v3523
        %v4460 = vunpack.c.l.b16 %v3524
        %v4461 = vunpack.c.h.b16 %v3524
        %v4462 = vunpack.c.l.b16 %v3525
        %v4463 = vunpack.c.h.b16 %v3525
        %v4464 = vunpack.c.l.b16 %v3526
        %v4465 = vunpack.c.h.b16 %v3526
        %v4466 = vunpack.c.l.b16 %v3527
        %v4467 = vunpack.c.h.b16 %v3527
        %v4468 = vunpack.c.l.b16 %v3528
        %v4469 = vunpack.c.h.b16 %v3528
        %v4470 = vunpack.c.l.b16 %v3529
        %v4471 = vunpack.c.h.b16 %v3529
        %v4472 = vunpack.c.l.b16 %v3530
        %v4473 = vunpack.c.h.b16 %v3530
        %v4474 = vunpack.c.l.b16 %v3531
        %v4475 = vunpack.c.h.b16 %v3531
        %v4476 = vunpack.c.l.b16 %v3532
        %v4477 = vunpack.c.h.b16 %v3532
        %v4478 = vunpack.c.l.b16 %v3533
        %v4479 = vunpack.c.h.b16 %v3533
        %v4480 = vunpack.c.l.b16 %v3534
        %v4481 = vunpack.c.h.b16 %v3534
        %v4482 = vunpack.c.l.b16 %v3535
        %v4483 = vunpack.c.h.b16 %v3535
        %v4484 = vunpack.c.l.b16 %v3536
        %v4485 = vunpack.c.h.b16 %v3536
        %v4486 = vunpack.c.l.b16 %v3537
        %v4487 = vunpack.c.h.b16 %v3537
        %v4488 = vunpack.c.l.b16 %v3538
        %v4489 = vunpack.c.h.b16 %v3538
        %v4490 = vunpack.c.l.b16 %v3539
        %v4491 = vunpack.c.h.b16 %v3539
        %v4492 = vunpack.c.l.b16 %v3540
        %v4493 = vunpack.c.h.b16 %v3540
        %v4494 = vunpack.c.l.b16 %v3541
        %v4495 = vunpack.c.h.b16 %v3541
        %v4496 = vunpack.c.l.b16 %v3542
        %v4497 = vunpack.c.h.b16 %v3542
        %v4498 = vunpack.c.l.b16 %v3543
        %v4499 = vunpack.c.h.b16 %v3543
        %v4500 = vunpack.c.l.b16 %v3544
        %v4501 = vunpack.c.h.b16 %v3544
        %v4502 = vunpack.c.l.b16 %v3545
        %v4503 = vunpack.c.h.b16 %v3545
        %v4504 = vunpack.c.l.b16 %v3546
        %v4505 = vunpack.c.h.b16 %v3546
        %v4506 = vunpack.c.l.b16 %v3547
        %v4507 = vunpack.c.h.b16 %v3547
        %v4508 = vunpack.c.l.b16 %v3548
        %v4509 = vunpack.c.h.b16 %v3548
        %v4510 = vunpack.c.l.b16 %v3549
        %v4511 = vunpack.c.h.b16 %v3549
        %v4512 = vunpack.c.l.b16 %v3550
        %v4513 = vunpack.c.h.b16 %v3550
        %v4514 = vunpack.c.l.b16 %v3551
        %v4515 = vunpack.c.h.b16 %v3551
        %v4516 = vunpack.c.l.b16 %v3552
        %v4517 = vunpack.c.h.b16 %v3552
        %v4518 = vunpack.c.l.b16 %v3553
        %v4519 = vunpack.c.h.b16 %v3553
        %v4520 = vunpack.c.l.b16 %v3554
        %v4521 = vunpack.c.h.b16 %v3554
        %v4522 = vunpack.c.l.b16 %v3555
        %v4523 = vunpack.c.h.b16 %v3555
        %v4524 = vunpack.c.l.b16 %v3556
        %v4525 = vunpack.c.h.b16 %v3556
        %v4526 = vunpack.c.l.b16 %v3557
        %v4527 = vunpack.c.h.b16 %v3557
        %v4528 = vunpack.c.l.b16 %v3558
        %v4529 = vunpack.c.h.b16 %v3558
        %v4530 = vunpack.c.l.b16 %v3559
        %v4531 = vunpack.c.h.b16 %v3559
        %v4532 = vunpack.c.l.b16 %v3560
        %v4533 = vunpack.c.h.b16 %v3560
        %v4534 = vunpack.c.l.b16 %v3561
        %v4535 = vunpack.c.h.b16 %v3561
        %v4536 = vunpack.c.l.b16 %v3562
        %v4537 = vunpack.c.h.b16 %v3562
        %v4538 = vunpack.c.l.b16 %v3563
        %v4539 = vunpack.c.h.b16 %v3563
        %v4540 = vunpack.c.l.b16 %v3564
        %v4541 = vunpack.c.h.b16 %v3564
        %v4542 = vunpack.c.l.b16 %v3565
        %v4543 = vunpack.c.h.b16 %v3565
        %v4544 = vunpack.c.l.b16 %v3566
        %v4545 = vunpack.c.h.b16 %v3566
        %v4546 = vunpack.c.l.b16 %v3567
        %v4547 = vunpack.c.h.b16 %v3567
        %v4548 = vunpack.c.l.b16 %v3568
        %v4549 = vunpack.c.h.b16 %v3568
        %v4550 = vunpack.c.l.b16 %v3569
        %v4551 = vunpack.c.h.b16 %v3569
        %v4552 = vunpack.c.l.b16 %v3570
        %v4553 = vunpack.c.h.b16 %v3570
        %v4554 = vunpack.c.l.b16 %v3571
        %v4555 = vunpack.c.h.b16 %v3571
        %v4556 = vunpack.c.l.b16 %v3572
        %v4557 = vunpack.c.h.b16 %v3572
        %v4558 = vunpack.c.l.b16 %v3573
        %v4559 = vunpack.c.h.b16 %v3573
        %v4560 = vunpack.c.l.b16 %v3574
        %v4561 = vunpack.c.h.b16 %v3574
        %v4562 = vunpack.c.l.b16 %v3575
        %v4563 = vunpack.c.h.b16 %v3575
        %v4564 = vunpack.c.l.b16 %v3576
        %v4565 = vunpack.c.h.b16 %v3576
        %v4566 = vunpack.c.l.b16 %v3577
        %v4567 = vunpack.c.h.b16 %v3577
        %v4568 = vunpack.c.l.b16 %v3578
        %v4569 = vunpack.c.h.b16 %v3578
        %v4570 = vunpack.c.l.b16 %v3579
        %v4571 = vunpack.c.h.b16 %v3579
        %v4572 = vunpack.c.l.b16 %v3580
        %v4573 = vunpack.c.h.b16 %v3580
        %v4574 = vunpack.c.l.b16 %v3581
        %v4575 = vunpack.c.h.b16 %v3581
        %v4576 = vunpack.c.l.b16 %v3582
        %v4577 = vunpack.c.h.b16 %v3582
        %v4578 = vunpack.c.l.b16 %v3583
        %v4579 = vunpack.c.h.b16 %v3583
        %v4580 = vunpack.c.l.b16 %v3584
        %v4581 = vunpack.c.h.b16 %v3584
        %v4582 = vunpack.c.l.b16 %v3585
        %v4583 = vunpack.c.h.b16 %v3585
        %v4584 = vunpack.c.l.b16 %v3586
        %v4585 = vunpack.c.h.b16 %v3586
        %v4586 = vunpack.c.l.b16 %v3587
        %v4587 = vunpack.c.h.b16 %v3587
        %v4588 = vunpack.c.l.b16 %v3588
        %v4589 = vunpack.c.h.b16 %v3588
        %v4590 = vunpack.c.l.b16 %v3589
        %v4591 = vunpack.c.h.b16 %v3589
        %v4592 = vunpack.c.l.b16 %v3590
        %v4593 = vunpack.c.h.b16 %v3590
        %v4594 = vunpack.c.l.b16 %v3591
        %v4595 = vunpack.c.h.b16 %v3591
        %v4596 = vunpack.c.l.b16 %v3592
        %v4597 = vunpack.c.h.b16 %v3592
        %v4598 = vunpack.c.l.b16 %v3593
        %v4599 = vunpack.c.h.b16 %v3593
        %v4600 = vunpack.c.l.b16 %v3594
        %v4601 = vunpack.c.h.b16 %v3594
        %v4602 = vunpack.c.l.b16 %v3595
        %v4603 = vunpack.c.h.b16 %v3595
        %v4604 = vunpack.c.l.b16 %v3596
        %v4605 = vunpack.c.h.b16 %v3596
        %v4606 = vunpack.c.l.b16 %v3597
        %v4607 = vunpack.c.h.b16 %v3597
        %v4608 = vunpack.c.l.b16 %v3598
        %v4609 = vunpack.c.h.b16 %v3598
        %v4610 = vunpack.c.l.b16 %v3599
        %v4611 = vunpack.c.h.b16 %v3599
        %v4612 = vunpack.c.l.b16 %v3600
        %v4613 = vunpack.c.h.b16 %v3600
        %v4614 = vunpack.c.l.b16 %v3601
        %v4615 = vunpack.c.h.b16 %v3601
        %v4616 = vunpack.c.l.b16 %v3602
        %v4617 = vunpack.c.h.b16 %v3602
        %v4618 = vunpack.c.l.b16 %v3603
        %v4619 = vunpack.c.h.b16 %v3603
        %v4620 = vunpack.c.l.b16 %v3604
        %v4621 = vunpack.c.h.b16 %v3604
        %v4622 = vunpack.c.l.b16 %v3605
        %v4623 = vunpack.c.h.b16 %v3605
        %v4624 = vunpack.c.l.b16 %v3606
        %v4625 = vunpack.c.h.b16 %v3606
        %v4626 = vunpack.c.l.b16 %v3607
        %v4627 = vunpack.c.h.b16 %v3607
        %v4628 = vpack.c.b16 %v4054, %v4052
        %v4629 = vpack.c.b16 %v4055, %v4053
        %v4630 = vpack.c.b16 %v4058, %v4056
        %v4631 = vpack.c.b16 %v4059, %v4057
        %v4632 = vpack.c.b16 %v4062, %v4060
        %v4633 = vpack.c.b16 %v4063, %v4061
        %v4634 = vpack.c.b16 %v4066, %v4064
        %v4635 = vpack.c.b16 %v4067, %v4065
        %v4636 = vpack.c.b16 %v4070, %v4068
        %v4637 = vpack.c.b16 %v4071, %v4069
        %v4638 = vpack.c.b16 %v4074, %v4072
        %v4639 = vpack.c.b16 %v4075, %v4073
        %v4640 = vpack.c.b16 %v4078, %v4076
        %v4641 = vpack.c.b16 %v4079, %v4077
        %v4642 = vpack.c.b16 %v4082, %v4080
        %v4643 = vpack.c.b16 %v4083, %v4081
        %v4644 = vpack.c.b16 %v4086, %v4084
        %v4645 = vpack.c.b16 %v4087, %v4085
        %v4646 = vpack.c.b16 %v4090, %v4088
        %v4647 = vpack.c.b16 %v4091, %v4089
        %v4648 = vpack.c.b16 %v4094, %v4092
        %v4649 = vpack.c.b16 %v4095, %v4093
        %v4650 = vpack.c.b16 %v4098, %v4096
        %v4651 = vpack.c.b16 %v4099, %v4097
        %v4652 = vpack.c.b16 %v4102, %v4100
        %v4653 = vpack.c.b16 %v4103, %v4101
        %v4654 = vpack.c.b16 %v4106, %v4104
        %v4655 = vpack.c.b16 %v4107, %v4105
        %v4656 = vpack.c.b16 %v4110, %v4108
        %v4657 = vpack.c.b16 %v4111, %v4109
        %v4658 = vpack.c.b16 %v4114, %v4112
        %v4659 = vpack.c.b16 %v4115, %v4113
        %v4660 = vpack.c.b16 %v4118, %v4116
        %v4661 = vpack.c.b16 %v4119, %v4117
        %v4662 = vpack.c.b16 %v4122, %v4120
        %v4663 = vpack.c.b16 %v4123, %v4121
        %v4664 = vpack.c.b16 %v4126, %v4124
        %v4665 = vpack.c.b16 %v4127, %v4125
        %v4666 = vpack.c.b16 %v4130, %v4128
        %v4667 = vpack.c.b16 %v4131, %v4129
        %v4668 = vpack.c.b16 %v4134, %v4132
        %v4669 = vpack.c.b16 %v4135, %v4133
        %v4670 = vpack.c.b16 %v4138, %v4136
        %v4671 = vpack.c.b16 %v4139, %v4137
        %v4672 = vpack.c.b16 %v4142, %v4140
        %v4673 = vpack.c.b16 %v4143, %v4141
        %v4674 = vpack.c.b16 %v4146, %v4144
        %v4675 = vpack.c.b16 %v4147, %v4145
        %v4676 = vpack.c.b16 %v4150, %v4148
        %v4677 = vpack.c.b16 %v4151, %v4149
        %v4678 = vpack.c.b16 %v4154, %v4152
        %v4679 = vpack.c.b16 %v4155, %v4153
        %v4680 = vpack.c.b16 %v4158, %v4156
        %v4681 = vpack.c.b16 %v4159, %v4157
        %v4682 = vpack.c.b16 %v4162, %v4160
        %v4683 = vpack.c.b16 %v4163, %v4161
        %v4684 = vpack.c.b16 %v4166, %v4164
        %v4685 = vpack.c.b16 %v4167, %v4165
        %v4686 = vpack.c.b16 %v4170, %v4168
        %v4687 = vpack.c.b16 %v4171, %v4169
        %v4688 = vpack.c.b16 %v4174, %v4172
        %v4689 = vpack.c.b16 %v4175, %v4173
        %v4690 = vpack.c.b16 %v4178, %v4176
        %v4691 = vpack.c.b16 %v4179, %v4177
        %v4692 = vpack.c.b16 %v4182, %v4180
        %v4693 = vpack.c.b16 %v4183, %v4181
        %v4694 = vpack.c.b16 %v4186, %v4184
        %v4695 = vpack.c.b16 %v4187, %v4185
        %v4696 = vpack.c.b16 %v4190, %v4188
        %v4697 = vpack.c.b16 %v4191, %v4189
        %v4698 = vpack.c.b16 %v4194, %v4192
        %v4699 = vpack.c.b16 %v4195, %v4193
        %v4700 = vpack.c.b16 %v4198, %v4196
        %v4701 = vpack.c.b16 %v4199, %v4197
        %v4702 = vpack.c.b16 %v4202, %v4200
        %v4703 = vpack.c.b16 %v4203, %v4201
        %v4704 = vpack.c.b16 %v4206, %v4204
        %v4705 = vpack.c.b16 %v4207, %v4205
        %v4706 = vpack.c.b16 %v4210, %v4208
        %v4707 = vpack.c.b16 %v4211, %v4209
        %v4708 = vpack.c.b16 %v4214, %v4212
        %v4709 = vpack.c.b16 %v4215, %v4213
        %v4710 = vpack.c.b16 %v4218, %v4216
        %v4711 = vpack.c.b16 %v4219, %v4217
        %v4712 = vpack.c.b16 %v4222, %v4220
        %v4713 = vpack.c.b16 %v4223, %v4221
        %v4714 = vpack.c.b16 %v4226, %v4224
        %v4715 = vpack.c.b16 %v4227, %v4225
        %v4716 = vpack.c.b16 %v4230, %v4228
        %v4717 = vpack.c.b16 %v4231, %v4229
        %v4718 = vpack.c.b16 %v4234, %v4232
        %v4719 = vpack.c.b16 %v4235, %v4233
        %v4720 = vpack.c.b16 %v4238, %v4236
        %v4721 = vpack.c.b16 %v4239, %v4237
        %v4722 = vpack.c.b16 %v4242, %v4240
        %v4723 = vpack.c.b16 %v4243, %v4241
        %v4724 = vpack.c.b16 %v4246, %v4244
        %v4725 = vpack.c.b16 %v4247, %v4245
        %v4726 = vpack.c.b16 %v4250, %v4248
        %v4727 = vpack.c.b16 %v4251, %v4249
        %v4728 = vpack.c.b16 %v4254, %v4252
        %v4729 = vpack.c.b16 %v4255, %v4253
        %v4730 = vpack.c.b16 %v4258, %v4256
        %v4731 = vpack.c.b16 %v4259, %v4257
        %v4732 = vpack.c.b16 %v4262, %v4260
        %v4733 = vpack.c.b16 %v4263, %v4261
        %v4734 = vpack.c.b16 %v4266, %v4264
        %v4735 = vpack.c.b16 %v4267, %v4265
        %v4736 = vpack.c.b16 %v4270, %v4268
        %v4737 = vpack.c.b16 %v4271, %v4269
        %v4738 = vpack.c.b16 %v4274, %v4272
        %v4739 = vpack.c.b16 %v4275, %v4273
        %v4740 = vpack.c.b16 %v4278, %v4276
        %v4741 = vpack.c.b16 %v4279, %v4277
        %v4742 = vpack.c.b16 %v4282, %v4280
        %v4743 = vpack.c.b16 %v4283, %v4281
        %v4744 = vpack.c.b16 %v4286, %v4284
        %v4745 = vpack.c.b16 %v4287, %v4285
        %v4746 = vpack.c.b16 %v4290, %v4288
        %v4747 = vpack.c.b16 %v4291, %v4289
        %v4748 = vpack.c.b16 %v4294, %v4292
        %v4749 = vpack.c.b16 %v4295, %v4293
        %v4750 = vpack.c.b16 %v4298, %v4296
        %v4751 = vpack.c.b16 %v4299, %v4297
        %v4752 = vpack.c.b16 %v4302, %v4300
        %v4753 = vpack.c.b16 %v4303, %v4301
        %v4754 = vpack.c.b16 %v4306, %v4304
        %v4755 = vpack.c.b16 %v4307, %v4305
        %v4756 = vpack.c.b16 %v4310, %v4308
        %v4757 = vpack.c.b16 %v4311, %v4309
        %v4758 = vpack.c.b16 %v4314, %v4312
        %v4759 = vpack.c.b16 %v4315, %v4313
        %v4760 = vpack.c.b16 %v4318, %v4316
        %v4761 = vpack.c.b16 %v4319, %v4317
        %v4762 = vpack.c.b16 %v4322, %v4320
        %v4763 = vpack.c.b16 %v4323, %v4321
        %v4764 = vpack.c.b16 %v4326, %v4324
        %v4765 = vpack.c.b16 %v4327, %v4325
        %v4766 = vpack.c.b16 %v4330, %v4328
        %v4767 = vpack.c.b16 %v4331, %v4329
        %v4768 = vpack.c.b16 %v4334, %v4332
        %v4769 = vpack.c.b16 %v4335, %v4333
        %v4770 = vpack.c.b16 %v4338, %v4336
        %v4771 = vpack.c.b16 %v4339, %v4337
        %v4772 = vpack.c.b16 %v4342, %v4340
        %v4773 = vpack.c.b16 %v4343, %v4341
        %v4774 = vpack.c.b16 %v4346, %v4344
        %v4775 = vpack.c.b16 %v4347, %v4345
        %v4776 = vpack.c.b16 %v4350, %v4348
        %v4777 = vpack.c.b16 %v4351, %v4349
        %v4778 = vpack.c.b16 %v4354, %v4352
        %v4779 = vpack.c.b16 %v4355, %v4353
        %v4780 = vpack.c.b16 %v4358, %v4356
        %v4781 = vpack.c.b16 %v4359, %v4357
        %v4782 = vpack.c.b16 %v4362, %v4360
        %v4783 = vpack.c.b16 %v4363, %v4361
        %v4784 = vpack.c.b16 %v4366, %v4364
        %v4785 = vpack.c.b16 %v4367, %v4365
        %v4786 = vpack.c.b16 %v4370, %v4368
        %v4787 = vpack.c.b16 %v4371, %v4369
        %v4788 = vpack.c.b16 %v4374, %v4372
        %v4789 = vpack.c.b16 %v4375, %v4373
        %v4790 = vpack.c.b16 %v4378, %v4376
        %v4791 = vpack.c.b16 %v4379, %v4377
        %v4792 = vpack.c.b16 %v4382, %v4380
        %v4793 = vpack.c.b16 %v4383, %v4381
        %v4794 = vpack.c.b16 %v4386, %v4384
        %v4795 = vpack.c.b16 %v4387, %v4385
        %v4796 = vpack.c.b16 %v4390, %v4388
        %v4797 = vpack.c.b16 %v4391, %v4389
        %v4798 = vpack.c.b16 %v4394, %v4392
        %v4799 = vpack.c.b16 %v4395, %v4393
        %v4800 = vpack.c.b16 %v4398, %v4396
        %v4801 = vpack.c.b16 %v4399, %v4397
        %v4802 = vpack.c.b16 %v4402, %v4400
        %v4803 = vpack.c.b16 %v4403, %v4401
        %v4804 = vpack.c.b16 %v4406, %v4404
        %v4805 = vpack.c.b16 %v4407, %v4405
        %v4806 = vpack.c.b16 %v4410, %v4408
        %v4807 = vpack.c.b16 %v4411, %v4409
        %v4808 = vpack.c.b16 %v4414, %v4412
        %v4809 = vpack.c.b16 %v4415, %v4413
        %v4810 = vpack.c.b16 %v4418, %v4416
        %v4811 = vpack.c.b16 %v4419, %v4417
        %v4812 = vpack.c.b16 %v4422, %v4420
        %v4813 = vpack.c.b16 %v4423, %v4421
        %v4814 = vpack.c.b16 %v4426, %v4424
        %v4815 = vpack.c.b16 %v4427, %v4425
        %v4816 = vpack.c.b16 %v4430, %v4428
        %v4817 = vpack.c.b16 %v4431, %v4429
        %v4818 = vpack.c.b16 %v4434, %v4432
        %v4819 = vpack.c.b16 %v4435, %v4433
        %v4820 = vpack.c.b16 %v4438, %v4436
        %v4821 = vpack.c.b16 %v4439, %v4437
        %v4822 = vpack.c.b16 %v4442, %v4440
        %v4823 = vpack.c.b16 %v4443, %v4441
        %v4824 = vpack.c.b16 %v4446, %v4444
        %v4825 = vpack.c.b16 %v4447, %v4445
        %v4826 = vpack.c.b16 %v4450, %v4448
        %v4827 = vpack.c.b16 %v4451, %v4449
        %v4828 = vpack.c.b16 %v4454, %v4452
        %v4829 = vpack.c.b16 %v4455, %v4453
        %v4830 = vpack.c.b16 %v4458, %v4456
        %v4831 = vpack.c.b16 %v4459, %v4457
        %v4832 = vpack.c.b16 %v4462, %v4460
        %v4833 = vpack.c.b16 %v4463, %v4461
        %v4834 = vpack.c.b16 %v4466, %v4464
        %v4835 = vpack.c.b16 %v4467, %v4465
        %v4836 = vpack.c.b16 %v4470, %v4468
        %v4837 = vpack.c.b16 %v4471, %v4469
        %v4838 = vpack.c.b16 %v4474, %v4472
        %v4839 = vpack.c.b16 %v4475, %v4473
        %v4840 = vpack.c.b16 %v4478, %v4476
        %v4841 = vpack.c.b16 %v4479, %v4477
        %v4842 = vpack.c.b16 %v4482, %v4480
        %v4843 = vpack.c.b16 %v4483, %v4481
        %v4844 = vpack.c.b16 %v4486, %v4484
        %v4845 = vpack.c.b16 %v4487, %v4485
        %v4846 = vpack.c.b16 %v4490, %v4488
        %v4847 = vpack.c.b16 %v4491, %v4489
        %v4848 = vpack.c.b16 %v4494, %v4492
        %v4849 = vpack.c.b16 %v4495, %v4493
        %v4850 = vpack.c.b16 %v4498, %v4496
        %v4851 = vpack.c.b16 %v4499, %v4497
        %v4852 = vpack.c.b16 %v4502, %v4500
        %v4853 = vpack.c.b16 %v4503, %v4501
        %v4854 = vpack.c.b16 %v4506, %v4504
        %v4855 = vpack.c.b16 %v4507, %v4505
        %v4856 = vpack.c.b16 %v4510, %v4508
        %v4857 = vpack.c.b16 %v4511, %v4509
        %v4858 = vpack.c.b16 %v4514, %v4512
        %v4859 = vpack.c.b16 %v4515, %v4513
        %v4860 = vpack.c.b16 %v4518, %v4516
        %v4861 = vpack.c.b16 %v4519, %v4517
        %v4862 = vpack.c.b16 %v4522, %v4520
        %v4863 = vpack.c.b16 %v4523, %v4521
        %v4864 = vpack.c.b16 %v4526, %v4524
        %v4865 = vpack.c.b16 %v4527, %v4525
        %v4866 = vpack.c.b16 %v4530, %v4528
        %v4867 = vpack.c.b16 %v4531, %v4529
        %v4868 = vpack.c.b16 %v4534, %v4532
        %v4869 = vpack.c.b16 %v4535, %v4533
        %v4870 = vpack.c.b16 %v4538, %v4536
        %v4871 = vpack.c.b16 %v4539, %v4537
        %v4872 = vpack.c.b16 %v4542, %v4540
        %v4873 = vpack.c.b16 %v4543, %v4541
        %v4874 = vpack.c.b16 %v4546, %v4544
        %v4875 = vpack.c.b16 %v4547, %v4545
        %v4876 = vpack.c.b16 %v4550, %v4548
        %v4877 = vpack.c.b16 %v4551, %v4549
        %v4878 = vpack.c.b16 %v4554, %v4552
        %v4879 = vpack.c.b16 %v4555, %v4553
        %v4880 = vpack.c.b16 %v4558, %v4556
        %v4881 = vpack.c.b16 %v4559, %v4557
        %v4882 = vpack.c.b16 %v4562, %v4560
        %v4883 = vpack.c.b16 %v4563, %v4561
        %v4884 = vpack.c.b16 %v4566, %v4564
        %v4885 = vpack.c.b16 %v4567, %v4565
        %v4886 = vpack.c.b16 %v4570, %v4568
        %v4887 = vpack.c.b16 %v4571, %v4569
        %v4888 = vpack.c.b16 %v4574, %v4572
        %v4889 = vpack.c.b16 %v4575, %v4573
        %v4890 = vpack.c.b16 %v4578, %v4576
        %v4891 = vpack.c.b16 %v4579, %v4577
        %v4892 = vpack.c.b16 %v4582, %v4580
        %v4893 = vpack.c.b16 %v4583, %v4581
        %v4894 = vpack.c.b16 %v4586, %v4584
        %v4895 = vpack.c.b16 %v4587, %v4585
        %v4896 = vpack.c.b16 %v4590, %v4588
        %v4897 = vpack.c.b16 %v4591, %v4589
        %v4898 = vpack.c.b16 %v4594, %v4592
        %v4899 = vpack.c.b16 %v4595, %v4593
        %v4900 = vpack.c.b16 %v4598, %v4596
        %v4901 = vpack.c.b16 %v4599, %v4597
        %v4902 = vpack.c.b16 %v4602, %v4600
        %v4903 = vpack.c.b16 %v4603, %v4601
        %v4904 = vpack.c.b16 %v4606, %v4604
        %v4905 = vpack.c.b16 %v4607, %v4605
        %v4906 = vpack.c.b16 %v4610, %v4608
        %v4907 = vpack.c.b16 %v4611, %v4609
        %v4908 = vpack.c.b16 %v4614, %v4612
        %v4909 = vpack.c.b16 %v4615, %v4613
        %v4910 = vpack.c.b16 %v4618, %v4616
        %v4911 = vpack.c.b16 %v4619, %v4617
        %v4912 = vpack.c.b16 %v4622, %v4620
        %v4913 = vpack.c.b16 %v4623, %v4621
        %v4914 = vpack.c.b16 %v4626, %v4624
        %v4915 = vpack.c.b16 %v4627, %v4625
        %5204 = vmatprep.subr.bf16.mxu0 %v4629
        %5205 = vmatpush1.bf16.msra.mxu0 %v4628
        %5206 = vmatprep.subr.bf16.mxu0 %v4631
        %5207 = vmatpush1.bf16.msra.mxu0 %v4630
        %5208 = vmatprep.subr.bf16.mxu0 %v4633
        %5209 = vmatpush1.bf16.msra.mxu0 %v4632
        %5210 = vmatprep.subr.bf16.mxu0 %v4635
        %5211 = vmatpush1.bf16.msra.mxu0 %v4634
        %5212 = vmatprep.subr.bf16.mxu0 %v4637
        %5213 = vmatpush1.bf16.msra.mxu0 %v4636
        %5214 = vmatprep.subr.bf16.mxu0 %v4639
        %5215 = vmatpush1.bf16.msra.mxu0 %v4638
        %5216 = vmatprep.subr.bf16.mxu0 %v4641
        %5217 = vmatpush1.bf16.msra.mxu0 %v4640
        %5218 = vmatprep.subr.bf16.mxu0 %v4643
        %5219 = vmatpush1.bf16.msra.mxu0 %v4642
        %5220 = vmatprep.subr.bf16.mxu0 %v4645
        %5221 = vmatpush1.bf16.msra.mxu0 %v4644
        %5222 = vmatprep.subr.bf16.mxu0 %v4647
        %5223 = vmatpush1.bf16.msra.mxu0 %v4646
        %5224 = vmatprep.subr.bf16.mxu0 %v4649
        %5225 = vmatpush1.bf16.msra.mxu0 %v4648
        %5226 = vmatprep.subr.bf16.mxu0 %v4651
        %5227 = vmatpush1.bf16.msra.mxu0 %v4650
        %5228 = vmatprep.subr.bf16.mxu0 %v4653
        %5229 = vmatpush1.bf16.msra.mxu0 %v4652
        %5230 = vmatprep.subr.bf16.mxu0 %v4655
        %5231 = vmatpush1.bf16.msra.mxu0 %v4654
        %5232 = vmatprep.subr.bf16.mxu0 %v4657
        %5233 = vmatpush1.bf16.msra.mxu0 %v4656
        %5234 = vmatprep.subr.bf16.mxu0 %v4659
        %5235 = vmatpush1.bf16.msra.mxu0 %v4658
        %5236 = vmatprep.mubr.bf16.mxu0 %v3621
        %5237 = vmatmul.mubr.bf16.gmra.mrb[0].mxu0 %v3620
        %v5238 = vpop.f32.mrb[0].mxu0
        %v5239 = vadd.f32 %v3613, %v5238
        %v5240 = vpop.f32.mrb[0].mxu0
        %v5241 = vadd.f32 %v3617, %v5240
        %v5242 = vpop.f32.mrb[0].mxu0
        %v5243 = vadd.f32 %v3613, %v5242
        %v5244 = vpop.f32.mrb[0].mxu0
        %v5245 = vadd.f32 %v3617, %v5244
        %5246 = vmatprep.mubr.bf16.mxu0 %v3639
        %5247 = vmatmul.mubr.bf16.gmra.mrb[0].mxu0 %v3638
        %v5248 = vpop.f32.mrb[0].mxu0
        %v5249 = vadd.f32 %v3613, %v5248
        %v5250 = vpop.f32.mrb[0].mxu0
        %v5251 = vadd.f32 %v3617, %v5250
        %v5252 = vpop.f32.mrb[0].mxu0
        %v5253 = vadd.f32 %v3613, %v5252
        %v5254 = vpop.f32.mrb[0].mxu0
        %v5255 = vadd.f32 %v3617, %v5254
        %5256 = vmatprep.mubr.bf16.mxu0 %v3657
        %5257 = vmatmul.mubr.bf16.gmra.mrb[0].mxu0 %v3656
        %v5258 = vpop.f32.mrb[0].mxu0
        %v5259 = vadd.f32 %v3613, %v5258
        %v5260 = vpop.f32.mrb[0].mxu0
        %v5261 = vadd.f32 %v3617, %v5260
        %v5262 = vpop.f32.mrb[0].mxu0
        %v5263 = vadd.f32 %v3613, %v5262
        %v5264 = vpop.f32.mrb[0].mxu0
        %v5265 = vadd.f32 %v3617, %v5264
        %5266 = vmatprep.mubr.bf16.mxu0 %v3675
        %5267 = vmatmul.mubr.bf16.gmra.mrb[0].mxu0 %v3674
        %v5268 = vpop.f32.mrb[0].mxu0
        %v5269 = vadd.f32 %v3613, %v5268
        %v5270 = vpop.f32.mrb[0].mxu0
        %v5271 = vadd.f32 %v3617, %v5270
        %v5272 = vpop.f32.mrb[0].mxu0
        %v5273 = vadd.f32 %v3613, %v5272
        %v5274 = vpop.f32.mrb[0].mxu0
        %v5275 = vadd.f32 %v3617, %v5274
        %5276 = vdwg.mxu0
        %5277 = vmatprep.subr.bf16.mxu0 %v4661
        %5278 = vmatpush1.bf16.msra.mxu0 %v4660
        %5279 = vmatprep.subr.bf16.mxu0 %v4663
        %5280 = vmatpush1.bf16.msra.mxu0 %v4662
        %5281 = vmatprep.subr.bf16.mxu0 %v4665
        %5282 = vmatpush1.bf16.msra.mxu0 %v4664
        %5283 = vmatprep.subr.bf16.mxu0 %v4667
        %5284 = vmatpush1.bf16.msra.mxu0 %v4666
        %5285 = vmatprep.subr.bf16.mxu0 %v4669
        %5286 = vmatpush1.bf16.msra.mxu0 %v4668
        %5287 = vmatprep.subr.bf16.mxu0 %v4671
        %5288 = vmatpush1.bf16.msra.mxu0 %v4670
        %5289 = vmatprep.subr.bf16.mxu0 %v4673
        %5290 = vmatpush1.bf16.msra.mxu0 %v4672
        %5291 = vmatprep.subr.bf16.mxu0 %v4675
        %5292 = vmatpush1.bf16.msra.mxu0 %v4674
        %5293 = vmatprep.subr.bf16.mxu0 %v4677
        %5294 = vmatpush1.bf16.msra.mxu0 %v4676
        %5295 = vmatprep.subr.bf16.mxu0 %v4679
        %5296 = vmatpush1.bf16.msra.mxu0 %v4678
        %5297 = vmatprep.subr.bf16.mxu0 %v4681
        %5298 = vmatpush1.bf16.msra.mxu0 %v4680
        %5299 = vmatprep.subr.bf16.mxu0 %v4683
        %5300 = vmatpush1.bf16.msra.mxu0 %v4682
        %5301 = vmatprep.subr.bf16.mxu0 %v4685
        %5302 = vmatpush1.bf16.msra.mxu0 %v4684
        %5303 = vmatprep.subr.bf16.mxu0 %v4687
        %5304 = vmatpush1.bf16.msra.mxu0 %v4686
        %5305 = vmatprep.subr.bf16.mxu0 %v4689
        %5306 = vmatpush1.bf16.msra.mxu0 %v4688
        %5307 = vmatprep.subr.bf16.mxu0 %v4691
        %5308 = vmatpush1.bf16.msra.mxu0 %v4690
        %5309 = vmatprep.mubr.bf16.mxu0 %v3623
        %5310 = vmatmul.mubr.bf16.gmra.mrb[0].mxu0 %v3622
        %v5311 = vpop.f32.mrb[0].mxu0
        %v5312 = vadd.f32 %v5239, %v5311
        %v5313 = vpop.f32.mrb[0].mxu0
        %v5314 = vadd.f32 %v5241, %v5313
        %v5315 = vpop.f32.mrb[0].mxu0
        %v5316 = vadd.f32 %v5243, %v5315
        %v5317 = vpop.f32.mrb[0].mxu0
        %v5318 = vadd.f32 %v5245, %v5317
        %5319 = vmatprep.mubr.bf16.mxu0 %v3641
        %5320 = vmatmul.mubr.bf16.gmra.mrb[0].mxu0 %v3640
        %v5321 = vpop.f32.mrb[0].mxu0
        %v5322 = vadd.f32 %v5249, %v5321
        %v5323 = vpop.f32.mrb[0].mxu0
        %v5324 = vadd.f32 %v5251, %v5323
        %v5325 = vpop.f32.mrb[0].mxu0
        %v5326 = vadd.f32 %v5253, %v5325
        %v5327 = vpop.f32.mrb[0].mxu0
        %v5328 = vadd.f32 %v5255, %v5327
        %5329 = vmatprep.mubr.bf16.mxu0 %v3659
        %5330 = vmatmul.mubr.bf16.gmra.mrb[0].mxu0 %v3658
        %v5331 = vpop.f32.mrb[0].mxu0
        %v5332 = vadd.f32 %v5259, %v5331
        %v5333 = vpop.f32.mrb[0].mxu0
        %v5334 = vadd.f32 %v5261, %v5333
        %v5335 = vpop.f32.mrb[0].mxu0
        %v5336 = vadd.f32 %v5263, %v5335
        %v5337 = vpop.f32.mrb[0].mxu0
        %v5338 = vadd.f32 %v5265, %v5337
        %5339 = vmatprep.mubr.bf16.mxu0 %v3677
        %5340 = vmatmul.mubr.bf16.gmra.mrb[0].mxu0 %v3676
        %v5341 = vpop.f32.mrb[0].mxu0
        %v5342 = vadd.f32 %v5269, %v5341
        %v5343 = vpop.f32.mrb[0].mxu0
        %v5344 = vadd.f32 %v5271, %v5343
        %v5345 = vpop.f32.mrb[0].mxu0
        %v5346 = vadd.f32 %v5273, %v5345
        %v5347 = vpop.f32.mrb[0].mxu0
        %v5348 = vadd.f32 %v5275, %v5347
        %5349 = vdwg.mxu0
        %5350 = vmatprep.subr.bf16.mxu0 %v4693
        %5351 = vmatpush1.bf16.msra.mxu0 %v4692
        %5352 = vmatprep.subr.bf16.mxu0 %v4695
        %5353 = vmatpush1.bf16.msra.mxu0 %v4694
        %5354 = vmatprep.subr.bf16.mxu0 %v4697
        %5355 = vmatpush1.bf16.msra.mxu0 %v4696
        %5356 = vmatprep.subr.bf16.mxu0 %v4699
        %5357 = vmatpush1.bf16.msra.mxu0 %v4698
        %5358 = vmatprep.subr.bf16.mxu0 %v4701
        %5359 = vmatpush1.bf16.msra.mxu0 %v4700
        %5360 = vmatprep.subr.bf16.mxu0 %v4703
        %5361 = vmatpush1.bf16.msra.mxu0 %v4702
        %5362 = vmatprep.subr.bf16.mxu0 %v4705
        %5363 = vmatpush1.bf16.msra.mxu0 %v4704
        %5364 = vmatprep.subr.bf16.mxu0 %v4707
        %5365 = vmatpush1.bf16.msra.mxu0 %v4706
        %5366 = vmatprep.subr.bf16.mxu0 %v4709
        %5367 = vmatpush1.bf16.msra.mxu0 %v4708
        %5368 = vmatprep.subr.bf16.mxu0 %v4711
        %5369 = vmatpush1.bf16.msra.mxu0 %v4710
        %5370 = vmatprep.subr.bf16.mxu0 %v4713
        %5371 = vmatpush1.bf16.msra.mxu0 %v4712
        %5372 = vmatprep.subr.bf16.mxu0 %v4715
        %5373 = vmatpush1.bf16.msra.mxu0 %v4714
        %5374 = vmatprep.subr.bf16.mxu0 %v4717
        %5375 = vmatpush1.bf16.msra.mxu0 %v4716
        %5376 = vmatprep.subr.bf16.mxu0 %v4719
        %5377 = vmatpush1.bf16.msra.mxu0 %v4718
        %5378 = vmatprep.subr.bf16.mxu0 %v4721
        %5379 = vmatpush1.bf16.msra.mxu0 %v4720
        %5380 = vmatprep.subr.bf16.mxu0 %v4723
        %5381 = vmatpush1.bf16.msra.mxu0 %v4722
        %5382 = vmatprep.mubr.bf16.mxu0 %v3625
        %5383 = vmatmul.mubr.bf16.gmra.mrb[0].mxu0 %v3624
        %v5384 = vpop.f32.mrb[0].mxu0
        %v5385 = vadd.f32 %v5312, %v5384
        %v5386 = vpop.f32.mrb[0].mxu0
        %v5387 = vadd.f32 %v5314, %v5386
        %v5388 = vpop.f32.mrb[0].mxu0
        %v5389 = vadd.f32 %v5316, %v5388
        %v5390 = vpop.f32.mrb[0].mxu0
        %v5391 = vadd.f32 %v5318, %v5390
        %5392 = vmatprep.mubr.bf16.mxu0 %v3643
        %5393 = vmatmul.mubr.bf16.gmra.mrb[0].mxu0 %v3642
        %v5394 = vpop.f32.mrb[0].mxu0
        %v5395 = vadd.f32 %v5322, %v5394
        %v5396 = vpop.f32.mrb[0].mxu0
        %v5397 = vadd.f32 %v5324, %v5396
        %v5398 = vpop.f32.mrb[0].mxu0
        %v5399 = vadd.f32 %v5326, %v5398
        %v5400 = vpop.f32.mrb[0].mxu0
        %v5401 = vadd.f32 %v5328, %v5400
        %5402 = vmatprep.mubr.bf16.mxu0 %v3661
        %5403 = vmatmul.mubr.bf16.gmra.mrb[0].mxu0 %v3660
        %v5404 = vpop.f32.mrb[0].mxu0
        %v5405 = vadd.f32 %v5332, %v5404
        %v5406 = vpop.f32.mrb[0].mxu0
        %v5407 = vadd.f32 %v5334, %v5406
        %v5408 = vpop.f32.mrb[0].mxu0
        %v5409 = vadd.f32 %v5336, %v5408
        %v5410 = vpop.f32.mrb[0].mxu0
        %v5411 = vadd.f32 %v5338, %v5410
        %5412 = vmatprep.mubr.bf16.mxu0 %v3679
        %5413 = vmatmul.mubr.bf16.gmra.mrb[0].mxu0 %v3678
        %v5414 = vpop.f32.mrb[0].mxu0
        %v5415 = vadd.f32 %v5342, %v5414
        %v5416 = vpop.f32.mrb[0].mxu0
        %v5417 = vadd.f32 %v5344, %v5416
        %v5418 = vpop.f32.mrb[0].mxu0
        %v5419 = vadd.f32 %v5346, %v5418
        %v5420 = vpop.f32.mrb[0].mxu0
        %v5421 = vadd.f32 %v5348, %v5420
        %5422 = vdwg.mxu0
        %5423 = vmatprep.subr.bf16.mxu0 %v4725
        %5424 = vmatpush1.bf16.msra.mxu0 %v4724
        %5425 = vmatprep.subr.bf16.mxu0 %v4727
        %5426 = vmatpush1.bf16.msra.mxu0 %v4726
        %5427 = vmatprep.subr.bf16.mxu0 %v4729
        %5428 = vmatpush1.bf16.msra.mxu0 %v4728
        %5429 = vmatprep.subr.bf16.mxu0 %v4731
        %5430 = vmatpush1.bf16.msra.mxu0 %v4730
        %5431 = vmatprep.subr.bf16.mxu0 %v4733
        %5432 = vmatpush1.bf16.msra.mxu0 %v4732
        %5433 = vmatprep.subr.bf16.mxu0 %v4735
        %5434 = vmatpush1.bf16.msra.mxu0 %v4734
        %5435 = vmatprep.subr.bf16.mxu0 %v4737
        %5436 = vmatpush1.bf16.msra.mxu0 %v4736
        %5437 = vmatprep.subr.bf16.mxu0 %v4739
        %5438 = vmatpush1.bf16.msra.mxu0 %v4738
        %5439 = vmatprep.subr.bf16.mxu0 %v4741
        %5440 = vmatpush1.bf16.msra.mxu0 %v4740
        %5441 = vmatprep.subr.bf16.mxu0 %v4743
        %5442 = vmatpush1.bf16.msra.mxu0 %v4742
        %5443 = vmatprep.subr.bf16.mxu0 %v4745
        %5444 = vmatpush1.bf16.msra.mxu0 %v4744
        %5445 = vmatprep.subr.bf16.mxu0 %v4747
        %5446 = vmatpush1.bf16.msra.mxu0 %v4746
        %5447 = vmatprep.subr.bf16.mxu0 %v4749
        %5448 = vmatpush1.bf16.msra.mxu0 %v4748
        %5449 = vmatprep.subr.bf16.mxu0 %v4751
        %5450 = vmatpush1.bf16.msra.mxu0 %v4750
        %5451 = vmatprep.subr.bf16.mxu0 %v4753
        %5452 = vmatpush1.bf16.msra.mxu0 %v4752
        %5453 = vmatprep.subr.bf16.mxu0 %v4755
        %5454 = vmatpush1.bf16.msra.mxu0 %v4754
        %5455 = vmatprep.mubr.bf16.mxu0 %v3627
        %5456 = vmatmul.mubr.bf16.gmra.mrb[0].mxu0 %v3626
        %v5457 = vpop.f32.mrb[0].mxu0
        %v5458 = vadd.f32 %v5385, %v5457
        %v5459 = vpop.f32.mrb[0].mxu0
        %v5460 = vadd.f32 %v5387, %v5459
        %v5461 = vpop.f32.mrb[0].mxu0
        %v5462 = vadd.f32 %v5389, %v5461
        %v5463 = vpop.f32.mrb[0].mxu0
        %v5464 = vadd.f32 %v5391, %v5463
        %5465 = vmatprep.mubr.bf16.mxu0 %v3645
        %5466 = vmatmul.mubr.bf16.gmra.mrb[0].mxu0 %v3644
        %v5467 = vpop.f32.mrb[0].mxu0
        %v5468 = vadd.f32 %v5395, %v5467
        %v5469 = vpop.f32.mrb[0].mxu0
        %v5470 = vadd.f32 %v5397, %v5469
        %v5471 = vpop.f32.mrb[0].mxu0
        %v5472 = vadd.f32 %v5399, %v5471
        %v5473 = vpop.f32.mrb[0].mxu0
        %v5474 = vadd.f32 %v5401, %v5473
        %5475 = vmatprep.mubr.bf16.mxu0 %v3663
        %5476 = vmatmul.mubr.bf16.gmra.mrb[0].mxu0 %v3662
        %v5477 = vpop.f32.mrb[0].mxu0
        %v5478 = vadd.f32 %v5405, %v5477
        %v5479 = vpop.f32.mrb[0].mxu0
        %v5480 = vadd.f32 %v5407, %v5479
        %v5481 = vpop.f32.mrb[0].mxu0
        %v5482 = vadd.f32 %v5409, %v5481
        %v5483 = vpop.f32.mrb[0].mxu0
        %v5484 = vadd.f32 %v5411, %v5483
        %5485 = vmatprep.mubr.bf16.mxu0 %v3681
        %5486 = vmatmul.mubr.bf16.gmra.mrb[0].mxu0 %v3680
        %v5487 = vpop.f32.mrb[0].mxu0
        %v5488 = vadd.f32 %v5415, %v5487
        %v5489 = vpop.f32.mrb[0].mxu0
        %v5490 = vadd.f32 %v5417, %v5489
        %v5491 = vpop.f32.mrb[0].mxu0
        %v5492 = vadd.f32 %v5419, %v5491
        %v5493 = vpop.f32.mrb[0].mxu0
        %v5494 = vadd.f32 %v5421, %v5493
        %5495 = vdwg.mxu0
        %5496 = vmatprep.subr.bf16.mxu0 %v4757
        %5497 = vmatpush1.bf16.msra.mxu0 %v4756
        %5498 = vmatprep.subr.bf16.mxu0 %v4759
        %5499 = vmatpush1.bf16.msra.mxu0 %v4758
        %5500 = vmatprep.subr.bf16.mxu0 %v4761
        %5501 = vmatpush1.bf16.msra.mxu0 %v4760
        %5502 = vmatprep.subr.bf16.mxu0 %v4763
        %5503 = vmatpush1.bf16.msra.mxu0 %v4762
        %5504 = vmatprep.subr.bf16.mxu0 %v4765
        %5505 = vmatpush1.bf16.msra.mxu0 %v4764
        %5506 = vmatprep.subr.bf16.mxu0 %v4767
        %5507 = vmatpush1.bf16.msra.mxu0 %v4766
        %5508 = vmatprep.subr.bf16.mxu0 %v4769
        %5509 = vmatpush1.bf16.msra.mxu0 %v4768
        %5510 = vmatprep.subr.bf16.mxu0 %v4771
        %5511 = vmatpush1.bf16.msra.mxu0 %v4770
        %5512 = vmatprep.subr.bf16.mxu0 %v4773
        %5513 = vmatpush1.bf16.msra.mxu0 %v4772
        %5514 = vmatprep.subr.bf16.mxu0 %v4775
        %5515 = vmatpush1.bf16.msra.mxu0 %v4774
        %5516 = vmatprep.subr.bf16.mxu0 %v4777
        %5517 = vmatpush1.bf16.msra.mxu0 %v4776
        %5518 = vmatprep.subr.bf16.mxu0 %v4779
        %5519 = vmatpush1.bf16.msra.mxu0 %v4778
        %5520 = vmatprep.subr.bf16.mxu0 %v4781
        %5521 = vmatpush1.bf16.msra.mxu0 %v4780
        %5522 = vmatprep.subr.bf16.mxu0 %v4783
        %5523 = vmatpush1.bf16.msra.mxu0 %v4782
        %5524 = vmatprep.subr.bf16.mxu0 %v4785
        %5525 = vmatpush1.bf16.msra.mxu0 %v4784
        %5526 = vmatprep.subr.bf16.mxu0 %v4787
        %5527 = vmatpush1.bf16.msra.mxu0 %v4786
        %5528 = vmatprep.mubr.bf16.mxu0 %v3629
        %5529 = vmatmul.mubr.bf16.gmra.mrb[0].mxu0 %v3628
        %v5530 = vpop.f32.mrb[0].mxu0
        %v5531 = vadd.f32 %v5458, %v5530
        %v5532 = vpop.f32.mrb[0].mxu0
        %v5533 = vadd.f32 %v5460, %v5532
        %v5534 = vpop.f32.mrb[0].mxu0
        %v5535 = vadd.f32 %v5462, %v5534
        %v5536 = vpop.f32.mrb[0].mxu0
        %v5537 = vadd.f32 %v5464, %v5536
        %5538 = vmatprep.mubr.bf16.mxu0 %v3647
        %5539 = vmatmul.mubr.bf16.gmra.mrb[0].mxu0 %v3646
        %v5540 = vpop.f32.mrb[0].mxu0
        %v5541 = vadd.f32 %v5468, %v5540
        %v5542 = vpop.f32.mrb[0].mxu0
        %v5543 = vadd.f32 %v5470, %v5542
        %v5544 = vpop.f32.mrb[0].mxu0
        %v5545 = vadd.f32 %v5472, %v5544
        %v5546 = vpop.f32.mrb[0].mxu0
        %v5547 = vadd.f32 %v5474, %v5546
        %5548 = vmatprep.mubr.bf16.mxu0 %v3665
        %5549 = vmatmul.mubr.bf16.gmra.mrb[0].mxu0 %v3664
        %v5550 = vpop.f32.mrb[0].mxu0
        %v5551 = vadd.f32 %v5478, %v5550
        %v5552 = vpop.f32.mrb[0].mxu0
        %v5553 = vadd.f32 %v5480, %v5552
        %v5554 = vpop.f32.mrb[0].mxu0
        %v5555 = vadd.f32 %v5482, %v5554
        %v5556 = vpop.f32.mrb[0].mxu0
        %v5557 = vadd.f32 %v5484, %v5556
        %5558 = vmatprep.mubr.bf16.mxu0 %v3683
        %5559 = vmatmul.mubr.bf16.gmra.mrb[0].mxu0 %v3682
        %v5560 = vpop.f32.mrb[0].mxu0
        %v5561 = vadd.f32 %v5488, %v5560
        %v5562 = vpop.f32.mrb[0].mxu0
        %v5563 = vadd.f32 %v5490, %v5562
        %v5564 = vpop.f32.mrb[0].mxu0
        %v5565 = vadd.f32 %v5492, %v5564
        %v5566 = vpop.f32.mrb[0].mxu0
        %v5567 = vadd.f32 %v5494, %v5566
        %5568 = vdwg.mxu0
        %5569 = vmatprep.subr.bf16.mxu0 %v4789
        %5570 = vmatpush1.bf16.msra.mxu0 %v4788
        %5571 = vmatprep.subr.bf16.mxu0 %v4791
        %5572 = vmatpush1.bf16.msra.mxu0 %v4790
        %5573 = vmatprep.subr.bf16.mxu0 %v4793
        %5574 = vmatpush1.bf16.msra.mxu0 %v4792
        %5575 = vmatprep.subr.bf16.mxu0 %v4795
        %5576 = vmatpush1.bf16.msra.mxu0 %v4794
        %5577 = vmatprep.subr.bf16.mxu0 %v4797
        %5578 = vmatpush1.bf16.msra.mxu0 %v4796
        %5579 = vmatprep.subr.bf16.mxu0 %v4799
        %5580 = vmatpush1.bf16.msra.mxu0 %v4798
        %5581 = vmatprep.subr.bf16.mxu0 %v4801
        %5582 = vmatpush1.bf16.msra.mxu0 %v4800
        %5583 = vmatprep.subr.bf16.mxu0 %v4803
        %5584 = vmatpush1.bf16.msra.mxu0 %v4802
        %5585 = vmatprep.subr.bf16.mxu0 %v4805
        %5586 = vmatpush1.bf16.msra.mxu0 %v4804
        %5587 = vmatprep.subr.bf16.mxu0 %v4807
        %5588 = vmatpush1.bf16.msra.mxu0 %v4806
        %5589 = vmatprep.subr.bf16.mxu0 %v4809
        %5590 = vmatpush1.bf16.msra.mxu0 %v4808
        %5591 = vmatprep.subr.bf16.mxu0 %v4811
        %5592 = vmatpush1.bf16.msra.mxu0 %v4810
        %5593 = vmatprep.subr.bf16.mxu0 %v4813
        %5594 = vmatpush1.bf16.msra.mxu0 %v4812
        %5595 = vmatprep.subr.bf16.mxu0 %v4815
        %5596 = vmatpush1.bf16.msra.mxu0 %v4814
        %5597 = vmatprep.subr.bf16.mxu0 %v4817
        %5598 = vmatpush1.bf16.msra.mxu0 %v4816
        %5599 = vmatprep.subr.bf16.mxu0 %v4819
        %5600 = vmatpush1.bf16.msra.mxu0 %v4818
        %5601 = vmatprep.mubr.bf16.mxu0 %v3631
        %5602 = vmatmul.mubr.bf16.gmra.mrb[0].mxu0 %v3630
        %v5603 = vpop.f32.mrb[0].mxu0
        %v5604 = vadd.f32 %v5531, %v5603
        %v5605 = vpop.f32.mrb[0].mxu0
        %v5606 = vadd.f32 %v5533, %v5605
        %v5607 = vpop.f32.mrb[0].mxu0
        %v5608 = vadd.f32 %v5535, %v5607
        %v5609 = vpop.f32.mrb[0].mxu0
        %v5610 = vadd.f32 %v5537, %v5609
        %5611 = vmatprep.mubr.bf16.mxu0 %v3649
        %5612 = vmatmul.mubr.bf16.gmra.mrb[0].mxu0 %v3648
        %v5613 = vpop.f32.mrb[0].mxu0
        %v5614 = vadd.f32 %v5541, %v5613
        %v5615 = vpop.f32.mrb[0].mxu0
        %v5616 = vadd.f32 %v5543, %v5615
        %v5617 = vpop.f32.mrb[0].mxu0
        %v5618 = vadd.f32 %v5545, %v5617
        %v5619 = vpop.f32.mrb[0].mxu0
        %v5620 = vadd.f32 %v5547, %v5619
        %5621 = vmatprep.mubr.bf16.mxu0 %v3667
        %5622 = vmatmul.mubr.bf16.gmra.mrb[0].mxu0 %v3666
        %v5623 = vpop.f32.mrb[0].mxu0
        %v5624 = vadd.f32 %v5551, %v5623
        %v5625 = vpop.f32.mrb[0].mxu0
        %v5626 = vadd.f32 %v5553, %v5625
        %v5627 = vpop.f32.mrb[0].mxu0
        %v5628 = vadd.f32 %v5555, %v5627
        %v5629 = vpop.f32.mrb[0].mxu0
        %v5630 = vadd.f32 %v5557, %v5629
        %5631 = vmatprep.mubr.bf16.mxu0 %v3685
        %5632 = vmatmul.mubr.bf16.gmra.mrb[0].mxu0 %v3684
        %v5633 = vpop.f32.mrb[0].mxu0
        %v5634 = vadd.f32 %v5561, %v5633
        %v5635 = vpop.f32.mrb[0].mxu0
        %v5636 = vadd.f32 %v5563, %v5635
        %v5637 = vpop.f32.mrb[0].mxu0
        %v5638 = vadd.f32 %v5565, %v5637
        %v5639 = vpop.f32.mrb[0].mxu0
        %v5640 = vadd.f32 %v5567, %v5639
        %5641 = vdwg.mxu0
        %5642 = vmatprep.subr.bf16.mxu0 %v4821
        %5643 = vmatpush1.bf16.msra.mxu0 %v4820
        %5644 = vmatprep.subr.bf16.mxu0 %v4823
        %5645 = vmatpush1.bf16.msra.mxu0 %v4822
        %5646 = vmatprep.subr.bf16.mxu0 %v4825
        %5647 = vmatpush1.bf16.msra.mxu0 %v4824
        %5648 = vmatprep.subr.bf16.mxu0 %v4827
        %5649 = vmatpush1.bf16.msra.mxu0 %v4826
        %5650 = vmatprep.subr.bf16.mxu0 %v4829
        %5651 = vmatpush1.bf16.msra.mxu0 %v4828
        %5652 = vmatprep.subr.bf16.mxu0 %v4831
        %5653 = vmatpush1.bf16.msra.mxu0 %v4830
        %5654 = vmatprep.subr.bf16.mxu0 %v4833
        %5655 = vmatpush1.bf16.msra.mxu0 %v4832
        %5656 = vmatprep.subr.bf16.mxu0 %v4835
        %5657 = vmatpush1.bf16.msra.mxu0 %v4834
        %5658 = vmatprep.subr.bf16.mxu0 %v4837
        %5659 = vmatpush1.bf16.msra.mxu0 %v4836
        %5660 = vmatprep.subr.bf16.mxu0 %v4839
        %5661 = vmatpush1.bf16.msra.mxu0 %v4838
        %5662 = vmatprep.subr.bf16.mxu0 %v4841
        %5663 = vmatpush1.bf16.msra.mxu0 %v4840
        %5664 = vmatprep.subr.bf16.mxu0 %v4843
        %5665 = vmatpush1.bf16.msra.mxu0 %v4842
        %5666 = vmatprep.subr.bf16.mxu0 %v4845
        %5667 = vmatpush1.bf16.msra.mxu0 %v4844
        %5668 = vmatprep.subr.bf16.mxu0 %v4847
        %5669 = vmatpush1.bf16.msra.mxu0 %v4846
        %5670 = vmatprep.subr.bf16.mxu0 %v4849
        %5671 = vmatpush1.bf16.msra.mxu0 %v4848
        %5672 = vmatprep.subr.bf16.mxu0 %v4851
        %5673 = vmatpush1.bf16.msra.mxu0 %v4850
        %5674 = vmatprep.mubr.bf16.mxu0 %v3633
        %5675 = vmatmul.mubr.bf16.gmra.mrb[0].mxu0 %v3632
        %v5676 = vpop.f32.mrb[0].mxu0
        %v5677 = vadd.f32 %v5604, %v5676
        %v5678 = vpop.f32.mrb[0].mxu0
        %v5679 = vadd.f32 %v5606, %v5678
        %v5680 = vpop.f32.mrb[0].mxu0
        %v5681 = vadd.f32 %v5608, %v5680
        %v5682 = vpop.f32.mrb[0].mxu0
        %v5683 = vadd.f32 %v5610, %v5682
        %5684 = vmatprep.mubr.bf16.mxu0 %v3651
        %5685 = vmatmul.mubr.bf16.gmra.mrb[0].mxu0 %v3650
        %v5686 = vpop.f32.mrb[0].mxu0
        %v5687 = vadd.f32 %v5614, %v5686
        %v5688 = vpop.f32.mrb[0].mxu0
        %v5689 = vadd.f32 %v5616, %v5688
        %v5690 = vpop.f32.mrb[0].mxu0
        %v5691 = vadd.f32 %v5618, %v5690
        %v5692 = vpop.f32.mrb[0].mxu0
        %v5693 = vadd.f32 %v5620, %v5692
        %5694 = vmatprep.mubr.bf16.mxu0 %v3669
        %5695 = vmatmul.mubr.bf16.gmra.mrb[0].mxu0 %v3668
        %v5696 = vpop.f32.mrb[0].mxu0
        %v5697 = vadd.f32 %v5624, %v5696
        %v5698 = vpop.f32.mrb[0].mxu0
        %v5699 = vadd.f32 %v5626, %v5698
        %v5700 = vpop.f32.mrb[0].mxu0
        %v5701 = vadd.f32 %v5628, %v5700
        %v5702 = vpop.f32.mrb[0].mxu0
        %v5703 = vadd.f32 %v5630, %v5702
        %5704 = vmatprep.mubr.bf16.mxu0 %v3687
        %5705 = vmatmul.mubr.bf16.gmra.mrb[0].mxu0 %v3686
        %v5706 = vpop.f32.mrb[0].mxu0
        %v5707 = vadd.f32 %v5634, %v5706
        %v5708 = vpop.f32.mrb[0].mxu0
        %v5709 = vadd.f32 %v5636, %v5708
        %v5710 = vpop.f32.mrb[0].mxu0
        %v5711 = vadd.f32 %v5638, %v5710
        %v5712 = vpop.f32.mrb[0].mxu0
        %v5713 = vadd.f32 %v5640, %v5712
        %5714 = vdwg.mxu0
        %5715 = vmatprep.subr.bf16.mxu0 %v4853
        %5716 = vmatpush1.bf16.msra.mxu0 %v4852
        %5717 = vmatprep.subr.bf16.mxu0 %v4855
        %5718 = vmatpush1.bf16.msra.mxu0 %v4854
        %5719 = vmatprep.subr.bf16.mxu0 %v4857
        %5720 = vmatpush1.bf16.msra.mxu0 %v4856
        %5721 = vmatprep.subr.bf16.mxu0 %v4859
        %5722 = vmatpush1.bf16.msra.mxu0 %v4858
        %5723 = vmatprep.subr.bf16.mxu0 %v4861
        %5724 = vmatpush1.bf16.msra.mxu0 %v4860
        %5725 = vmatprep.subr.bf16.mxu0 %v4863
        %5726 = vmatpush1.bf16.msra.mxu0 %v4862
        %5727 = vmatprep.subr.bf16.mxu0 %v4865
        %5728 = vmatpush1.bf16.msra.mxu0 %v4864
        %5729 = vmatprep.subr.bf16.mxu0 %v4867
        %5730 = vmatpush1.bf16.msra.mxu0 %v4866
        %5731 = vmatprep.subr.bf16.mxu0 %v4869
        %5732 = vmatpush1.bf16.msra.mxu0 %v4868
        %5733 = vmatprep.subr.bf16.mxu0 %v4871
        %5734 = vmatpush1.bf16.msra.mxu0 %v4870
        %5735 = vmatprep.subr.bf16.mxu0 %v4873
        %5736 = vmatpush1.bf16.msra.mxu0 %v4872
        %5737 = vmatprep.subr.bf16.mxu0 %v4875
        %5738 = vmatpush1.bf16.msra.mxu0 %v4874
        %5739 = vmatprep.subr.bf16.mxu0 %v4877
        %5740 = vmatpush1.bf16.msra.mxu0 %v4876
        %5741 = vmatprep.subr.bf16.mxu0 %v4879
        %5742 = vmatpush1.bf16.msra.mxu0 %v4878
        %5743 = vmatprep.subr.bf16.mxu0 %v4881
        %5744 = vmatpush1.bf16.msra.mxu0 %v4880
        %5745 = vmatprep.subr.bf16.mxu0 %v4883
        %5746 = vmatpush1.bf16.msra.mxu0 %v4882
        %5747 = vmatprep.mubr.bf16.mxu0 %v3635
        %5748 = vmatmul.mubr.bf16.gmra.mrb[0].mxu0 %v3634
        %v5749 = vpop.f32.mrb[0].mxu0
        %v5750 = vadd.f32 %v5677, %v5749
        %v5751 = vpop.f32.mrb[0].mxu0
        %v5752 = vadd.f32 %v5679, %v5751
        %v5753 = vpop.f32.mrb[0].mxu0
        %v5754 = vadd.f32 %v5681, %v5753
        %v5755 = vpop.f32.mrb[0].mxu0
        %v5756 = vadd.f32 %v5683, %v5755
        %5757 = vmatprep.mubr.bf16.mxu0 %v3653
        %5758 = vmatmul.mubr.bf16.gmra.mrb[0].mxu0 %v3652
        %v5759 = vpop.f32.mrb[0].mxu0
        %v5760 = vadd.f32 %v5687, %v5759
        %v5761 = vpop.f32.mrb[0].mxu0
        %v5762 = vadd.f32 %v5689, %v5761
        %v5763 = vpop.f32.mrb[0].mxu0
        %v5764 = vadd.f32 %v5691, %v5763
        %v5765 = vpop.f32.mrb[0].mxu0
        %v5766 = vadd.f32 %v5693, %v5765
        %5767 = vmatprep.mubr.bf16.mxu0 %v3671
        %5768 = vmatmul.mubr.bf16.gmra.mrb[0].mxu0 %v3670
        %v5769 = vpop.f32.mrb[0].mxu0
        %v5770 = vadd.f32 %v5697, %v5769
        %v5771 = vpop.f32.mrb[0].mxu0
        %v5772 = vadd.f32 %v5699, %v5771
        %v5773 = vpop.f32.mrb[0].mxu0
        %v5774 = vadd.f32 %v5701, %v5773
        %v5775 = vpop.f32.mrb[0].mxu0
        %v5776 = vadd.f32 %v5703, %v5775
        %5777 = vmatprep.mubr.bf16.mxu0 %v3689
        %5778 = vmatmul.mubr.bf16.gmra.mrb[0].mxu0 %v3688
        %v5779 = vpop.f32.mrb[0].mxu0
        %v5780 = vadd.f32 %v5707, %v5779
        %v5781 = vpop.f32.mrb[0].mxu0
        %v5782 = vadd.f32 %v5709, %v5781
        %v5783 = vpop.f32.mrb[0].mxu0
        %v5784 = vadd.f32 %v5711, %v5783
        %v5785 = vpop.f32.mrb[0].mxu0
        %v5786 = vadd.f32 %v5713, %v5785
        %5787 = vdwg.mxu0
        %5788 = vmatprep.subr.bf16.mxu0 %v4885
        %5789 = vmatpush1.bf16.msra.mxu0 %v4884
        %5790 = vmatprep.subr.bf16.mxu0 %v4887
        %5791 = vmatpush1.bf16.msra.mxu0 %v4886
        %5792 = vmatprep.subr.bf16.mxu0 %v4889
        %5793 = vmatpush1.bf16.msra.mxu0 %v4888
        %5794 = vmatprep.subr.bf16.mxu0 %v4891
        %5795 = vmatpush1.bf16.msra.mxu0 %v4890
        %5796 = vmatprep.subr.bf16.mxu0 %v4893
        %5797 = vmatpush1.bf16.msra.mxu0 %v4892
        %5798 = vmatprep.subr.bf16.mxu0 %v4895
        %5799 = vmatpush1.bf16.msra.mxu0 %v4894
        %5800 = vmatprep.subr.bf16.mxu0 %v4897
        %5801 = vmatpush1.bf16.msra.mxu0 %v4896
        %5802 = vmatprep.subr.bf16.mxu0 %v4899
        %5803 = vmatpush1.bf16.msra.mxu0 %v4898
        %5804 = vmatprep.subr.bf16.mxu0 %v4901
        %5805 = vmatpush1.bf16.msra.mxu0 %v4900
        %5806 = vmatprep.subr.bf16.mxu0 %v4903
        %5807 = vmatpush1.bf16.msra.mxu0 %v4902
        %5808 = vmatprep.subr.bf16.mxu0 %v4905
        %5809 = vmatpush1.bf16.msra.mxu0 %v4904
        %5810 = vmatprep.subr.bf16.mxu0 %v4907
        %5811 = vmatpush1.bf16.msra.mxu0 %v4906
        %5812 = vmatprep.subr.bf16.mxu0 %v4909
        %5813 = vmatpush1.bf16.msra.mxu0 %v4908
        %5814 = vmatprep.subr.bf16.mxu0 %v4911
        %5815 = vmatpush1.bf16.msra.mxu0 %v4910
        %5816 = vmatprep.subr.bf16.mxu0 %v4913
        %5817 = vmatpush1.bf16.msra.mxu0 %v4912
        %5818 = vmatprep.subr.bf16.mxu0 %v4915
        %5819 = vmatpush1.bf16.msra.mxu0 %v4914
        %5820 = vmatprep.mubr.bf16.mxu0 %v3637
        %5821 = vmatmul.mubr.bf16.gmra.mrb[0].mxu0 %v3636
        %v5822 = vpop.f32.mrb[0].mxu0
        %v5823 = vadd.f32 %v5750, %v5822
        %v5824 = vpop.f32.mrb[0].mxu0
        %v5825 = vadd.f32 %v5752, %v5824
        %v5826 = vpop.f32.mrb[0].mxu0
        %v5827 = vadd.f32 %v5754, %v5826
        %v5828 = vpop.f32.mrb[0].mxu0
        %v5829 = vadd.f32 %v5756, %v5828
        %5830 = vmatprep.mubr.bf16.mxu0 %v3655
        %5831 = vmatmul.mubr.bf16.gmra.mrb[0].mxu0 %v3654
        %v5832 = vpop.f32.mrb[0].mxu0
        %v5833 = vadd.f32 %v5760, %v5832
        %v5834 = vpop.f32.mrb[0].mxu0
        %v5835 = vadd.f32 %v5762, %v5834
        %v5836 = vpop.f32.mrb[0].mxu0
        %v5837 = vadd.f32 %v5764, %v5836
        %v5838 = vpop.f32.mrb[0].mxu0
        %v5839 = vadd.f32 %v5766, %v5838
        %5840 = vmatprep.mubr.bf16.mxu0 %v3673
        %5841 = vmatmul.mubr.bf16.gmra.mrb[0].mxu0 %v3672
        %v5842 = vpop.f32.mrb[0].mxu0
        %v5843 = vadd.f32 %v5770, %v5842
        %v5844 = vpop.f32.mrb[0].mxu0
        %v5845 = vadd.f32 %v5772, %v5844
        %v5846 = vpop.f32.mrb[0].mxu0
        %v5847 = vadd.f32 %v5774, %v5846
        %v5848 = vpop.f32.mrb[0].mxu0
        %v5849 = vadd.f32 %v5776, %v5848
        %5850 = vmatprep.mubr.bf16.mxu0 %v3691
        %5851 = vmatmul.mubr.bf16.gmra.mrb[0].mxu0 %v3690
        %v5852 = vpop.f32.mrb[0].mxu0
        %v5853 = vadd.f32 %v5780, %v5852
        %v5854 = vpop.f32.mrb[0].mxu0
        %v5855 = vadd.f32 %v5782, %v5854
        %v5856 = vpop.f32.mrb[0].mxu0
        %v5857 = vadd.f32 %v5784, %v5856
        %v5858 = vpop.f32.mrb[0].mxu0
        %v5859 = vadd.f32 %v5786, %v5858
        %5860 = vdwg.mxu0
        %v5861 = vld [vmem:[%s323] ss:$2 sm:$0xff]
        %s5862 = scalar_lea.vmem %s323, 32 [#allocation4]
        %v5863 = vld [vmem:[%s5862] ss:$2 sm:$0xff]
        %s5864 = scalar_lea.vmem %s323, 64 [#allocation4]
        %v5865 = vld [vmem:[%s5864] ss:$2 sm:$0xff]
        %s5866 = scalar_lea.vmem %s323, 96 [#allocation4]
        %v5867 = vld [vmem:[%s5866] ss:$2 sm:$0xff]
        %s5868 = scalar_lea.vmem %s323, 128 [#allocation4]
        %v5869 = vld [vmem:[%s5868] ss:$2 sm:$0xff]
        %s5870 = scalar_lea.vmem %s323, 160 [#allocation4]
        %v5871 = vld [vmem:[%s5870] ss:$2 sm:$0xff]
        %s5872 = scalar_lea.vmem %s323, 192 [#allocation4]
        %v5873 = vld [vmem:[%s5872] ss:$2 sm:$0xff]
        %s5874 = scalar_lea.vmem %s323, 224 [#allocation4]
        %v5875 = vld [vmem:[%s5874] ss:$2 sm:$0xff]
        %v5876 = vpack.c.bf16 %v5861, %v5861
        %v5877 = vpack.c.bf16 %v5863, %v5863
        %v5878 = vpack.c.bf16 %v5865, %v5865
        %v5879 = vpack.c.bf16 %v5867, %v5867
        %v5880 = vpack.c.bf16 %v5869, %v5869
        %v5881 = vpack.c.bf16 %v5871, %v5871
        %v5882 = vpack.c.bf16 %v5873, %v5873
        %v5883 = vpack.c.bf16 %v5875, %v5875
        %v5884 = vld [vmem:[#allocation13] sm:$0xff]
        %v5885 = vld [vmem:[#allocation13 + $0x8] sm:$0xff]
        %v5886 = vld [vmem:[#allocation13 + $0x10] sm:$0xff]
        %v5887 = vld [vmem:[#allocation13 + $0x18] sm:$0xff]
        %v5888 = vld [vmem:[#allocation13 + $0x20] sm:$0xff]
        %v5889 = vld [vmem:[#allocation13 + $0x28] sm:$0xff]
        %v5890 = vld [vmem:[#allocation13 + $0x30] sm:$0xff]
        %v5891 = vld [vmem:[#allocation13 + $0x38] sm:$0xff]
        %v5892 = vld [vmem:[#allocation13 + $0x40] sm:$0xff]
        %v5893 = vld [vmem:[#allocation13 + $0x48] sm:$0xff]
        %v5894 = vld [vmem:[#allocation13 + $0x50] sm:$0xff]
        %v5895 = vld [vmem:[#allocation13 + $0x58] sm:$0xff]
        %v5896 = vld [vmem:[#allocation13 + $0x60] sm:$0xff]
        %v5897 = vld [vmem:[#allocation13 + $0x68] sm:$0xff]
        %v5898 = vld [vmem:[#allocation13 + $0x70] sm:$0xff]
        %v5899 = vld [vmem:[#allocation13 + $0x78] sm:$0xff]
        %v5900 = vld [vmem:[#allocation15] sm:$0x3]
        %v5902 = vlaneseq
        %v5903 = vshrl.u32 %v5902, 7
        %v5904 = vsub.s32 0, %v5903
        %v5905 = vrot.slane %v5900, %v5904
        %v5906 = vlaneseq
        %v5907 = vshrl.u32 %v5906, 7
        %v5908 = vsub.s32 1, %v5907
        %v5909 = vrot.slane %v5900, %v5908
        %v5920 = vunpack.c.l.b16 %v5876
        %v5921 = vunpack.c.l.b16 %v5877
        %v5922 = vunpack.c.l.b16 %v5878
        %v5923 = vunpack.c.l.b16 %v5879
        %v5924 = vunpack.c.l.b16 %v5880
        %v5925 = vunpack.c.l.b16 %v5881
        %v5926 = vunpack.c.l.b16 %v5882
        %v5927 = vunpack.c.l.b16 %v5883
        %v5928 = vpack.c.b16 %v5921, %v5920
        %v5929 = vpack.c.b16 %v5923, %v5922
        %v5930 = vpack.c.b16 %v5925, %v5924
        %v5931 = vpack.c.b16 %v5927, %v5926
        %v5952 = vunpack.c.l.b16 %v5884
        %v5953 = vunpack.c.h.b16 %v5884
        %v5954 = vunpack.c.l.b16 %v5885
        %v5955 = vunpack.c.h.b16 %v5885
        %v5956 = vunpack.c.l.b16 %v5886
        %v5957 = vunpack.c.h.b16 %v5886
        %v5958 = vunpack.c.l.b16 %v5887
        %v5959 = vunpack.c.h.b16 %v5887
        %v5960 = vunpack.c.l.b16 %v5888
        %v5961 = vunpack.c.h.b16 %v5888
        %v5962 = vunpack.c.l.b16 %v5889
        %v5963 = vunpack.c.h.b16 %v5889
        %v5964 = vunpack.c.l.b16 %v5890
        %v5965 = vunpack.c.h.b16 %v5890
        %v5966 = vunpack.c.l.b16 %v5891
        %v5967 = vunpack.c.h.b16 %v5891
        %v5968 = vunpack.c.l.b16 %v5892
        %v5969 = vunpack.c.h.b16 %v5892
        %v5970 = vunpack.c.l.b16 %v5893
        %v5971 = vunpack.c.h.b16 %v5893
        %v5972 = vunpack.c.l.b16 %v5894
        %v5973 = vunpack.c.h.b16 %v5894
        %v5974 = vunpack.c.l.b16 %v5895
        %v5975 = vunpack.c.h.b16 %v5895
        %v5976 = vunpack.c.l.b16 %v5896
        %v5977 = vunpack.c.h.b16 %v5896
        %v5978 = vunpack.c.l.b16 %v5897
        %v5979 = vunpack.c.h.b16 %v5897
        %v5980 = vunpack.c.l.b16 %v5898
        %v5981 = vunpack.c.h.b16 %v5898
        %v5982 = vunpack.c.l.b16 %v5899
        %v5983 = vunpack.c.h.b16 %v5899
        %v5984 = vpack.c.b16 %v5954, %v5952
        %v5985 = vpack.c.b16 %v5955, %v5953
        %v5986 = vpack.c.b16 %v5958, %v5956
        %v5987 = vpack.c.b16 %v5959, %v5957
        %v5988 = vpack.c.b16 %v5962, %v5960
        %v5989 = vpack.c.b16 %v5963, %v5961
        %v5990 = vpack.c.b16 %v5966, %v5964
        %v5991 = vpack.c.b16 %v5967, %v5965
        %v5992 = vpack.c.b16 %v5970, %v5968
        %v5993 = vpack.c.b16 %v5971, %v5969
        %v5994 = vpack.c.b16 %v5974, %v5972
        %v5995 = vpack.c.b16 %v5975, %v5973
        %v5996 = vpack.c.b16 %v5978, %v5976
        %v5997 = vpack.c.b16 %v5979, %v5977
        %v5998 = vpack.c.b16 %v5982, %v5980
        %v5999 = vpack.c.b16 %v5983, %v5981
        %6016 = vmatprep.subr.bf16.mxu0 %v5985
        %6017 = vmatpush1.bf16.msra.mxu0 %v5984
        %6018 = vmatprep.subr.bf16.mxu0 %v5987
        %6019 = vmatpush1.bf16.msra.mxu0 %v5986
        %6020 = vmatprep.subr.bf16.mxu0 %v5989
        %6021 = vmatpush1.bf16.msra.mxu0 %v5988
        %6022 = vmatprep.subr.bf16.mxu0 %v5991
        %6023 = vmatpush1.bf16.msra.mxu0 %v5990
        %6024 = vmatprep.subr.bf16.mxu0 %v5993
        %6025 = vmatpush1.bf16.msra.mxu0 %v5992
        %6026 = vmatprep.subr.bf16.mxu0 %v5995
        %6027 = vmatpush1.bf16.msra.mxu0 %v5994
        %6028 = vmatprep.subr.bf16.mxu0 %v5997
        %6029 = vmatpush1.bf16.msra.mxu0 %v5996
        %6030 = vmatprep.subr.bf16.mxu0 %v5999
        %6031 = vmatpush1.bf16.msra.mxu0 %v5998
        %6032 = vmatprep.subr.bf16.mxu0 0
        %6033 = vmatpush1.bf16.msra.mxu0 0
        %6034 = vmatprep.subr.bf16.mxu0 0
        %6035 = vmatpush1.bf16.msra.mxu0 0
        %6036 = vmatprep.subr.bf16.mxu0 0
        %6037 = vmatpush1.bf16.msra.mxu0 0
        %6038 = vmatprep.subr.bf16.mxu0 0
        %6039 = vmatpush1.bf16.msra.mxu0 0
        %6040 = vmatprep.subr.bf16.mxu0 0
        %6041 = vmatpush1.bf16.msra.mxu0 0
        %6042 = vmatprep.subr.bf16.mxu0 0
        %6043 = vmatpush1.bf16.msra.mxu0 0
        %6044 = vmatprep.subr.bf16.mxu0 0
        %6045 = vmatpush1.bf16.msra.mxu0 0
        %6046 = vmatprep.subr.bf16.mxu0 0
        %6047 = vmatpush1.bf16.msra.mxu0 0
        %6048 = vmatprep.mubr.bf16.mxu0 0
        %6049 = vmatmul.mubr.bf16.gmra.mrb[0].mxu0 %v5928
        %v6050 = vpop.f32.mrb[0].mxu0
        %v6051 = vadd.f32 %v5905, %v6050
        %v6052 = vpop.f32.mrb[0].mxu0
        %v6053 = vadd.f32 %v5909, %v6052
        %v6054 = vpop.f32.mrb[0].mxu0
        %v6055 = vadd.f32 %v5905, %v6054
        %v6056 = vpop.f32.mrb[0].mxu0
        %v6057 = vadd.f32 %v5909, %v6056
        %6058 = vmatprep.mubr.bf16.mxu0 0
        %6059 = vmatmul.mubr.bf16.gmra.mrb[0].mxu0 %v5929
        %v6060 = vpop.f32.mrb[0].mxu0
        %v6061 = vadd.f32 %v5905, %v6060
        %v6062 = vpop.f32.mrb[0].mxu0
        %v6063 = vadd.f32 %v5909, %v6062
        %v6064 = vpop.f32.mrb[0].mxu0
        %v6065 = vadd.f32 %v5905, %v6064
        %v6066 = vpop.f32.mrb[0].mxu0
        %v6067 = vadd.f32 %v5909, %v6066
        %6068 = vmatprep.mubr.bf16.mxu0 0
        %6069 = vmatmul.mubr.bf16.gmra.mrb[0].mxu0 %v5930
        %v6070 = vpop.f32.mrb[0].mxu0
        %v6071 = vadd.f32 %v5905, %v6070
        %v6072 = vpop.f32.mrb[0].mxu0
        %v6073 = vadd.f32 %v5909, %v6072
        %v6074 = vpop.f32.mrb[0].mxu0
        %v6075 = vadd.f32 %v5905, %v6074
        %v6076 = vpop.f32.mrb[0].mxu0
        %v6077 = vadd.f32 %v5909, %v6076
        %6078 = vmatprep.mubr.bf16.mxu0 0
        %6079 = vmatmul.mubr.bf16.gmra.mrb[0].mxu0 %v5931
        %v6080 = vpop.f32.mrb[0].mxu0
        %v6081 = vadd.f32 %v5905, %v6080
        %v6082 = vpop.f32.mrb[0].mxu0
        %v6083 = vadd.f32 %v5909, %v6082
        %v6084 = vpop.f32.mrb[0].mxu0
        %v6085 = vadd.f32 %v5905, %v6084
        %v6086 = vpop.f32.mrb[0].mxu0
        %v6087 = vadd.f32 %v5909, %v6086
        %6088 = vdwg.mxu0
        %v6089 = vadd.f32 %v5823, %v6051
        %v6090 = vadd.f32 %v5825, %v6053
        %v6091 = vadd.f32 %v5827, %v6055
        %v6092 = vadd.f32 %v5829, %v6057
        %v6093 = vadd.f32 %v5833, %v6061
        %v6094 = vadd.f32 %v5835, %v6063
        %v6095 = vadd.f32 %v5837, %v6065
        %v6096 = vadd.f32 %v5839, %v6067
        %v6097 = vadd.f32 %v5843, %v6071
        %v6098 = vadd.f32 %v5845, %v6073
        %v6099 = vadd.f32 %v5847, %v6075
        %v6100 = vadd.f32 %v5849, %v6077
        %v6101 = vadd.f32 %v5853, %v6081
        %v6102 = vadd.f32 %v5855, %v6083
        %v6103 = vadd.f32 %v5857, %v6085
        %v6104 = vadd.f32 %v5859, %v6087
        %v6105 = vmax.f32 %v6089, 0.0
        %v6106 = vmax.f32 %v6090, 0.0
        %v6107 = vmax.f32 %v6091, 0.0
        %v6108 = vmax.f32 %v6092, 0.0
        %v6109 = vmax.f32 %v6093, 0.0
        %v6110 = vmax.f32 %v6094, 0.0
        %v6111 = vmax.f32 %v6095, 0.0
        %v6112 = vmax.f32 %v6096, 0.0
        %v6113 = vmax.f32 %v6097, 0.0
        %v6114 = vmax.f32 %v6098, 0.0
        %v6115 = vmax.f32 %v6099, 0.0
        %v6116 = vmax.f32 %v6100, 0.0
        %v6117 = vmax.f32 %v6101, 0.0
        %v6118 = vmax.f32 %v6102, 0.0
        %v6119 = vmax.f32 %v6103, 0.0
        %v6120 = vmax.f32 %v6104, 0.0
        %6121 = vst [vmem:[%s377] sm:$0xff] %v6105
        %6122 = vst [vmem:[%s377 + $0x8] sm:$0xff] %v6106
        %6123 = vst [vmem:[%s377 + $0x10] sm:$0xff] %v6107
        %6124 = vst [vmem:[%s377 + $0x18] sm:$0xff] %v6108
        %6125 = vst [vmem:[%s377 + $0x20] sm:$0xff] %v6109
        %6126 = vst [vmem:[%s377 + $0x28] sm:$0xff] %v6110
        %6127 = vst [vmem:[%s377 + $0x30] sm:$0xff] %v6111
        %6128 = vst [vmem:[%s377 + $0x38] sm:$0xff] %v6112
        %6129 = vst [vmem:[%s377 + $0x40] sm:$0xff] %v6113
        %6130 = vst [vmem:[%s377 + $0x48] sm:$0xff] %v6114
        %6131 = vst [vmem:[%s377 + $0x50] sm:$0xff] %v6115
        %6132 = vst [vmem:[%s377 + $0x58] sm:$0xff] %v6116
        %6133 = vst [vmem:[%s377 + $0x60] sm:$0xff] %v6117
        %6134 = vst [vmem:[%s377 + $0x68] sm:$0xff] %v6118
        %6135 = vst [vmem:[%s377 + $0x70] sm:$0xff] %v6119
        %6136 = vst [vmem:[%s377 + $0x78] sm:$0xff] %v6120
        %s6137 = sand.u32 %s187, 1
        %s6138 = scalar_lea.sflag [#allocation6], %s6137
        %s6139 = sand.u32 %s187, 1
        %s6140 = smul.addr %s6139, 128
        %s6141 = scalar_lea.vmem [#allocation16], %s6140
        // Predicated region
        $region77: #{tpu_custom_call.1} parent=47 // pred_check
          %p6142 = pneg %p197
        $region78: #{tpu_custom_call.1} parent=47 // pred_check_branch
          %6144 = sbr.rel (%p6142) target = $region80
        $region79: #{tpu_custom_call.1} parent=47 // pred_region
          %s6146 = ssub.s32 2048, 2048
          %6147 = vsyncadd %s6138, %s6146
          %s6148 = smul.addr %s27, 16
          %s6149 = smul.addr %s6148, 128
          %s6150 = scalar_lea.hbm %s7, %s6149
          %s6151 = sshll.u32 %s6141, 4
          %s6152 = int_to_ptr.vmem [resolvable:$true] %s6151
          %6157 = dma.vmem_to_hbm [thread:$0]  %s6152, 2048, %s6150, %s6138, 256, 256, 16
        $region80: #{tpu_custom_call.1} parent=47 // pred_fallthru
          _
      $region48: #{tpu_custom_call.1} parent=5 // pred_fallthru
        _
      %p6158 = scmp.le.s32.totalorder 2, %s22
      // Predicated region
      $region81: #{tpu_custom_call.1} parent=5 // pred_check
        %p6159 = pneg %p6158
      $region82: #{tpu_custom_call.1} parent=5 // pred_check_branch
        %6161 = sbr.rel (%p6159) target = $region84
      $region83: #{tpu_custom_call.1} parent=5 // pred_region
        %s6162 = ssub.s32 %s22, 2
        // Predicated region
        $region85: #{tpu_custom_call.1} parent=83 // pred_check
          %p6163 = pneg %p203
        $region86: #{tpu_custom_call.1} parent=83 // pred_check_branch
          %6165 = sbr.rel (%p6163) target = $region88
        $region87: #{tpu_custom_call.1} parent=83 // pred_region
          %s6166 = sand.u32 %s188, 1
          %s6167 = scalar_lea.sflag [#allocation6], %s6166
          %s6168 = sand.u32 %s188, 1
          %s6169 = smul.addr %s6168, 128
          %s6170 = scalar_lea.vmem [#allocation16], %s6169
          %6171 = dma.done %s6167, 2048
        $region88: #{tpu_custom_call.1} parent=83 // pred_fallthru
          _
      $region84: #{tpu_custom_call.1} parent=5 // pred_fallthru
        _
    $region6: #{tpu_custom_call.1} parent=1 // loop_footer
      %s26 = sadd.s32 1, %s22
    $region7: #{tpu_custom_call.1} parent=1 // loop_footer_branch
      %21 = sbr.rel target = $region3
    $region8: #{tpu_custom_call.1} parent=1 // loop_exit
      _
    %6172 = vsyncpa [#allocation5], 1
    %s6173 = scalar_lea.sflag [#allocation5], 1
    %6174 = vsyncpa %s6173, 1
    %6175 = vsyncpa [#allocation8], 1
    %6176 = vsyncpa [#allocation11], 1
    %6177 = vsyncpa [#allocation14], 1
    %6178 = vsyncpa [#allocation6], 1
    %s6179 = scalar_lea.sflag [#allocation6], 1
    %6180 = vsyncpa %s6179, 1

</llo_original>
